<compile_context>
chip_gen: v6e
topology: v6e:2x2x1
jax: 0.10.0
libtpu: 0.0.40
codegen_flags: <defaults>
</compile_context>

<pallas_src>
import functools

import jax
import jax.numpy as jnp
import numpy as np
from jax.experimental import pallas as pl
from jax.experimental.pallas import tpu as pltpu

_LANE = 128


def _round_up(x, m):
    return ((x + m - 1) // m) * m


def _vmem_capacity_bytes():
    try:
        cap = getattr(pltpu.get_tpu_info(), "vmem_capacity_bytes", None)
        if cap:
            return int(cap)
    except Exception:
        pass
    return 64 * 1024 * 1024  # conservative fallback: v7x per-TensorCore VMEM


def _sine_layer_kernel(x_ref, w_ref, b_ref, o_ref, *, omega_0, compute_dtype,
                       precision):
    x = x_ref[...]
    if x.dtype != compute_dtype:
        x = x.astype(compute_dtype)   # VPU cast; avoids a wrapper-side HBM copy
    z = jnp.dot(x, w_ref[...], preferred_element_type=jnp.float32,
                precision=precision)  # MXU, f32 accumulation
    z = z + b_ref[...]                # (tm, tn) + (1, tn) broadcast, f32
    if omega_0 != 1.0:                # skipped when omega_0 is folded into W/b
        z = omega_0 * z
    # TODO(synk): optional bf16 sin epilogue (packed VALU on v6e/v7x) if a
    # bundle dump shows the VALU as the binding slot and accuracy tolerates it.
    o_ref[...] = jnp.sin(z).astype(o_ref.dtype)


def _pick_tiles(M, K, N_pad, x_bytes, w_bytes, out_bytes, budget):
    """Pick (tm, tn) row/column tiles for a given VMEM budget."""
    # Column tile: widest 128-aligned slice of N whose weight block fits half
    # the budget even if it ends up double-buffered (wide-layer safety on
    # v7x's 64 MiB VMEM / v5e's small scoped default).
    tn = N_pad
    while tn > _LANE and 2 * K * tn * w_bytes > budget // 2:
        tn = _round_up(max(_LANE, tn // 2), _LANE)
    # Row tile: largest multiple of 8 (<= 1024 rows) such that double-buffered
    # x/out tiles + resident weight/bias fit the budget, while keeping >= 4
    # grid steps when there is enough work (pipeline steady state; >= 2 steps
    # per TensorCore under v7x megacore sharding).
    fixed = 2 * K * tn * w_bytes + 4 * tn * 4
    per_row = 2 * K * x_bytes + 2 * tn * out_bytes
    tm_fit = max(8, ((budget - fixed) // max(per_row, 1)) // 8 * 8)
    tm_steps = max(_LANE, _round_up(pl.cdiv(M, 4), 8))
    tm = max(8, min(1024, tm_fit, tm_steps, _round_up(M, 8)))
    # TODO(synk): add a K grid axis (+ f32 accumulator scratch) for extremely
    # large in_features where even a tm=8 slab would not fit VMEM.
    return tm, tn


def sine_layer(x, w_p, b_p, *, n_out=None, omega_0=1.0, out_dtype=None):
    """sin(omega_0 * (x @ w_p + b_p)) with w_p/b_p from prepare_params().

    x:   [M, K]      float32 or bfloat16 (cast to w_p.dtype inside the kernel)
    w_p: [K, N_pad]  prepared weight (omega folded, N-padded, compute dtype)
    b_p: [1, N_pad]  prepared bias (float32)
    """
    M, K = x.shape
    Kw, N_pad = w_p.shape
    assert K == Kw, "in_features mismatch"
    n_out = N_pad if n_out is None else n_out
    out_dtype = jnp.dtype(out_dtype or x.dtype)
    compute_dtype = jnp.dtype(w_p.dtype)
    precision = (jax.lax.Precision.HIGHEST
                 if compute_dtype == jnp.float32 else None)

    cap = _vmem_capacity_bytes()
    budget = int(cap * 0.55)      # what our tiles may occupy
    vmem_limit = int(cap * 0.70)  # scoped limit; leaves compiler headroom

    tm, tn = _pick_tiles(M, K, N_pad, jnp.dtype(x.dtype).itemsize,
                         compute_dtype.itemsize, out_dtype.itemsize, budget)
    # N outer, M inner: weight/bias blocks are invariant across the inner loop.
    grid = (pl.cdiv(N_pad, tn), pl.cdiv(M, tm))

    kernel = functools.partial(_sine_layer_kernel, omega_0=float(omega_0),
                               compute_dtype=compute_dtype, precision=precision)
    cost = pl.CostEstimate(
        flops=2 * M * N_pad * K,
        transcendentals=M * N_pad,
        bytes_accessed=(M * K * jnp.dtype(x.dtype).itemsize
                        + K * N_pad * compute_dtype.itemsize
                        + N_pad * 4
                        + M * N_pad * out_dtype.itemsize),
    )

    def call(single_buffer_params):
        # Single-buffer the (inner-loop-invariant) weight/bias: halves their
        # VMEM footprint, freeing budget for larger row tiles.
        pm = ({"pipeline_mode": pl.Buffered(1)} if single_buffer_params else {})
        return pl.pallas_call(
            kernel,
            out_shape=jax.ShapeDtypeStruct((M, N_pad), out_dtype),
            grid_spec=pltpu.PrefetchScalarGridSpec(
                num_scalar_prefetch=0,
                grid=grid,
                in_specs=[
                    pl.BlockSpec((tm, K), lambda n, m: (m, 0)),        # x rows
                    pl.BlockSpec((K, tn), lambda n, m: (0, n), **pm),  # weight
                    pl.BlockSpec((1, tn), lambda n, m: (0, n), **pm),  # bias
                ],
                out_specs=pl.BlockSpec((tm, tn), lambda n, m: (m, n)),
            ),
            compiler_params=pltpu.CompilerParams(
                dimension_semantics=("parallel", "parallel"),
                vmem_limit_bytes=vmem_limit,
            ),
            cost_estimate=cost,
        )(x, w_p, b_p)

    try:
        out = call(True)
    except Exception:
        # pl.Buffered(1) unsupported on this jax build -> default buffering.
        out = call(False)

    return out if n_out == N_pad else out[:, :n_out]


def init_sine_layer_params(key, in_features, out_features, *, is_first=False,
                           omega_0=30.0):
    """Matches SineLayer.init_weights.  Returns (W^T [K, N], b [N]) in f32."""
    kw, kb = jax.random.split(key)
    if is_first:
        bound_w = 1.0 / in_features
    else:
        bound_w = float(np.sqrt(6.0 / in_features) / omega_0)
    # nn.Linear weight is [out, in]; store its transpose [in, out].
    w = jax.random.uniform(kw, (out_features, in_features), jnp.float32,
                           minval=-bound_w, maxval=bound_w)
    bound_b = 1.0 / float(np.sqrt(in_features))  # nn.Linear default bias init
    b = jax.random.uniform(kb, (out_features,), jnp.float32,
                           minval=-bound_b, maxval=bound_b)
    return w.T, b


def prepare_params(w_t, b, *, omega_0=30.0, fold_omega_0=True,
                   compute_dtype=jnp.bfloat16):
    """One-time weight prep: fold omega_0, pad N when useful, cast.

    sin(omega*(xW+b)) == sin(x(omega*W) + omega*b), so folding lets the kernel
    skip the per-element scale.  Returns (w_p, b_p, n_out, kernel_omega).
    """
    K, N = w_t.shape
    # N < 128 uses the full-dim BlockSpec exception (padding would only add
    # HBM traffic); N >= 128 is padded to a lane multiple for unmasked stores.
    N_pad = N if (N < _LANE or N % _LANE == 0) else _round_up(N, _LANE)
    scale = float(omega_0) if fold_omega_0 else 1.0
    w_p = (w_t * scale).astype(compute_dtype)
    b_p = (b * scale).astype(jnp.float32).reshape(1, N)
    if N_pad != N:
        w_p = jnp.zeros((K, N_pad), compute_dtype).at[:, :N].set(w_p)
        b_p = jnp.zeros((1, N_pad), jnp.float32).at[:, :N].set(b_p)
    return w_p, b_p, N, (1.0 if fold_omega_0 else float(omega_0))


if __name__ == "__main__":
    key = jax.random.PRNGKey(0)
    k_x, k_p = jax.random.split(key)

    # Ragged M, small un-padded K, N < 128 (full-dim output path).
    batch, in_features, out_features = 200, 32, 64
    omega_0 = 30.0

    x = jax.random.uniform(k_x, (batch, in_features), jnp.float32,
                           minval=-1.0, maxval=1.0)
    w_t, b = init_sine_layer_params(k_p, in_features, out_features,
                                    is_first=True, omega_0=omega_0)

    # --- Default fast path: bf16 matmul operands (f32 accumulation), omega folded.
    w_bf, b_bf, n_out, ko = prepare_params(w_t, b, omega_0=omega_0,
                                           fold_omega_0=True,
                                           compute_dtype=jnp.bfloat16)
    out_bf = jax.block_until_ready(sine_layer(x, w_bf, b_bf, n_out=n_out,
                                              omega_0=ko))
    xb = x.astype(jnp.bfloat16).astype(jnp.float32)
    wb = (w_t * omega_0).astype(jnp.bfloat16).astype(jnp.float32)
    ref_bf = jnp.sin(xb @ wb + (b * omega_0)[None, :])
    np.testing.assert_allclose(np.asarray(out_bf), np.asarray(ref_bf),
                               rtol=1e-4, atol=1e-4)

    # --- Exact-f32 path (matches the PyTorch module's f32 numerics).
    w_32, b_32, n_out32, ko32 = prepare_params(w_t, b, omega_0=omega_0,
                                               fold_omega_0=False,
                                               compute_dtype=jnp.float32)
    out_32 = jax.block_until_ready(sine_layer(x, w_32, b_32, n_out=n_out32,
                                              omega_0=ko32))
    x64 = np.asarray(x, np.float64)
    ref_32 = np.sin(omega_0 * (x64 @ np.asarray(w_t, np.float64)
                               + np.asarray(b, np.float64)[None, :]))
    np.testing.assert_allclose(np.asarray(out_32), ref_32,
                               rtol=2e-4, atol=2e-4)

    # --- bf16 output variant (feeds the next bf16 SIREN layer with half the
    #     output HBM / vector-store traffic).
    out_b16 = jax.block_until_ready(
        sine_layer(x, w_bf, b_bf, n_out=n_out, omega_0=ko,
                   out_dtype=jnp.bfloat16))
    np.testing.assert_allclose(np.asarray(out_b16.astype(jnp.float32)),
                               np.asarray(ref_bf), rtol=1e-2, atol=1e-2)

    print("KERNEL_OK")
</pallas_src>

<mosaic_0001>
module attributes {stable_mosaic.version = 11 : i64} {
  func.func @_sine_layer_kernel(%arg0: i32, %arg1: i32, %arg2: memref<128x32xf32, #tpu.memory_space<vmem>>, %arg3: memref<32x64xbf16, #tpu.memory_space<vmem>>, %arg4: memref<1x64xf32, #tpu.memory_space<vmem>>, %arg5: memref<128x64xf32, #tpu.memory_space<vmem>>) attributes {dimension_semantics = [#tpu.dimension_semantics<parallel>, #tpu.dimension_semantics<parallel>], iteration_bounds = array<i64: 1, 2>, scalar_prefetch = 0 : i64, scratch_operands = 0 : i64, tpu.core_type = #tpu.core_type<tc>, window_params = [{transform_indices = @transform_0, window_bounds = array<i64: 128, 32>}, {pipeline_mode = #tpu.pipeline_mode<synchronous>, transform_indices = @transform_1, window_bounds = array<i64: 32, 64>}, {pipeline_mode = #tpu.pipeline_mode<synchronous>, transform_indices = @transform_2, window_bounds = array<i64: 1, 64>}, {transform_indices = @transform_3, window_bounds = array<i64: 128, 64>}]} {
    %c0 = arith.constant 0 : index
    %c0_0 = arith.constant 0 : index
    %0 = vector.load %arg2[%c0, %c0_0] : memref<128x32xf32, #tpu.memory_space<vmem>>, vector<128x32xf32>
    %1 = arith.truncf %0 : vector<128x32xf32> to vector<128x32xbf16>
    %c0_1 = arith.constant 0 : index
    %c0_2 = arith.constant 0 : index
    %2 = vector.load %arg3[%c0_1, %c0_2] : memref<32x64xbf16, #tpu.memory_space<vmem>>, vector<32x64xbf16>
    %cst = arith.constant dense<0.000000e+00> : vector<128x64xf32>
    %3 = tpu.matmul %1, %2, %cst {dimension_numbers = #tpu.dot_dimension_numbers<[1], [0], [0], [1], [0, 0, 1, 1], [], []>} : vector<128x32xbf16>, vector<32x64xbf16>, vector<128x64xf32> -> vector<128x64xf32>
    %c0_3 = arith.constant 0 : index
    %c0_4 = arith.constant 0 : index
    %4 = vector.load %arg4[%c0_3, %c0_4] : memref<1x64xf32, #tpu.memory_space<vmem>>, vector<1x64xf32>
    %5 = vector.broadcast %4 : vector<1x64xf32> to vector<128x64xf32>
    %6 = arith.addf %3, %5 : vector<128x64xf32>
    %7 = math.sin %6 : vector<128x64xf32>
    %c0_5 = arith.constant 0 : index
    %c0_6 = arith.constant 0 : index
    %8 = vector.load %arg5[%c0_5, %c0_6] : memref<128x64xf32, #tpu.memory_space<vmem>>, vector<128x64xf32>
    tpu.vector_store %arg5[%c0_5, %c0_6], %7 {strides = array<i32>} : memref<128x64xf32, #tpu.memory_space<vmem>>, vector<128x64xf32>,
    return
  }
  func.func @transform_0(%arg0: i32, %arg1: i32) -> (i32, i32) {
    %c0_i32 = arith.constant 0 : i32
    %c0_i32_0 = arith.constant 0 : i32
    return %arg1, %c0_i32 : i32, i32
  }
  func.func @transform_1(%arg0: i32, %arg1: i32) -> (i32, i32) {
    %c0_i32 = arith.constant 0 : i32
    %c0_i32_0 = arith.constant 0 : i32
    return %c0_i32, %arg0 : i32, i32
  }
  func.func @transform_2(%arg0: i32, %arg1: i32) -> (i32, i32) {
    %c0_i32 = arith.constant 0 : i32
    %c0_i32_0 = arith.constant 0 : i32
    return %c0_i32, %arg0 : i32, i32
  }
  func.func @transform_3(%arg0: i32, %arg1: i32) -> (i32, i32) {
    %c0_i32 = arith.constant 0 : i32
    return %arg1, %arg0 : i32, i32
  }
}

module attributes {stable_mosaic.version = 11 : i64} {
  func.func @_sine_layer_kernel(%arg0: i32, %arg1: i32, %arg2: memref<128x32xf32, #tpu.memory_space<vmem>>, %arg3: memref<32x64xbf16, #tpu.memory_space<vmem>>, %arg4: memref<1x64xf32, #tpu.memory_space<vmem>>, %arg5: memref<128x64xf32, #tpu.memory_space<vmem>>) attributes {dimension_semantics = [#tpu.dimension_semantics<parallel>, #tpu.dimension_semantics<parallel>], iteration_bounds = array<i64: 1, 2>, scalar_prefetch = 0 : i64, scratch_operands = 0 : i64, tpu.core_type = #tpu.core_type<tc>, window_params = [{transform_indices = @transform_0, window_bounds = array<i64: 128, 32>}, {transform_indices = @transform_1, window_bounds = array<i64: 32, 64>}, {transform_indices = @transform_2, window_bounds = array<i64: 1, 64>}, {transform_indices = @transform_3, window_bounds = array<i64: 128, 64>}]} {
    %c0 = arith.constant 0 : index
    %c0_0 = arith.constant 0 : index
    %0 = vector.load %arg2[%c0, %c0_0] : memref<128x32xf32, #tpu.memory_space<vmem>>, vector<128x32xf32>
    %1 = arith.truncf %0 : vector<128x32xf32> to vector<128x32xbf16>
    %c0_1 = arith.constant 0 : index
    %c0_2 = arith.constant 0 : index
    %2 = vector.load %arg3[%c0_1, %c0_2] : memref<32x64xbf16, #tpu.memory_space<vmem>>, vector<32x64xbf16>
    %cst = arith.constant dense<0.000000e+00> : vector<128x64xf32>
    %3 = tpu.matmul %1, %2, %cst {dimension_numbers = #tpu.dot_dimension_numbers<[1], [0], [0], [1], [0, 0, 1, 1], [], []>} : vector<128x32xbf16>, vector<32x64xbf16>, vector<128x64xf32> -> vector<128x64xf32>
    %c0_3 = arith.constant 0 : index
    %c0_4 = arith.constant 0 : index
    %4 = vector.load %arg4[%c0_3, %c0_4] : memref<1x64xf32, #tpu.memory_space<vmem>>, vector<1x64xf32>
    %5 = vector.broadcast %4 : vector<1x64xf32> to vector<128x64xf32>
    %6 = arith.addf %3, %5 : vector<128x64xf32>
    %7 = math.sin %6 : vector<128x64xf32>
    %c0_5 = arith.constant 0 : index
    %c0_6 = arith.constant 0 : index
    %8 = vector.load %arg5[%c0_5, %c0_6] : memref<128x64xf32, #tpu.memory_space<vmem>>, vector<128x64xf32>
    tpu.vector_store %arg5[%c0_5, %c0_6], %7 {strides = array<i32>} : memref<128x64xf32, #tpu.memory_space<vmem>>, vector<128x64xf32>,
    return
  }
  func.func @transform_0(%arg0: i32, %arg1: i32) -> (i32, i32) {
    %c0_i32 = arith.constant 0 : i32
    %c0_i32_0 = arith.constant 0 : i32
    return %arg1, %c0_i32 : i32, i32
  }
  func.func @transform_1(%arg0: i32, %arg1: i32) -> (i32, i32) {
    %c0_i32 = arith.constant 0 : i32
    %c0_i32_0 = arith.constant 0 : i32
    return %c0_i32, %arg0 : i32, i32
  }
  func.func @transform_2(%arg0: i32, %arg1: i32) -> (i32, i32) {
    %c0_i32 = arith.constant 0 : i32
    %c0_i32_0 = arith.constant 0 : i32
    return %c0_i32, %arg0 : i32, i32
  }
  func.func @transform_3(%arg0: i32, %arg1: i32) -> (i32, i32) {
    %c0_i32 = arith.constant 0 : i32
    return %arg1, %arg0 : i32, i32
  }
}

</mosaic_0001>

<llo_original>
// kernel: tpu_custom_call.1
$region0: #{tpu_custom_call.1}
  #allocation0 [shape = 'u32[]', space=smem, size = 0x4, offset = 0x4, fixed_abs, tag = 'smem constant byte address 0x4 - core index']
  #allocation1 [shape = 'u32[144,128]{1,0:T(1,128)}', space=vmem, size = 0x12000, scoped, tag = 'internal scratch']
  %s0 = inlined_call_operand.vmem [shape: f32[200,32], index: 0, kind: input, shape index: {}]
  %s1 = inlined_call_operand.vmem [shape: bf16[32,64], index: 1, kind: input, shape index: {}]
  %s2 = inlined_call_operand.vmem [shape: f32[1,64], index: 2, kind: input, shape index: {}]
  %s3 = inlined_call_operand.vmem [shape: f32[200,64], index: 3, kind: output, shape index: {}]
  %s4 = sld [smem:[#allocation0]]
  $region93: #{tpu_custom_call.1} parent=0
    _
  %s6 = ssub.s32 1, %s4
  %s7 = scalar_select 0, %s6, %s4
  $region1: #{tpu_custom_call.1} parent=0
    #allocation2 [shape = 'u8[131072]{0}', space=vmem, size = 0x20000, scoped, tag = 'output window, operand 0']
    loop: start=0, step=1, limit=4
    $region2: #{tpu_custom_call.1} parent=1 // loop_pre_header
      _
    $region3: #{tpu_custom_call.1} parent=1 // loop_header
      %s9 = sphi 0, %s13
      %p10 = scmp.ge.s32.totalorder %s9, 4
      %s16 = sphi 0, %s28
      %s17 = sphi 0, %s24
      %s18 = sphi 0, %s16
      %s19 = sphi 0, %s17
      %s20 = sphi 0, %s18
      %s21 = sphi 0, %s19
      %s31 = sphi 0, %s33
      %s34 = sphi 0, %s31
      %s35 = sphi 0, %s34
      %s51 = sphi 0, %s35
      %s57 = sphi 0, %s59
      %s60 = sphi 0, %s57
      %s61 = sphi 0, %s60
      %s77 = sphi 0, %s61
      %s83 = sphi 0, %s85
      %s86 = sphi 0, %s83
      %s87 = sphi 0, %s86
      %s103 = sphi 0, %s87
      %s111 = sphi 0, %s113
      %s114 = sphi 0, %s111
      %s115 = sphi 0, %s114
      %s131 = sphi 0, %s115
    $region4: #{tpu_custom_call.1} parent=1 // loop_header_branch
      %12 = sbr.rel (%p10) target = $region8
    $region5: #{tpu_custom_call.1} parent=1 // loop_body
      %s14 = ssub.s32 %s9, 1
      %s15 = ssub.s32 %s9, 2
      %s22 = sadd.s32 1, %s17
      %p23 = scmp.ge.s32.totalorder %s22, 2
      %s24 = scalar_select %p23, 0, %s22
      %s25 = sadd.s32 1, %s16
      %s26 = scalar_select %p23, %s25, %s16
      %p27 = scmp.ge.s32.totalorder %s26, 1
      %s28 = scalar_select %p27, 0, %s26
      %s29 = ssub.s32 %s17, %s24
      %p30 = scmp.eq.s32.totalorder %s29, 0
      %s32 = sadd.s32 %s31, 1
      %s33 = scalar_select %p30, %s31, %s32
      %p36 = pneg %p30
      %p37 = scmp.eq.s32.totalorder %s9, 1
      %p38 = por %p36, %p37
      %p39 = scmp.ne.s32.totalorder %s31, %s34
      %p40 = scmp.eq.s32.totalorder %s9, 0
      %p41 = por %p39, %p40
      %p42 = scmp.ne.s32.totalorder %s31, %s34
      %p43 = scmp.eq.s32.totalorder %s14, 1
      %p44 = por %p42, %p43
      %p45 = scmp.ne.s32.totalorder %s34, %s35
      %p46 = scmp.eq.s32.totalorder %s14, 0
      %p47 = por %p45, %p46
      %p48 = scmp.ne.s32.totalorder %s34, %s35
      %p49 = scmp.eq.s32.totalorder %s15, 1
      %p50 = por %p48, %p49
      %p52 = scmp.ne.s32.totalorder %s35, %s51
      %p53 = scmp.eq.s32.totalorder %s15, 0
      %p54 = por %p52, %p53
      %s55 = ssub.s32 %s16, %s28
      %p56 = scmp.eq.s32.totalorder %s55, 0
      %s58 = sadd.s32 %s57, 1
      %s59 = scalar_select %p56, %s57, %s58
      %p62 = pneg %p56
      %p63 = scmp.eq.s32.totalorder %s9, 1
      %p64 = por %p62, %p63
      %p65 = scmp.ne.s32.totalorder %s57, %s60
      %p66 = scmp.eq.s32.totalorder %s9, 0
      %p67 = por %p65, %p66
      %p68 = scmp.ne.s32.totalorder %s57, %s60
      %p69 = scmp.eq.s32.totalorder %s14, 1
      %p70 = por %p68, %p69
      %p71 = scmp.ne.s32.totalorder %s60, %s61
      %p72 = scmp.eq.s32.totalorder %s14, 0
      %p73 = por %p71, %p72
      %p74 = scmp.ne.s32.totalorder %s60, %s61
      %p75 = scmp.eq.s32.totalorder %s15, 1
      %p76 = por %p74, %p75
      %p78 = scmp.ne.s32.totalorder %s61, %s77
      %p79 = scmp.eq.s32.totalorder %s15, 0
      %p80 = por %p78, %p79
      %s81 = ssub.s32 %s16, %s28
      %p82 = scmp.eq.s32.totalorder %s81, 0
      %s84 = sadd.s32 %s83, 1
      %s85 = scalar_select %p82, %s83, %s84
      %p88 = pneg %p82
      %p89 = scmp.eq.s32.totalorder %s9, 1
      %p90 = por %p88, %p89
      %p91 = scmp.ne.s32.totalorder %s83, %s86
      %p92 = scmp.eq.s32.totalorder %s9, 0
      %p93 = por %p91, %p92
      %p94 = scmp.ne.s32.totalorder %s83, %s86
      %p95 = scmp.eq.s32.totalorder %s14, 1
      %p96 = por %p94, %p95
      %p97 = scmp.ne.s32.totalorder %s86, %s87
      %p98 = scmp.eq.s32.totalorder %s14, 0
      %p99 = por %p97, %p98
      %p100 = scmp.ne.s32.totalorder %s86, %s87
      %p101 = scmp.eq.s32.totalorder %s15, 1
      %p102 = por %p100, %p101
      %p104 = scmp.ne.s32.totalorder %s87, %s103
      %p105 = scmp.eq.s32.totalorder %s15, 0
      %p106 = por %p104, %p105
      %s107 = ssub.s32 %s17, %s24
      %s108 = ssub.s32 %s16, %s28
      %s109 = sor.u32 %s107, %s108
      %p110 = scmp.eq.s32.totalorder %s109, 0
      %s112 = sadd.s32 %s111, 1
      %s113 = scalar_select %p110, %s111, %s112
      %p116 = pneg %p110
      %p117 = scmp.eq.s32.totalorder %s9, 1
      %p118 = por %p116, %p117
      %p119 = scmp.ne.s32.totalorder %s111, %s114
      %p120 = scmp.eq.s32.totalorder %s9, 0
      %p121 = por %p119, %p120
      %p122 = scmp.ne.s32.totalorder %s111, %s114
      %p123 = scmp.eq.s32.totalorder %s14, 1
      %p124 = por %p122, %p123
      %p125 = scmp.ne.s32.totalorder %s114, %s115
      %p126 = scmp.eq.s32.totalorder %s14, 0
      %p127 = por %p125, %p126
      %p128 = scmp.ne.s32.totalorder %s114, %s115
      %p129 = scmp.eq.s32.totalorder %s15, 1
      %p130 = por %p128, %p129
      %p132 = scmp.ne.s32.totalorder %s115, %s131
      %p133 = scmp.eq.s32.totalorder %s15, 0
      %p134 = por %p132, %p133
      %p135 = scmp.le.s32.totalorder 1, %s9
      %p136 = scmp.lt.s32.totalorder %s9, 3
      %p137 = pnand %p135, %p136
      %p138 = pneg %p137
      // Predicated region
      $region9: #{tpu_custom_call.1} parent=5 // pred_check
        _
      $region10: #{tpu_custom_call.1} parent=5 // pred_check_branch
        %140 = sbr.rel (%p137) target = $region12
      $region11: #{tpu_custom_call.1} parent=5 // pred_region
        %s141 = ssub.s32 %s9, 1
        // Predicated region
        $region13: #{tpu_custom_call.1} parent=11 // pred_check
          %p142 = pneg %p73
        $region14: #{tpu_custom_call.1} parent=11 // pred_check_branch
          %144 = sbr.rel (%p142) target = $region16
        $region15: #{tpu_custom_call.1} parent=11 // pred_region
          %p145 = scmp.lt.s32.totalorder %s18, 0
          %s146 = scalar_select %p145, %s18, 0
          %s147 = smul.addr %s146, 4
          %s148 = scalar_lea.vmem %s1, %s147
        $region16: #{tpu_custom_call.1} parent=11 // pred_fallthru
          _
        // Predicated region
        $region17: #{tpu_custom_call.1} parent=11 // pred_check
          %p149 = pneg %p99
        $region18: #{tpu_custom_call.1} parent=11 // pred_check_branch
          %151 = sbr.rel (%p149) target = $region20
        $region19: #{tpu_custom_call.1} parent=11 // pred_region
          %p152 = scmp.lt.s32.totalorder %s18, 0
          %s153 = scalar_select %p152, %s18, 0
          %s154 = scalar_lea.vmem %s2, %s153
        $region20: #{tpu_custom_call.1} parent=11 // pred_fallthru
          _
      $region12: #{tpu_custom_call.1} parent=5 // pred_fallthru
        _
      %p155 = scmp.lt.s32.totalorder %s9, 2
      // Predicated region
      $region21: #{tpu_custom_call.1} parent=5 // pred_check
        %p156 = pneg %p155
      $region22: #{tpu_custom_call.1} parent=5 // pred_check_branch
        %158 = sbr.rel (%p156) target = $region24
      $region23: #{tpu_custom_call.1} parent=5 // pred_region
        // Predicated region
        $region25: #{tpu_custom_call.1} parent=23 // pred_check
          %p159 = pneg %p41
        $region26: #{tpu_custom_call.1} parent=23 // pred_check_branch
          %161 = sbr.rel (%p159) target = $region28
        $region27: #{tpu_custom_call.1} parent=23 // pred_region
          %s162 = smul.u32 16, %s17
          %s163 = ssub.s32 25, %s162
          %p164 = scmp.lt.s32.totalorder %s163, 16
          %s165 = scalar_select %p164, %s163, 16
          %s166 = smul.u32 128, %s165
          %p167 = scmp.lt.s32.totalorder %s162, 24
          %s168 = scalar_select %p167, %s162, 24
          %s169 = smul.addr %s168, 8
          %s170 = scalar_lea.vmem %s0, %s169
          %s171 = smul.u32 16, %s17
          %s172 = ssub.s32 25, %s171
          %p173 = scmp.lt.s32.totalorder %s172, 16
          %s174 = scalar_select %p173, %s172, 16
          %s175 = smul.u32 128, %s174
        $region28: #{tpu_custom_call.1} parent=23 // pred_fallthru
          _
      $region24: #{tpu_custom_call.1} parent=5 // pred_fallthru
        _
      %p176 = scmp.le.s32.totalorder 1, %s9
      %p177 = scmp.lt.s32.totalorder %s9, 3
      %p178 = pnand %p176, %p177
      %p179 = pneg %p178
      // Predicated region
      $region29: #{tpu_custom_call.1} parent=5 // pred_check
        _
      $region30: #{tpu_custom_call.1} parent=5 // pred_check_branch
        %181 = sbr.rel (%p178) target = $region32
      $region31: #{tpu_custom_call.1} parent=5 // pred_region
        %s182 = ssub.s32 %s9, 1
        %s183 = smul.u32 16, %s19
        %s184 = ssub.s32 25, %s183
        %p185 = scmp.lt.s32.totalorder %s184, 16
        %s186 = scalar_select %p185, %s184, 16
        %s187 = smul.u32 128, %s186
        %p188 = scmp.lt.s32.totalorder %s183, 24
        %s189 = scalar_select %p188, %s183, 24
        %s190 = smul.addr %s189, 8
        %s191 = scalar_lea.vmem %s0, %s190
        %p192 = pneg %p47
        %p193 = pneg %p44
        %p194 = scmp.lt.s32.totalorder %s18, 0
        %s195 = scalar_select %p194, %s18, 0
        %s196 = smul.addr %s195, 4
        %s197 = scalar_lea.vmem %s1, %s196
        %p198 = pneg %p73
        %p199 = pneg %p70
        %p200 = scmp.lt.s32.totalorder %s18, 0
        %s201 = scalar_select %p200, %s18, 0
        %s202 = scalar_lea.vmem %s2, %s201
        %p203 = pneg %p99
        %p204 = pneg %p96
        %p205 = pneg %p127
        %p206 = pneg %p124
        %s207 = sand.u32 %s114, 1
        %s208 = sand.u32 %s114, 1
        %s209 = smul.addr %s208, 128
        %s210 = scalar_lea.vmem [#allocation2], %s209
        %s211 = smul.u32 16, %s19
        %s212 = ssub.s32 25, %s211
        %p213 = scmp.lt.s32.totalorder %s212, 16
        %s214 = scalar_select %p213, %s212, 16
        %s215 = smul.u32 128, %s214
        %p216 = scmp.lt.s32.totalorder %s211, 24
        %s217 = scalar_select %p216, %s211, 24
        %s218 = smul.addr %s217, 8
        %s219 = scalar_lea.vmem %s0, %s218
        %s220 = smul.u32 16, %s19
        %s221 = ssub.s32 25, %s220
        %p222 = scmp.lt.s32.totalorder %s221, 16
        %s223 = scalar_select %p222, %s221, 16
        %s224 = smul.u32 128, %s223
        %p225 = scmp.lt.s32.totalorder %s18, 0
        %s226 = scalar_select %p225, %s18, 0
        %s227 = smul.addr %s226, 4
        %s228 = scalar_lea.vmem %s1, %s227
        %p229 = scmp.lt.s32.totalorder %s18, 0
        %s230 = scalar_select %p229, %s18, 0
        %s231 = scalar_lea.vmem %s2, %s230
        %s232 = smul.u32 16, %s19
        %s233 = ssub.s32 25, %s232
        %p234 = scmp.lt.s32.totalorder %s233, 16
        %s235 = scalar_select %p234, %s233, 16
        %s236 = smul.u32 128, %s235
        %v238 = vld [vmem:[%s219] sm:$0xff]
        %v239 = vld [vmem:[%s219 + $0x8] sm:$0xff]
        %v240 = vld [vmem:[%s219 + $0x10] sm:$0xff]
        %v241 = vld [vmem:[%s219 + $0x18] sm:$0xff]
        %v242 = vld [vmem:[%s219 + $0x20] sm:$0xff]
        %v243 = vld [vmem:[%s219 + $0x28] sm:$0xff]
        %v244 = vld [vmem:[%s219 + $0x30] sm:$0xff]
        %v245 = vld [vmem:[%s219 + $0x38] sm:$0xff]
        %v246 = vld [vmem:[%s219 + $0x40] sm:$0xff]
        %v247 = vld [vmem:[%s219 + $0x48] sm:$0xff]
        %v248 = vld [vmem:[%s219 + $0x50] sm:$0xff]
        %v249 = vld [vmem:[%s219 + $0x58] sm:$0xff]
        %v250 = vld [vmem:[%s219 + $0x60] sm:$0xff]
        %v251 = vld [vmem:[%s219 + $0x68] sm:$0xff]
        %v252 = vld [vmem:[%s219 + $0x70] sm:$0xff]
        %v253 = vld [vmem:[%s219 + $0x78] sm:$0xff]
        %v254 = vpack.c.bf16 %v239, %v238
        %v255 = vpack.c.bf16 %v241, %v240
        %v256 = vpack.c.bf16 %v243, %v242
        %v257 = vpack.c.bf16 %v245, %v244
        %v258 = vpack.c.bf16 %v247, %v246
        %v259 = vpack.c.bf16 %v249, %v248
        %v260 = vpack.c.bf16 %v251, %v250
        %v261 = vpack.c.bf16 %v253, %v252
        %v262 = vld [vmem:[%s228] sm:$0xf]
        %v263 = vld [vmem:[%s228 + $0x4] sm:$0xf]
        %v264 = vld [vmem:[%s228 + $0x8] sm:$0xf]
        %v265 = vld [vmem:[%s228 + $0xc] sm:$0xf]
        %v266 = vld [vmem:[%s231] sm:$0x1]
        %v268 = vlaneseq
        %v269 = vshrl.u32 %v268, 7
        %v270 = vsub.s32 0, %v269
        %v271 = vrot.slane %v266, %v270
        %v277 = vunpack.c.l.b16 %v262
        %v278 = vunpack.c.l.b16 %v263
        %v279 = vunpack.c.l.b16 %v264
        %v280 = vunpack.c.l.b16 %v265
        %v281 = vpack.c.b16 %v278, %v277
        %v282 = vpack.c.b16 %v280, %v279
        %vm285 = vcmask 261120
        %v287 = vsel %vm285, %v254, 0
        %v290 = vsel %vm285, %v255, 0
        %v293 = vsel %vm285, %v256, 0
        %v296 = vsel %vm285, %v257, 0
        %v299 = vsel %vm285, %v258, 0
        %v302 = vsel %vm285, %v259, 0
        %v305 = vsel %vm285, %v260, 0
        %v308 = vsel %vm285, %v261, 0
        %310 = vmatprep.subr.bf16.mxu0 0
        %311 = vmatpush1.bf16.msra.mxu0 0
        %312 = vmatprep.subr.bf16.mxu0 0
        %313 = vmatpush1.bf16.msra.mxu0 0
        %314 = vmatprep.subr.bf16.mxu0 0
        %315 = vmatpush1.bf16.msra.mxu0 0
        %316 = vmatprep.subr.bf16.mxu0 0
        %317 = vmatpush1.bf16.msra.mxu0 0
        %318 = vmatprep.subr.bf16.mxu0 0
        %319 = vmatpush1.bf16.msra.mxu0 0
        %320 = vmatprep.subr.bf16.mxu0 0
        %321 = vmatpush1.bf16.msra.mxu0 0
        %322 = vmatprep.subr.bf16.mxu0 0
        %323 = vmatpush1.bf16.msra.mxu0 %v282
        %324 = vmatprep.subr.bf16.mxu0 0
        %325 = vmatpush1.bf16.msra.mxu0 %v281
        %326 = vmatprep.subr.bf16.mxu0 0
        %327 = vmatpush2.bf16.msra.mxu0 0
        %328 = vmatprep.subr.bf16.mxu0 0
        %329 = vmatpush2.bf16.msra.mxu0 0
        %330 = vmatprep.subr.bf16.mxu0 0
        %331 = vmatpush2.bf16.msra.mxu0 0
        %332 = vmatprep.subr.bf16.mxu0 0
        %333 = vmatpush2.bf16.msra.mxu0 0
        %334 = vmatprep.subr.bf16.mxu0 0
        %335 = vmatpush2.bf16.msra.mxu0 0
        %336 = vmatprep.subr.bf16.mxu0 0
        %337 = vmatpush2.bf16.msra.mxu0 0
        %338 = vmatprep.subr.bf16.mxu0 0
        %339 = vmatpush2.bf16.msra.mxu0 0
        %340 = vmatprep.subr.bf16.mxu0 0
        %341 = vmatpush2.bf16.msra.mxu0 0
        %342 = vmatprep.mubr.bf16.mxu0 0
        %343 = vmatmul.mubr.bf16.gmra.mxu0 %v287
        %v344 = vpop.f32.mrf.mxu0
        %v345 = vadd.f32 %v271, %v344
        %v346 = vpop.f32.mrf.mxu0
        %v347 = vpop.f32.mrf.mxu0
        %v348 = vadd.f32 %v271, %v347
        %v349 = vpop.f32.mrf.mxu0
        %350 = vmatprep.mubr.bf16.mxu0 0
        %351 = vmatmul.mubr.bf16.gmra.mxu0 %v290
        %v352 = vpop.f32.mrf.mxu0
        %v353 = vadd.f32 %v271, %v352
        %v354 = vpop.f32.mrf.mxu0
        %v355 = vpop.f32.mrf.mxu0
        %v356 = vadd.f32 %v271, %v355
        %v357 = vpop.f32.mrf.mxu0
        %358 = vmatprep.mubr.bf16.mxu0 0
        %359 = vmatmul.mubr.bf16.gmra.mxu0 %v293
        %v360 = vpop.f32.mrf.mxu0
        %v361 = vadd.f32 %v271, %v360
        %v362 = vpop.f32.mrf.mxu0
        %v363 = vpop.f32.mrf.mxu0
        %v364 = vadd.f32 %v271, %v363
        %v365 = vpop.f32.mrf.mxu0
        %366 = vmatprep.mubr.bf16.mxu0 0
        %367 = vmatmul.mubr.bf16.gmra.mxu0 %v296
        %v368 = vpop.f32.mrf.mxu0
        %v369 = vadd.f32 %v271, %v368
        %v370 = vpop.f32.mrf.mxu0
        %v371 = vpop.f32.mrf.mxu0
        %v372 = vadd.f32 %v271, %v371
        %v373 = vpop.f32.mrf.mxu0
        %374 = vmatprep.mubr.bf16.mxu0 0
        %375 = vmatmul.mubr.bf16.gmra.mxu0 %v299
        %v376 = vpop.f32.mrf.mxu0
        %v377 = vadd.f32 %v271, %v376
        %v378 = vpop.f32.mrf.mxu0
        %v379 = vpop.f32.mrf.mxu0
        %v380 = vadd.f32 %v271, %v379
        %v381 = vpop.f32.mrf.mxu0
        %382 = vmatprep.mubr.bf16.mxu0 0
        %383 = vmatmul.mubr.bf16.gmra.mxu0 %v302
        %v384 = vpop.f32.mrf.mxu0
        %v385 = vadd.f32 %v271, %v384
        %v386 = vpop.f32.mrf.mxu0
        %v387 = vpop.f32.mrf.mxu0
        %v388 = vadd.f32 %v271, %v387
        %v389 = vpop.f32.mrf.mxu0
        %390 = vmatprep.mubr.bf16.mxu0 0
        %391 = vmatmul.mubr.bf16.gmra.mxu0 %v305
        %v392 = vpop.f32.mrf.mxu0
        %v393 = vadd.f32 %v271, %v392
        %v394 = vpop.f32.mrf.mxu0
        %v395 = vpop.f32.mrf.mxu0
        %v396 = vadd.f32 %v271, %v395
        %v397 = vpop.f32.mrf.mxu0
        %398 = vmatprep.mubr.bf16.mxu0 0
        %399 = vmatmul.mubr.bf16.gmra.mxu0 %v308
        %v400 = vpop.f32.mrf.mxu0
        %v401 = vadd.f32 %v271, %v400
        %v402 = vpop.f32.mrf.mxu0
        %v403 = vpop.f32.mrf.mxu0
        %v404 = vadd.f32 %v271, %v403
        %v405 = vpop.f32.mrf.mxu0
        %406 = vdwg.mxu0
        %v407 = vand.u32 2147483647, %v345
        %vm408 = vcmp.le.f32.partialorder %v407, 0.7853982
        %vm409 = vcmp.lt.s32.totalorder %v345, 0
        %v410 = vand.u32 %v345, 2139095040
        %v411 = vshrl.u32 %v410, 23
        %v412 = vsub.s32 %v411, 127
        %v413 = vand.u32 2147483647, %v345
        %v414 = vand.u32 %v413, 8388607
        %v415 = vor.u32 %v414, 8388608
        %v416 = vsub.s32 0, %v415
        %v417 = vadd.s32 %v412, 1
        %vm418 = vcmp.gt.s32.totalorder %v417, 0
        %v419 = vsel %vm418, %v417, 0
        %v420 = vshrl.u32 %v419, 5
        %v421 = vand.u32 %v419, 31
        %v422 = vsub.s32 32, %v421
        %v423 = vshrl.u32 683565275, %v422
        %v424 = vshll.u32 683565275, %v421
        %v425 = vshrl.u32 2475754826, %v422
        %v426 = vor.u32 %v424, %v425
        %v427 = vshll.u32 2475754826, %v421
        %v428 = vshrl.u32 2131351028, %v422
        %v429 = vor.u32 %v427, %v428
        %v430 = vshll.u32 2131351028, %v421
        %v431 = vshrl.u32 2102212464, %v422
        %v432 = vor.u32 %v430, %v431
        %v433 = vshll.u32 2102212464, %v421
        %v434 = vshrl.u32 920167782, %v422
        %v435 = vor.u32 %v433, %v434
        %v436 = vshll.u32 920167782, %v421
        %v437 = vshrl.u32 1326507024, %v422
        %v438 = vor.u32 %v436, %v437
        %vm439 = vcmp.lt.s32.totalorder %v420, 1
        %vm440 = vcmp.lt.s32.totalorder %v420, 2
        %vm441 = vcmp.lt.s32.totalorder %v420, 3
        %vm442 = vcmp.lt.s32.totalorder %v420, 4
        %v443 = vsel %vm439, %v423, %v426
        %v444 = vsel %vm442, %v432, 2102212464
        %v445 = vsel %vm441, %v429, %v444
        %v446 = vsel %vm440, %v443, %v445
        %v447 = vsel %vm439, %v426, %v429
        %v448 = vsel %vm442, %v435, 920167782
        %v449 = vsel %vm441, %v432, %v448
        %v450 = vsel %vm440, %v447, %v449
        %v451 = vsel %vm439, %v429, %v432
        %v452 = vsel %vm442, %v438, 1326507024
        %v453 = vsel %vm441, %v435, %v452
        %v454 = vsel %vm440, %v451, %v453
        %v455 = vshll.u32 %v415, 8
        %v456 = vmul.u32.u64.compose %v455, %v454
        %v457 = vextract.low.u32 %v456
        %v458 = vextract.high.u32 %v456
        %v459 = vmul.u32.u64.compose %v455, %v450
        %v460 = vextract.low.u32 %v459
        %v461 = vextract.high.u32 %v459
        %v462 = vmul.u32 %v455, %v446
        %v463 = vadd.s32 %v458, %v460
        %vm464 = vc.u32 %v458, %v460
        %v465 = vadd.s32 %v461, 1
        %v466 = vsel %vm464, %v465, %v461
        %v467 = vadd.s32 %v462, %v466
        %v468 = vadd.s32 %v467, 536870912
        %v469 = vshrl.u32 %v468, 30
        %v470 = vshll.u32 %v469, 30
        %v471 = vsub.s32 %v467, %v470
        %vm472 = vcmp.lt.s32.totalorder %v471, 0
        %v473 = vsub.s32 0, %v471
        %v474 = vsel %vm472, %v473, %v471
        %v475 = vclz %v474
        %v476 = vsub.s32 %v475, 2
        %vm477 = vcmp.gt.s32.totalorder 0, %v476
        %v478 = vsel %vm477, 0, %v476
        %v479 = vsub.s32 32, %v478
        %v480 = vshll.u32 %v471, %v478
        %v481 = vshrl.u32 %v463, %v479
        %v482 = vor.u32 %v480, %v481
        %v483 = vsub.s32 4294967266, %v478
        %v484 = vadd.s32 %v483, 127
        %v485 = vshll.u32 %v484, 23
        %v486 = vor.u32 4788187, %v485
        %v487 = vand.u32 2147483647, %v486
        %v489 = vcvt.s32.f32 %v482
        %v490 = vmul.f32 %v489, %v487
        %v491 = vxor.u32 %v490, 2147483648
        %v492 = vsel %vm409, %v491, %v490
        %v493 = vsub.s32 4, %v469
        %v494 = vsel %vm409, %v493, %v469
        %v495 = vsel %vm408, %v345, %v492
        %v496 = vsel %vm408, 0, %v494
        %v497 = vcosq.f32.pop %v495
        %v498 = vsinq.f32.pop %v495
        %vm499 = vweird.f32 %v345
        %v500 = vadd.s32 %v496, 3
        %v501 = vand.u32 %v500, 3
        %vm502 = vcmp.lt.s32.totalorder %v501, 2
        %vm503 = vcmp.eq.s32.totalorder %v501, 0
        %v504 = vxor.u32 %v498, 2147483648
        %v505 = vsel %vm503, %v497, %v504
        %vm506 = vcmp.eq.s32.totalorder %v501, 2
        %v507 = vxor.u32 %v497, 2147483648
        %v508 = vsel %vm506, %v507, %v498
        %v509 = vsel %vm502, %v505, %v508
        %v510 = vsel %vm499, nan, %v509
        %v511 = vand.u32 2147483647, %v348
        %vm512 = vcmp.le.f32.partialorder %v511, 0.7853982
        %vm513 = vcmp.lt.s32.totalorder %v348, 0
        %v514 = vand.u32 %v348, 2139095040
        %v515 = vshrl.u32 %v514, 23
        %v516 = vsub.s32 %v515, 127
        %v517 = vand.u32 2147483647, %v348
        %v518 = vand.u32 %v517, 8388607
        %v519 = vor.u32 %v518, 8388608
        %v520 = vsub.s32 0, %v519
        %v521 = vadd.s32 %v516, 1
        %vm522 = vcmp.gt.s32.totalorder %v521, 0
        %v523 = vsel %vm522, %v521, 0
        %v524 = vshrl.u32 %v523, 5
        %v525 = vand.u32 %v523, 31
        %v526 = vsub.s32 32, %v525
        %v527 = vshrl.u32 683565275, %v526
        %v528 = vshll.u32 683565275, %v525
        %v529 = vshrl.u32 2475754826, %v526
        %v530 = vor.u32 %v528, %v529
        %v531 = vshll.u32 2475754826, %v525
        %v532 = vshrl.u32 2131351028, %v526
        %v533 = vor.u32 %v531, %v532
        %v534 = vshll.u32 2131351028, %v525
        %v535 = vshrl.u32 2102212464, %v526
        %v536 = vor.u32 %v534, %v535
        %v537 = vshll.u32 2102212464, %v525
        %v538 = vshrl.u32 920167782, %v526
        %v539 = vor.u32 %v537, %v538
        %v540 = vshll.u32 920167782, %v525
        %v541 = vshrl.u32 1326507024, %v526
        %v542 = vor.u32 %v540, %v541
        %vm543 = vcmp.lt.s32.totalorder %v524, 1
        %vm544 = vcmp.lt.s32.totalorder %v524, 2
        %vm545 = vcmp.lt.s32.totalorder %v524, 3
        %vm546 = vcmp.lt.s32.totalorder %v524, 4
        %v547 = vsel %vm543, %v527, %v530
        %v548 = vsel %vm546, %v536, 2102212464
        %v549 = vsel %vm545, %v533, %v548
        %v550 = vsel %vm544, %v547, %v549
        %v551 = vsel %vm543, %v530, %v533
        %v552 = vsel %vm546, %v539, 920167782
        %v553 = vsel %vm545, %v536, %v552
        %v554 = vsel %vm544, %v551, %v553
        %v555 = vsel %vm543, %v533, %v536
        %v556 = vsel %vm546, %v542, 1326507024
        %v557 = vsel %vm545, %v539, %v556
        %v558 = vsel %vm544, %v555, %v557
        %v559 = vshll.u32 %v519, 8
        %v560 = vmul.u32.u64.compose %v559, %v558
        %v561 = vextract.low.u32 %v560
        %v562 = vextract.high.u32 %v560
        %v563 = vmul.u32.u64.compose %v559, %v554
        %v564 = vextract.low.u32 %v563
        %v565 = vextract.high.u32 %v563
        %v566 = vmul.u32 %v559, %v550
        %v567 = vadd.s32 %v562, %v564
        %vm568 = vc.u32 %v562, %v564
        %v569 = vadd.s32 %v565, 1
        %v570 = vsel %vm568, %v569, %v565
        %v571 = vadd.s32 %v566, %v570
        %v572 = vadd.s32 %v571, 536870912
        %v573 = vshrl.u32 %v572, 30
        %v574 = vshll.u32 %v573, 30
        %v575 = vsub.s32 %v571, %v574
        %vm576 = vcmp.lt.s32.totalorder %v575, 0
        %v577 = vsub.s32 0, %v575
        %v578 = vsel %vm576, %v577, %v575
        %v579 = vclz %v578
        %v580 = vsub.s32 %v579, 2
        %vm581 = vcmp.gt.s32.totalorder 0, %v580
        %v582 = vsel %vm581, 0, %v580
        %v583 = vsub.s32 32, %v582
        %v584 = vshll.u32 %v575, %v582
        %v585 = vshrl.u32 %v567, %v583
        %v586 = vor.u32 %v584, %v585
        %v587 = vsub.s32 4294967266, %v582
        %v588 = vadd.s32 %v587, 127
        %v589 = vshll.u32 %v588, 23
        %v590 = vor.u32 4788187, %v589
        %v591 = vand.u32 2147483647, %v590
        %v593 = vcvt.s32.f32 %v586
        %v594 = vmul.f32 %v593, %v591
        %v595 = vxor.u32 %v594, 2147483648
        %v596 = vsel %vm513, %v595, %v594
        %v597 = vsub.s32 4, %v573
        %v598 = vsel %vm513, %v597, %v573
        %v599 = vsel %vm512, %v348, %v596
        %v600 = vsel %vm512, 0, %v598
        %v601 = vcosq.f32.pop %v599
        %v602 = vsinq.f32.pop %v599
        %vm603 = vweird.f32 %v348
        %v604 = vadd.s32 %v600, 3
        %v605 = vand.u32 %v604, 3
        %vm606 = vcmp.lt.s32.totalorder %v605, 2
        %vm607 = vcmp.eq.s32.totalorder %v605, 0
        %v608 = vxor.u32 %v602, 2147483648
        %v609 = vsel %vm607, %v601, %v608
        %vm610 = vcmp.eq.s32.totalorder %v605, 2
        %v611 = vxor.u32 %v601, 2147483648
        %v612 = vsel %vm610, %v611, %v602
        %v613 = vsel %vm606, %v609, %v612
        %v614 = vsel %vm603, nan, %v613
        %v615 = vand.u32 2147483647, %v353
        %vm616 = vcmp.le.f32.partialorder %v615, 0.7853982
        %vm617 = vcmp.lt.s32.totalorder %v353, 0
        %v618 = vand.u32 %v353, 2139095040
        %v619 = vshrl.u32 %v618, 23
        %v620 = vsub.s32 %v619, 127
        %v621 = vand.u32 2147483647, %v353
        %v622 = vand.u32 %v621, 8388607
        %v623 = vor.u32 %v622, 8388608
        %v624 = vsub.s32 0, %v623
        %v625 = vadd.s32 %v620, 1
        %vm626 = vcmp.gt.s32.totalorder %v625, 0
        %v627 = vsel %vm626, %v625, 0
        %v628 = vshrl.u32 %v627, 5
        %v629 = vand.u32 %v627, 31
        %v630 = vsub.s32 32, %v629
        %v631 = vshrl.u32 683565275, %v630
        %v632 = vshll.u32 683565275, %v629
        %v633 = vshrl.u32 2475754826, %v630
        %v634 = vor.u32 %v632, %v633
        %v635 = vshll.u32 2475754826, %v629
        %v636 = vshrl.u32 2131351028, %v630
        %v637 = vor.u32 %v635, %v636
        %v638 = vshll.u32 2131351028, %v629
        %v639 = vshrl.u32 2102212464, %v630
        %v640 = vor.u32 %v638, %v639
        %v641 = vshll.u32 2102212464, %v629
        %v642 = vshrl.u32 920167782, %v630
        %v643 = vor.u32 %v641, %v642
        %v644 = vshll.u32 920167782, %v629
        %v645 = vshrl.u32 1326507024, %v630
        %v646 = vor.u32 %v644, %v645
        %vm647 = vcmp.lt.s32.totalorder %v628, 1
        %vm648 = vcmp.lt.s32.totalorder %v628, 2
        %vm649 = vcmp.lt.s32.totalorder %v628, 3
        %vm650 = vcmp.lt.s32.totalorder %v628, 4
        %v651 = vsel %vm647, %v631, %v634
        %v652 = vsel %vm650, %v640, 2102212464
        %v653 = vsel %vm649, %v637, %v652
        %v654 = vsel %vm648, %v651, %v653
        %v655 = vsel %vm647, %v634, %v637
        %v656 = vsel %vm650, %v643, 920167782
        %v657 = vsel %vm649, %v640, %v656
        %v658 = vsel %vm648, %v655, %v657
        %v659 = vsel %vm647, %v637, %v640
        %v660 = vsel %vm650, %v646, 1326507024
        %v661 = vsel %vm649, %v643, %v660
        %v662 = vsel %vm648, %v659, %v661
        %v663 = vshll.u32 %v623, 8
        %v664 = vmul.u32.u64.compose %v663, %v662
        %v665 = vextract.low.u32 %v664
        %v666 = vextract.high.u32 %v664
        %v667 = vmul.u32.u64.compose %v663, %v658
        %v668 = vextract.low.u32 %v667
        %v669 = vextract.high.u32 %v667
        %v670 = vmul.u32 %v663, %v654
        %v671 = vadd.s32 %v666, %v668
        %vm672 = vc.u32 %v666, %v668
        %v673 = vadd.s32 %v669, 1
        %v674 = vsel %vm672, %v673, %v669
        %v675 = vadd.s32 %v670, %v674
        %v676 = vadd.s32 %v675, 536870912
        %v677 = vshrl.u32 %v676, 30
        %v678 = vshll.u32 %v677, 30
        %v679 = vsub.s32 %v675, %v678
        %vm680 = vcmp.lt.s32.totalorder %v679, 0
        %v681 = vsub.s32 0, %v679
        %v682 = vsel %vm680, %v681, %v679
        %v683 = vclz %v682
        %v684 = vsub.s32 %v683, 2
        %vm685 = vcmp.gt.s32.totalorder 0, %v684
        %v686 = vsel %vm685, 0, %v684
        %v687 = vsub.s32 32, %v686
        %v688 = vshll.u32 %v679, %v686
        %v689 = vshrl.u32 %v671, %v687
        %v690 = vor.u32 %v688, %v689
        %v691 = vsub.s32 4294967266, %v686
        %v692 = vadd.s32 %v691, 127
        %v693 = vshll.u32 %v692, 23
        %v694 = vor.u32 4788187, %v693
        %v695 = vand.u32 2147483647, %v694
        %v697 = vcvt.s32.f32 %v690
        %v698 = vmul.f32 %v697, %v695
        %v699 = vxor.u32 %v698, 2147483648
        %v700 = vsel %vm617, %v699, %v698
        %v701 = vsub.s32 4, %v677
        %v702 = vsel %vm617, %v701, %v677
        %v703 = vsel %vm616, %v353, %v700
        %v704 = vsel %vm616, 0, %v702
        %v705 = vcosq.f32.pop %v703
        %v706 = vsinq.f32.pop %v703
        %vm707 = vweird.f32 %v353
        %v708 = vadd.s32 %v704, 3
        %v709 = vand.u32 %v708, 3
        %vm710 = vcmp.lt.s32.totalorder %v709, 2
        %vm711 = vcmp.eq.s32.totalorder %v709, 0
        %v712 = vxor.u32 %v706, 2147483648
        %v713 = vsel %vm711, %v705, %v712
        %vm714 = vcmp.eq.s32.totalorder %v709, 2
        %v715 = vxor.u32 %v705, 2147483648
        %v716 = vsel %vm714, %v715, %v706
        %v717 = vsel %vm710, %v713, %v716
        %v718 = vsel %vm707, nan, %v717
        %v719 = vand.u32 2147483647, %v356
        %vm720 = vcmp.le.f32.partialorder %v719, 0.7853982
        %vm721 = vcmp.lt.s32.totalorder %v356, 0
        %v722 = vand.u32 %v356, 2139095040
        %v723 = vshrl.u32 %v722, 23
        %v724 = vsub.s32 %v723, 127
        %v725 = vand.u32 2147483647, %v356
        %v726 = vand.u32 %v725, 8388607
        %v727 = vor.u32 %v726, 8388608
        %v728 = vsub.s32 0, %v727
        %v729 = vadd.s32 %v724, 1
        %vm730 = vcmp.gt.s32.totalorder %v729, 0
        %v731 = vsel %vm730, %v729, 0
        %v732 = vshrl.u32 %v731, 5
        %v733 = vand.u32 %v731, 31
        %v734 = vsub.s32 32, %v733
        %v735 = vshrl.u32 683565275, %v734
        %v736 = vshll.u32 683565275, %v733
        %v737 = vshrl.u32 2475754826, %v734
        %v738 = vor.u32 %v736, %v737
        %v739 = vshll.u32 2475754826, %v733
        %v740 = vshrl.u32 2131351028, %v734
        %v741 = vor.u32 %v739, %v740
        %v742 = vshll.u32 2131351028, %v733
        %v743 = vshrl.u32 2102212464, %v734
        %v744 = vor.u32 %v742, %v743
        %v745 = vshll.u32 2102212464, %v733
        %v746 = vshrl.u32 920167782, %v734
        %v747 = vor.u32 %v745, %v746
        %v748 = vshll.u32 920167782, %v733
        %v749 = vshrl.u32 1326507024, %v734
        %v750 = vor.u32 %v748, %v749
        %vm751 = vcmp.lt.s32.totalorder %v732, 1
        %vm752 = vcmp.lt.s32.totalorder %v732, 2
        %vm753 = vcmp.lt.s32.totalorder %v732, 3
        %vm754 = vcmp.lt.s32.totalorder %v732, 4
        %v755 = vsel %vm751, %v735, %v738
        %v756 = vsel %vm754, %v744, 2102212464
        %v757 = vsel %vm753, %v741, %v756
        %v758 = vsel %vm752, %v755, %v757
        %v759 = vsel %vm751, %v738, %v741
        %v760 = vsel %vm754, %v747, 920167782
        %v761 = vsel %vm753, %v744, %v760
        %v762 = vsel %vm752, %v759, %v761
        %v763 = vsel %vm751, %v741, %v744
        %v764 = vsel %vm754, %v750, 1326507024
        %v765 = vsel %vm753, %v747, %v764
        %v766 = vsel %vm752, %v763, %v765
        %v767 = vshll.u32 %v727, 8
        %v768 = vmul.u32.u64.compose %v767, %v766
        %v769 = vextract.low.u32 %v768
        %v770 = vextract.high.u32 %v768
        %v771 = vmul.u32.u64.compose %v767, %v762
        %v772 = vextract.low.u32 %v771
        %v773 = vextract.high.u32 %v771
        %v774 = vmul.u32 %v767, %v758
        %v775 = vadd.s32 %v770, %v772
        %vm776 = vc.u32 %v770, %v772
        %v777 = vadd.s32 %v773, 1
        %v778 = vsel %vm776, %v777, %v773
        %v779 = vadd.s32 %v774, %v778
        %v780 = vadd.s32 %v779, 536870912
        %v781 = vshrl.u32 %v780, 30
        %v782 = vshll.u32 %v781, 30
        %v783 = vsub.s32 %v779, %v782
        %vm784 = vcmp.lt.s32.totalorder %v783, 0
        %v785 = vsub.s32 0, %v783
        %v786 = vsel %vm784, %v785, %v783
        %v787 = vclz %v786
        %v788 = vsub.s32 %v787, 2
        %vm789 = vcmp.gt.s32.totalorder 0, %v788
        %v790 = vsel %vm789, 0, %v788
        %v791 = vsub.s32 32, %v790
        %v792 = vshll.u32 %v783, %v790
        %v793 = vshrl.u32 %v775, %v791
        %v794 = vor.u32 %v792, %v793
        %v795 = vsub.s32 4294967266, %v790
        %v796 = vadd.s32 %v795, 127
        %v797 = vshll.u32 %v796, 23
        %v798 = vor.u32 4788187, %v797
        %v799 = vand.u32 2147483647, %v798
        %v801 = vcvt.s32.f32 %v794
        %v802 = vmul.f32 %v801, %v799
        %v803 = vxor.u32 %v802, 2147483648
        %v804 = vsel %vm721, %v803, %v802
        %v805 = vsub.s32 4, %v781
        %v806 = vsel %vm721, %v805, %v781
        %v807 = vsel %vm720, %v356, %v804
        %v808 = vsel %vm720, 0, %v806
        %v809 = vcosq.f32.pop %v807
        %v810 = vsinq.f32.pop %v807
        %vm811 = vweird.f32 %v356
        %v812 = vadd.s32 %v808, 3
        %v813 = vand.u32 %v812, 3
        %vm814 = vcmp.lt.s32.totalorder %v813, 2
        %vm815 = vcmp.eq.s32.totalorder %v813, 0
        %v816 = vxor.u32 %v810, 2147483648
        %v817 = vsel %vm815, %v809, %v816
        %vm818 = vcmp.eq.s32.totalorder %v813, 2
        %v819 = vxor.u32 %v809, 2147483648
        %v820 = vsel %vm818, %v819, %v810
        %v821 = vsel %vm814, %v817, %v820
        %v822 = vsel %vm811, nan, %v821
        %v823 = vand.u32 2147483647, %v361
        %vm824 = vcmp.le.f32.partialorder %v823, 0.7853982
        %vm825 = vcmp.lt.s32.totalorder %v361, 0
        %v826 = vand.u32 %v361, 2139095040
        %v827 = vshrl.u32 %v826, 23
        %v828 = vsub.s32 %v827, 127
        %v829 = vand.u32 2147483647, %v361
        %v830 = vand.u32 %v829, 8388607
        %v831 = vor.u32 %v830, 8388608
        %v832 = vsub.s32 0, %v831
        %v833 = vadd.s32 %v828, 1
        %vm834 = vcmp.gt.s32.totalorder %v833, 0
        %v835 = vsel %vm834, %v833, 0
        %v836 = vshrl.u32 %v835, 5
        %v837 = vand.u32 %v835, 31
        %v838 = vsub.s32 32, %v837
        %v839 = vshrl.u32 683565275, %v838
        %v840 = vshll.u32 683565275, %v837
        %v841 = vshrl.u32 2475754826, %v838
        %v842 = vor.u32 %v840, %v841
        %v843 = vshll.u32 2475754826, %v837
        %v844 = vshrl.u32 2131351028, %v838
        %v845 = vor.u32 %v843, %v844
        %v846 = vshll.u32 2131351028, %v837
        %v847 = vshrl.u32 2102212464, %v838
        %v848 = vor.u32 %v846, %v847
        %v849 = vshll.u32 2102212464, %v837
        %v850 = vshrl.u32 920167782, %v838
        %v851 = vor.u32 %v849, %v850
        %v852 = vshll.u32 920167782, %v837
        %v853 = vshrl.u32 1326507024, %v838
        %v854 = vor.u32 %v852, %v853
        %vm855 = vcmp.lt.s32.totalorder %v836, 1
        %vm856 = vcmp.lt.s32.totalorder %v836, 2
        %vm857 = vcmp.lt.s32.totalorder %v836, 3
        %vm858 = vcmp.lt.s32.totalorder %v836, 4
        %v859 = vsel %vm855, %v839, %v842
        %v860 = vsel %vm858, %v848, 2102212464
        %v861 = vsel %vm857, %v845, %v860
        %v862 = vsel %vm856, %v859, %v861
        %v863 = vsel %vm855, %v842, %v845
        %v864 = vsel %vm858, %v851, 920167782
        %v865 = vsel %vm857, %v848, %v864
        %v866 = vsel %vm856, %v863, %v865
        %v867 = vsel %vm855, %v845, %v848
        %v868 = vsel %vm858, %v854, 1326507024
        %v869 = vsel %vm857, %v851, %v868
        %v870 = vsel %vm856, %v867, %v869
        %v871 = vshll.u32 %v831, 8
        %v872 = vmul.u32.u64.compose %v871, %v870
        %v873 = vextract.low.u32 %v872
        %v874 = vextract.high.u32 %v872
        %v875 = vmul.u32.u64.compose %v871, %v866
        %v876 = vextract.low.u32 %v875
        %v877 = vextract.high.u32 %v875
        %v878 = vmul.u32 %v871, %v862
        %v879 = vadd.s32 %v874, %v876
        %vm880 = vc.u32 %v874, %v876
        %v881 = vadd.s32 %v877, 1
        %v882 = vsel %vm880, %v881, %v877
        %v883 = vadd.s32 %v878, %v882
        %v884 = vadd.s32 %v883, 536870912
        %v885 = vshrl.u32 %v884, 30
        %v886 = vshll.u32 %v885, 30
        %v887 = vsub.s32 %v883, %v886
        %vm888 = vcmp.lt.s32.totalorder %v887, 0
        %v889 = vsub.s32 0, %v887
        %v890 = vsel %vm888, %v889, %v887
        %v891 = vclz %v890
        %v892 = vsub.s32 %v891, 2
        %vm893 = vcmp.gt.s32.totalorder 0, %v892
        %v894 = vsel %vm893, 0, %v892
        %v895 = vsub.s32 32, %v894
        %v896 = vshll.u32 %v887, %v894
        %v897 = vshrl.u32 %v879, %v895
        %v898 = vor.u32 %v896, %v897
        %v899 = vsub.s32 4294967266, %v894
        %v900 = vadd.s32 %v899, 127
        %v901 = vshll.u32 %v900, 23
        %v902 = vor.u32 4788187, %v901
        %v903 = vand.u32 2147483647, %v902
        %v905 = vcvt.s32.f32 %v898
        %v906 = vmul.f32 %v905, %v903
        %v907 = vxor.u32 %v906, 2147483648
        %v908 = vsel %vm825, %v907, %v906
        %v909 = vsub.s32 4, %v885
        %v910 = vsel %vm825, %v909, %v885
        %v911 = vsel %vm824, %v361, %v908
        %v912 = vsel %vm824, 0, %v910
        %v913 = vcosq.f32.pop %v911
        %v914 = vsinq.f32.pop %v911
        %vm915 = vweird.f32 %v361
        %v916 = vadd.s32 %v912, 3
        %v917 = vand.u32 %v916, 3
        %vm918 = vcmp.lt.s32.totalorder %v917, 2
        %vm919 = vcmp.eq.s32.totalorder %v917, 0
        %v920 = vxor.u32 %v914, 2147483648
        %v921 = vsel %vm919, %v913, %v920
        %vm922 = vcmp.eq.s32.totalorder %v917, 2
        %v923 = vxor.u32 %v913, 2147483648
        %v924 = vsel %vm922, %v923, %v914
        %v925 = vsel %vm918, %v921, %v924
        %v926 = vsel %vm915, nan, %v925
        %v927 = vand.u32 2147483647, %v364
        %vm928 = vcmp.le.f32.partialorder %v927, 0.7853982
        %vm929 = vcmp.lt.s32.totalorder %v364, 0
        %v930 = vand.u32 %v364, 2139095040
        %v931 = vshrl.u32 %v930, 23
        %v932 = vsub.s32 %v931, 127
        %v933 = vand.u32 2147483647, %v364
        %v934 = vand.u32 %v933, 8388607
        %v935 = vor.u32 %v934, 8388608
        %v936 = vsub.s32 0, %v935
        %v937 = vadd.s32 %v932, 1
        %vm938 = vcmp.gt.s32.totalorder %v937, 0
        %v939 = vsel %vm938, %v937, 0
        %v940 = vshrl.u32 %v939, 5
        %v941 = vand.u32 %v939, 31
        %v942 = vsub.s32 32, %v941
        %v943 = vshrl.u32 683565275, %v942
        %v944 = vshll.u32 683565275, %v941
        %v945 = vshrl.u32 2475754826, %v942
        %v946 = vor.u32 %v944, %v945
        %v947 = vshll.u32 2475754826, %v941
        %v948 = vshrl.u32 2131351028, %v942
        %v949 = vor.u32 %v947, %v948
        %v950 = vshll.u32 2131351028, %v941
        %v951 = vshrl.u32 2102212464, %v942
        %v952 = vor.u32 %v950, %v951
        %v953 = vshll.u32 2102212464, %v941
        %v954 = vshrl.u32 920167782, %v942
        %v955 = vor.u32 %v953, %v954
        %v956 = vshll.u32 920167782, %v941
        %v957 = vshrl.u32 1326507024, %v942
        %v958 = vor.u32 %v956, %v957
        %vm959 = vcmp.lt.s32.totalorder %v940, 1
        %vm960 = vcmp.lt.s32.totalorder %v940, 2
        %vm961 = vcmp.lt.s32.totalorder %v940, 3
        %vm962 = vcmp.lt.s32.totalorder %v940, 4
        %v963 = vsel %vm959, %v943, %v946
        %v964 = vsel %vm962, %v952, 2102212464
        %v965 = vsel %vm961, %v949, %v964
        %v966 = vsel %vm960, %v963, %v965
        %v967 = vsel %vm959, %v946, %v949
        %v968 = vsel %vm962, %v955, 920167782
        %v969 = vsel %vm961, %v952, %v968
        %v970 = vsel %vm960, %v967, %v969
        %v971 = vsel %vm959, %v949, %v952
        %v972 = vsel %vm962, %v958, 1326507024
        %v973 = vsel %vm961, %v955, %v972
        %v974 = vsel %vm960, %v971, %v973
        %v975 = vshll.u32 %v935, 8
        %v976 = vmul.u32.u64.compose %v975, %v974
        %v977 = vextract.low.u32 %v976
        %v978 = vextract.high.u32 %v976
        %v979 = vmul.u32.u64.compose %v975, %v970
        %v980 = vextract.low.u32 %v979
        %v981 = vextract.high.u32 %v979
        %v982 = vmul.u32 %v975, %v966
        %v983 = vadd.s32 %v978, %v980
        %vm984 = vc.u32 %v978, %v980
        %v985 = vadd.s32 %v981, 1
        %v986 = vsel %vm984, %v985, %v981
        %v987 = vadd.s32 %v982, %v986
        %v988 = vadd.s32 %v987, 536870912
        %v989 = vshrl.u32 %v988, 30
        %v990 = vshll.u32 %v989, 30
        %v991 = vsub.s32 %v987, %v990
        %vm992 = vcmp.lt.s32.totalorder %v991, 0
        %v993 = vsub.s32 0, %v991
        %v994 = vsel %vm992, %v993, %v991
        %v995 = vclz %v994
        %v996 = vsub.s32 %v995, 2
        %vm997 = vcmp.gt.s32.totalorder 0, %v996
        %v998 = vsel %vm997, 0, %v996
        %v999 = vsub.s32 32, %v998
        %v1000 = vshll.u32 %v991, %v998
        %v1001 = vshrl.u32 %v983, %v999
        %v1002 = vor.u32 %v1000, %v1001
        %v1003 = vsub.s32 4294967266, %v998
        %v1004 = vadd.s32 %v1003, 127
        %v1005 = vshll.u32 %v1004, 23
        %v1006 = vor.u32 4788187, %v1005
        %v1007 = vand.u32 2147483647, %v1006
        %v1009 = vcvt.s32.f32 %v1002
        %v1010 = vmul.f32 %v1009, %v1007
        %v1011 = vxor.u32 %v1010, 2147483648
        %v1012 = vsel %vm929, %v1011, %v1010
        %v1013 = vsub.s32 4, %v989
        %v1014 = vsel %vm929, %v1013, %v989
        %v1015 = vsel %vm928, %v364, %v1012
        %v1016 = vsel %vm928, 0, %v1014
        %v1017 = vcosq.f32.pop %v1015
        %v1018 = vsinq.f32.pop %v1015
        %vm1019 = vweird.f32 %v364
        %v1020 = vadd.s32 %v1016, 3
        %v1021 = vand.u32 %v1020, 3
        %vm1022 = vcmp.lt.s32.totalorder %v1021, 2
        %vm1023 = vcmp.eq.s32.totalorder %v1021, 0
        %v1024 = vxor.u32 %v1018, 2147483648
        %v1025 = vsel %vm1023, %v1017, %v1024
        %vm1026 = vcmp.eq.s32.totalorder %v1021, 2
        %v1027 = vxor.u32 %v1017, 2147483648
        %v1028 = vsel %vm1026, %v1027, %v1018
        %v1029 = vsel %vm1022, %v1025, %v1028
        %v1030 = vsel %vm1019, nan, %v1029
        %v1031 = vand.u32 2147483647, %v369
        %vm1032 = vcmp.le.f32.partialorder %v1031, 0.7853982
        %vm1033 = vcmp.lt.s32.totalorder %v369, 0
        %v1034 = vand.u32 %v369, 2139095040
        %v1035 = vshrl.u32 %v1034, 23
        %v1036 = vsub.s32 %v1035, 127
        %v1037 = vand.u32 2147483647, %v369
        %v1038 = vand.u32 %v1037, 8388607
        %v1039 = vor.u32 %v1038, 8388608
        %v1040 = vsub.s32 0, %v1039
        %v1041 = vadd.s32 %v1036, 1
        %vm1042 = vcmp.gt.s32.totalorder %v1041, 0
        %v1043 = vsel %vm1042, %v1041, 0
        %v1044 = vshrl.u32 %v1043, 5
        %v1045 = vand.u32 %v1043, 31
        %v1046 = vsub.s32 32, %v1045
        %v1047 = vshrl.u32 683565275, %v1046
        %v1048 = vshll.u32 683565275, %v1045
        %v1049 = vshrl.u32 2475754826, %v1046
        %v1050 = vor.u32 %v1048, %v1049
        %v1051 = vshll.u32 2475754826, %v1045
        %v1052 = vshrl.u32 2131351028, %v1046
        %v1053 = vor.u32 %v1051, %v1052
        %v1054 = vshll.u32 2131351028, %v1045
        %v1055 = vshrl.u32 2102212464, %v1046
        %v1056 = vor.u32 %v1054, %v1055
        %v1057 = vshll.u32 2102212464, %v1045
        %v1058 = vshrl.u32 920167782, %v1046
        %v1059 = vor.u32 %v1057, %v1058
        %v1060 = vshll.u32 920167782, %v1045
        %v1061 = vshrl.u32 1326507024, %v1046
        %v1062 = vor.u32 %v1060, %v1061
        %vm1063 = vcmp.lt.s32.totalorder %v1044, 1
        %vm1064 = vcmp.lt.s32.totalorder %v1044, 2
        %vm1065 = vcmp.lt.s32.totalorder %v1044, 3
        %vm1066 = vcmp.lt.s32.totalorder %v1044, 4
        %v1067 = vsel %vm1063, %v1047, %v1050
        %v1068 = vsel %vm1066, %v1056, 2102212464
        %v1069 = vsel %vm1065, %v1053, %v1068
        %v1070 = vsel %vm1064, %v1067, %v1069
        %v1071 = vsel %vm1063, %v1050, %v1053
        %v1072 = vsel %vm1066, %v1059, 920167782
        %v1073 = vsel %vm1065, %v1056, %v1072
        %v1074 = vsel %vm1064, %v1071, %v1073
        %v1075 = vsel %vm1063, %v1053, %v1056
        %v1076 = vsel %vm1066, %v1062, 1326507024
        %v1077 = vsel %vm1065, %v1059, %v1076
        %v1078 = vsel %vm1064, %v1075, %v1077
        %v1079 = vshll.u32 %v1039, 8
        %v1080 = vmul.u32.u64.compose %v1079, %v1078
        %v1081 = vextract.low.u32 %v1080
        %v1082 = vextract.high.u32 %v1080
        %v1083 = vmul.u32.u64.compose %v1079, %v1074
        %v1084 = vextract.low.u32 %v1083
        %v1085 = vextract.high.u32 %v1083
        %v1086 = vmul.u32 %v1079, %v1070
        %v1087 = vadd.s32 %v1082, %v1084
        %vm1088 = vc.u32 %v1082, %v1084
        %v1089 = vadd.s32 %v1085, 1
        %v1090 = vsel %vm1088, %v1089, %v1085
        %v1091 = vadd.s32 %v1086, %v1090
        %v1092 = vadd.s32 %v1091, 536870912
        %v1093 = vshrl.u32 %v1092, 30
        %v1094 = vshll.u32 %v1093, 30
        %v1095 = vsub.s32 %v1091, %v1094
        %vm1096 = vcmp.lt.s32.totalorder %v1095, 0
        %v1097 = vsub.s32 0, %v1095
        %v1098 = vsel %vm1096, %v1097, %v1095
        %v1099 = vclz %v1098
        %v1100 = vsub.s32 %v1099, 2
        %vm1101 = vcmp.gt.s32.totalorder 0, %v1100
        %v1102 = vsel %vm1101, 0, %v1100
        %v1103 = vsub.s32 32, %v1102
        %v1104 = vshll.u32 %v1095, %v1102
        %v1105 = vshrl.u32 %v1087, %v1103
        %v1106 = vor.u32 %v1104, %v1105
        %v1107 = vsub.s32 4294967266, %v1102
        %v1108 = vadd.s32 %v1107, 127
        %v1109 = vshll.u32 %v1108, 23
        %v1110 = vor.u32 4788187, %v1109
        %v1111 = vand.u32 2147483647, %v1110
        %v1113 = vcvt.s32.f32 %v1106
        %v1114 = vmul.f32 %v1113, %v1111
        %v1115 = vxor.u32 %v1114, 2147483648
        %v1116 = vsel %vm1033, %v1115, %v1114
        %v1117 = vsub.s32 4, %v1093
        %v1118 = vsel %vm1033, %v1117, %v1093
        %v1119 = vsel %vm1032, %v369, %v1116
        %v1120 = vsel %vm1032, 0, %v1118
        %v1121 = vcosq.f32.pop %v1119
        %v1122 = vsinq.f32.pop %v1119
        %vm1123 = vweird.f32 %v369
        %v1124 = vadd.s32 %v1120, 3
        %v1125 = vand.u32 %v1124, 3
        %vm1126 = vcmp.lt.s32.totalorder %v1125, 2
        %vm1127 = vcmp.eq.s32.totalorder %v1125, 0
        %v1128 = vxor.u32 %v1122, 2147483648
        %v1129 = vsel %vm1127, %v1121, %v1128
        %vm1130 = vcmp.eq.s32.totalorder %v1125, 2
        %v1131 = vxor.u32 %v1121, 2147483648
        %v1132 = vsel %vm1130, %v1131, %v1122
        %v1133 = vsel %vm1126, %v1129, %v1132
        %v1134 = vsel %vm1123, nan, %v1133
        %v1135 = vand.u32 2147483647, %v372
        %vm1136 = vcmp.le.f32.partialorder %v1135, 0.7853982
        %vm1137 = vcmp.lt.s32.totalorder %v372, 0
        %v1138 = vand.u32 %v372, 2139095040
        %v1139 = vshrl.u32 %v1138, 23
        %v1140 = vsub.s32 %v1139, 127
        %v1141 = vand.u32 2147483647, %v372
        %v1142 = vand.u32 %v1141, 8388607
        %v1143 = vor.u32 %v1142, 8388608
        %v1144 = vsub.s32 0, %v1143
        %v1145 = vadd.s32 %v1140, 1
        %vm1146 = vcmp.gt.s32.totalorder %v1145, 0
        %v1147 = vsel %vm1146, %v1145, 0
        %v1148 = vshrl.u32 %v1147, 5
        %v1149 = vand.u32 %v1147, 31
        %v1150 = vsub.s32 32, %v1149
        %v1151 = vshrl.u32 683565275, %v1150
        %v1152 = vshll.u32 683565275, %v1149
        %v1153 = vshrl.u32 2475754826, %v1150
        %v1154 = vor.u32 %v1152, %v1153
        %v1155 = vshll.u32 2475754826, %v1149
        %v1156 = vshrl.u32 2131351028, %v1150
        %v1157 = vor.u32 %v1155, %v1156
        %v1158 = vshll.u32 2131351028, %v1149
        %v1159 = vshrl.u32 2102212464, %v1150
        %v1160 = vor.u32 %v1158, %v1159
        %v1161 = vshll.u32 2102212464, %v1149
        %v1162 = vshrl.u32 920167782, %v1150
        %v1163 = vor.u32 %v1161, %v1162
        %v1164 = vshll.u32 920167782, %v1149
        %v1165 = vshrl.u32 1326507024, %v1150
        %v1166 = vor.u32 %v1164, %v1165
        %vm1167 = vcmp.lt.s32.totalorder %v1148, 1
        %vm1168 = vcmp.lt.s32.totalorder %v1148, 2
        %vm1169 = vcmp.lt.s32.totalorder %v1148, 3
        %vm1170 = vcmp.lt.s32.totalorder %v1148, 4
        %v1171 = vsel %vm1167, %v1151, %v1154
        %v1172 = vsel %vm1170, %v1160, 2102212464
        %v1173 = vsel %vm1169, %v1157, %v1172
        %v1174 = vsel %vm1168, %v1171, %v1173
        %v1175 = vsel %vm1167, %v1154, %v1157
        %v1176 = vsel %vm1170, %v1163, 920167782
        %v1177 = vsel %vm1169, %v1160, %v1176
        %v1178 = vsel %vm1168, %v1175, %v1177
        %v1179 = vsel %vm1167, %v1157, %v1160
        %v1180 = vsel %vm1170, %v1166, 1326507024
        %v1181 = vsel %vm1169, %v1163, %v1180
        %v1182 = vsel %vm1168, %v1179, %v1181
        %v1183 = vshll.u32 %v1143, 8
        %v1184 = vmul.u32.u64.compose %v1183, %v1182
        %v1185 = vextract.low.u32 %v1184
        %v1186 = vextract.high.u32 %v1184
        %v1187 = vmul.u32.u64.compose %v1183, %v1178
        %v1188 = vextract.low.u32 %v1187
        %v1189 = vextract.high.u32 %v1187
        %v1190 = vmul.u32 %v1183, %v1174
        %v1191 = vadd.s32 %v1186, %v1188
        %vm1192 = vc.u32 %v1186, %v1188
        %v1193 = vadd.s32 %v1189, 1
        %v1194 = vsel %vm1192, %v1193, %v1189
        %v1195 = vadd.s32 %v1190, %v1194
        %v1196 = vadd.s32 %v1195, 536870912
        %v1197 = vshrl.u32 %v1196, 30
        %v1198 = vshll.u32 %v1197, 30
        %v1199 = vsub.s32 %v1195, %v1198
        %vm1200 = vcmp.lt.s32.totalorder %v1199, 0
        %v1201 = vsub.s32 0, %v1199
        %v1202 = vsel %vm1200, %v1201, %v1199
        %v1203 = vclz %v1202
        %v1204 = vsub.s32 %v1203, 2
        %vm1205 = vcmp.gt.s32.totalorder 0, %v1204
        %v1206 = vsel %vm1205, 0, %v1204
        %v1207 = vsub.s32 32, %v1206
        %v1208 = vshll.u32 %v1199, %v1206
        %v1209 = vshrl.u32 %v1191, %v1207
        %v1210 = vor.u32 %v1208, %v1209
        %v1211 = vsub.s32 4294967266, %v1206
        %v1212 = vadd.s32 %v1211, 127
        %v1213 = vshll.u32 %v1212, 23
        %v1214 = vor.u32 4788187, %v1213
        %v1215 = vand.u32 2147483647, %v1214
        %v1217 = vcvt.s32.f32 %v1210
        %v1218 = vmul.f32 %v1217, %v1215
        %v1219 = vxor.u32 %v1218, 2147483648
        %v1220 = vsel %vm1137, %v1219, %v1218
        %v1221 = vsub.s32 4, %v1197
        %v1222 = vsel %vm1137, %v1221, %v1197
        %v1223 = vsel %vm1136, %v372, %v1220
        %v1224 = vsel %vm1136, 0, %v1222
        %v1225 = vcosq.f32.pop %v1223
        %v1226 = vsinq.f32.pop %v1223
        %vm1227 = vweird.f32 %v372
        %v1228 = vadd.s32 %v1224, 3
        %v1229 = vand.u32 %v1228, 3
        %vm1230 = vcmp.lt.s32.totalorder %v1229, 2
        %vm1231 = vcmp.eq.s32.totalorder %v1229, 0
        %v1232 = vxor.u32 %v1226, 2147483648
        %v1233 = vsel %vm1231, %v1225, %v1232
        %vm1234 = vcmp.eq.s32.totalorder %v1229, 2
        %v1235 = vxor.u32 %v1225, 2147483648
        %v1236 = vsel %vm1234, %v1235, %v1226
        %v1237 = vsel %vm1230, %v1233, %v1236
        %v1238 = vsel %vm1227, nan, %v1237
        %v1239 = vand.u32 2147483647, %v377
        %vm1240 = vcmp.le.f32.partialorder %v1239, 0.7853982
        %vm1241 = vcmp.lt.s32.totalorder %v377, 0
        %v1242 = vand.u32 %v377, 2139095040
        %v1243 = vshrl.u32 %v1242, 23
        %v1244 = vsub.s32 %v1243, 127
        %v1245 = vand.u32 2147483647, %v377
        %v1246 = vand.u32 %v1245, 8388607
        %v1247 = vor.u32 %v1246, 8388608
        %v1248 = vsub.s32 0, %v1247
        %v1249 = vadd.s32 %v1244, 1
        %vm1250 = vcmp.gt.s32.totalorder %v1249, 0
        %v1251 = vsel %vm1250, %v1249, 0
        %v1252 = vshrl.u32 %v1251, 5
        %v1253 = vand.u32 %v1251, 31
        %v1254 = vsub.s32 32, %v1253
        %v1255 = vshrl.u32 683565275, %v1254
        %v1256 = vshll.u32 683565275, %v1253
        %v1257 = vshrl.u32 2475754826, %v1254
        %v1258 = vor.u32 %v1256, %v1257
        %v1259 = vshll.u32 2475754826, %v1253
        %v1260 = vshrl.u32 2131351028, %v1254
        %v1261 = vor.u32 %v1259, %v1260
        %v1262 = vshll.u32 2131351028, %v1253
        %v1263 = vshrl.u32 2102212464, %v1254
        %v1264 = vor.u32 %v1262, %v1263
        %v1265 = vshll.u32 2102212464, %v1253
        %v1266 = vshrl.u32 920167782, %v1254
        %v1267 = vor.u32 %v1265, %v1266
        %v1268 = vshll.u32 920167782, %v1253
        %v1269 = vshrl.u32 1326507024, %v1254
        %v1270 = vor.u32 %v1268, %v1269
        %vm1271 = vcmp.lt.s32.totalorder %v1252, 1
        %vm1272 = vcmp.lt.s32.totalorder %v1252, 2
        %vm1273 = vcmp.lt.s32.totalorder %v1252, 3
        %vm1274 = vcmp.lt.s32.totalorder %v1252, 4
        %v1275 = vsel %vm1271, %v1255, %v1258
        %v1276 = vsel %vm1274, %v1264, 2102212464
        %v1277 = vsel %vm1273, %v1261, %v1276
        %v1278 = vsel %vm1272, %v1275, %v1277
        %v1279 = vsel %vm1271, %v1258, %v1261
        %v1280 = vsel %vm1274, %v1267, 920167782
        %v1281 = vsel %vm1273, %v1264, %v1280
        %v1282 = vsel %vm1272, %v1279, %v1281
        %v1283 = vsel %vm1271, %v1261, %v1264
        %v1284 = vsel %vm1274, %v1270, 1326507024
        %v1285 = vsel %vm1273, %v1267, %v1284
        %v1286 = vsel %vm1272, %v1283, %v1285
        %v1287 = vshll.u32 %v1247, 8
        %v1288 = vmul.u32.u64.compose %v1287, %v1286
        %v1289 = vextract.low.u32 %v1288
        %v1290 = vextract.high.u32 %v1288
        %v1291 = vmul.u32.u64.compose %v1287, %v1282
        %v1292 = vextract.low.u32 %v1291
        %v1293 = vextract.high.u32 %v1291
        %v1294 = vmul.u32 %v1287, %v1278
        %v1295 = vadd.s32 %v1290, %v1292
        %vm1296 = vc.u32 %v1290, %v1292
        %v1297 = vadd.s32 %v1293, 1
        %v1298 = vsel %vm1296, %v1297, %v1293
        %v1299 = vadd.s32 %v1294, %v1298
        %v1300 = vadd.s32 %v1299, 536870912
        %v1301 = vshrl.u32 %v1300, 30
        %v1302 = vshll.u32 %v1301, 30
        %v1303 = vsub.s32 %v1299, %v1302
        %vm1304 = vcmp.lt.s32.totalorder %v1303, 0
        %v1305 = vsub.s32 0, %v1303
        %v1306 = vsel %vm1304, %v1305, %v1303
        %v1307 = vclz %v1306
        %v1308 = vsub.s32 %v1307, 2
        %vm1309 = vcmp.gt.s32.totalorder 0, %v1308
        %v1310 = vsel %vm1309, 0, %v1308
        %v1311 = vsub.s32 32, %v1310
        %v1312 = vshll.u32 %v1303, %v1310
        %v1313 = vshrl.u32 %v1295, %v1311
        %v1314 = vor.u32 %v1312, %v1313
        %v1315 = vsub.s32 4294967266, %v1310
        %v1316 = vadd.s32 %v1315, 127
        %v1317 = vshll.u32 %v1316, 23
        %v1318 = vor.u32 4788187, %v1317
        %v1319 = vand.u32 2147483647, %v1318
        %v1321 = vcvt.s32.f32 %v1314
        %v1322 = vmul.f32 %v1321, %v1319
        %v1323 = vxor.u32 %v1322, 2147483648
        %v1324 = vsel %vm1241, %v1323, %v1322
        %v1325 = vsub.s32 4, %v1301
        %v1326 = vsel %vm1241, %v1325, %v1301
        %v1327 = vsel %vm1240, %v377, %v1324
        %v1328 = vsel %vm1240, 0, %v1326
        %v1329 = vcosq.f32.pop %v1327
        %v1330 = vsinq.f32.pop %v1327
        %vm1331 = vweird.f32 %v377
        %v1332 = vadd.s32 %v1328, 3
        %v1333 = vand.u32 %v1332, 3
        %vm1334 = vcmp.lt.s32.totalorder %v1333, 2
        %vm1335 = vcmp.eq.s32.totalorder %v1333, 0
        %v1336 = vxor.u32 %v1330, 2147483648
        %v1337 = vsel %vm1335, %v1329, %v1336
        %vm1338 = vcmp.eq.s32.totalorder %v1333, 2
        %v1339 = vxor.u32 %v1329, 2147483648
        %v1340 = vsel %vm1338, %v1339, %v1330
        %v1341 = vsel %vm1334, %v1337, %v1340
        %v1342 = vsel %vm1331, nan, %v1341
        %v1343 = vand.u32 2147483647, %v380
        %vm1344 = vcmp.le.f32.partialorder %v1343, 0.7853982
        %vm1345 = vcmp.lt.s32.totalorder %v380, 0
        %v1346 = vand.u32 %v380, 2139095040
        %v1347 = vshrl.u32 %v1346, 23
        %v1348 = vsub.s32 %v1347, 127
        %v1349 = vand.u32 2147483647, %v380
        %v1350 = vand.u32 %v1349, 8388607
        %v1351 = vor.u32 %v1350, 8388608
        %v1352 = vsub.s32 0, %v1351
        %v1353 = vadd.s32 %v1348, 1
        %vm1354 = vcmp.gt.s32.totalorder %v1353, 0
        %v1355 = vsel %vm1354, %v1353, 0
        %v1356 = vshrl.u32 %v1355, 5
        %v1357 = vand.u32 %v1355, 31
        %v1358 = vsub.s32 32, %v1357
        %v1359 = vshrl.u32 683565275, %v1358
        %v1360 = vshll.u32 683565275, %v1357
        %v1361 = vshrl.u32 2475754826, %v1358
        %v1362 = vor.u32 %v1360, %v1361
        %v1363 = vshll.u32 2475754826, %v1357
        %v1364 = vshrl.u32 2131351028, %v1358
        %v1365 = vor.u32 %v1363, %v1364
        %v1366 = vshll.u32 2131351028, %v1357
        %v1367 = vshrl.u32 2102212464, %v1358
        %v1368 = vor.u32 %v1366, %v1367
        %v1369 = vshll.u32 2102212464, %v1357
        %v1370 = vshrl.u32 920167782, %v1358
        %v1371 = vor.u32 %v1369, %v1370
        %v1372 = vshll.u32 920167782, %v1357
        %v1373 = vshrl.u32 1326507024, %v1358
        %v1374 = vor.u32 %v1372, %v1373
        %vm1375 = vcmp.lt.s32.totalorder %v1356, 1
        %vm1376 = vcmp.lt.s32.totalorder %v1356, 2
        %vm1377 = vcmp.lt.s32.totalorder %v1356, 3
        %vm1378 = vcmp.lt.s32.totalorder %v1356, 4
        %v1379 = vsel %vm1375, %v1359, %v1362
        %v1380 = vsel %vm1378, %v1368, 2102212464
        %v1381 = vsel %vm1377, %v1365, %v1380
        %v1382 = vsel %vm1376, %v1379, %v1381
        %v1383 = vsel %vm1375, %v1362, %v1365
        %v1384 = vsel %vm1378, %v1371, 920167782
        %v1385 = vsel %vm1377, %v1368, %v1384
        %v1386 = vsel %vm1376, %v1383, %v1385
        %v1387 = vsel %vm1375, %v1365, %v1368
        %v1388 = vsel %vm1378, %v1374, 1326507024
        %v1389 = vsel %vm1377, %v1371, %v1388
        %v1390 = vsel %vm1376, %v1387, %v1389
        %v1391 = vshll.u32 %v1351, 8
        %v1392 = vmul.u32.u64.compose %v1391, %v1390
        %v1393 = vextract.low.u32 %v1392
        %v1394 = vextract.high.u32 %v1392
        %v1395 = vmul.u32.u64.compose %v1391, %v1386
        %v1396 = vextract.low.u32 %v1395
        %v1397 = vextract.high.u32 %v1395
        %v1398 = vmul.u32 %v1391, %v1382
        %v1399 = vadd.s32 %v1394, %v1396
        %vm1400 = vc.u32 %v1394, %v1396
        %v1401 = vadd.s32 %v1397, 1
        %v1402 = vsel %vm1400, %v1401, %v1397
        %v1403 = vadd.s32 %v1398, %v1402
        %v1404 = vadd.s32 %v1403, 536870912
        %v1405 = vshrl.u32 %v1404, 30
        %v1406 = vshll.u32 %v1405, 30
        %v1407 = vsub.s32 %v1403, %v1406
        %vm1408 = vcmp.lt.s32.totalorder %v1407, 0
        %v1409 = vsub.s32 0, %v1407
        %v1410 = vsel %vm1408, %v1409, %v1407
        %v1411 = vclz %v1410
        %v1412 = vsub.s32 %v1411, 2
        %vm1413 = vcmp.gt.s32.totalorder 0, %v1412
        %v1414 = vsel %vm1413, 0, %v1412
        %v1415 = vsub.s32 32, %v1414
        %v1416 = vshll.u32 %v1407, %v1414
        %v1417 = vshrl.u32 %v1399, %v1415
        %v1418 = vor.u32 %v1416, %v1417
        %v1419 = vsub.s32 4294967266, %v1414
        %v1420 = vadd.s32 %v1419, 127
        %v1421 = vshll.u32 %v1420, 23
        %v1422 = vor.u32 4788187, %v1421
        %v1423 = vand.u32 2147483647, %v1422
        %v1425 = vcvt.s32.f32 %v1418
        %v1426 = vmul.f32 %v1425, %v1423
        %v1427 = vxor.u32 %v1426, 2147483648
        %v1428 = vsel %vm1345, %v1427, %v1426
        %v1429 = vsub.s32 4, %v1405
        %v1430 = vsel %vm1345, %v1429, %v1405
        %v1431 = vsel %vm1344, %v380, %v1428
        %v1432 = vsel %vm1344, 0, %v1430
        %v1433 = vcosq.f32.pop %v1431
        %v1434 = vsinq.f32.pop %v1431
        %vm1435 = vweird.f32 %v380
        %v1436 = vadd.s32 %v1432, 3
        %v1437 = vand.u32 %v1436, 3
        %vm1438 = vcmp.lt.s32.totalorder %v1437, 2
        %vm1439 = vcmp.eq.s32.totalorder %v1437, 0
        %v1440 = vxor.u32 %v1434, 2147483648
        %v1441 = vsel %vm1439, %v1433, %v1440
        %vm1442 = vcmp.eq.s32.totalorder %v1437, 2
        %v1443 = vxor.u32 %v1433, 2147483648
        %v1444 = vsel %vm1442, %v1443, %v1434
        %v1445 = vsel %vm1438, %v1441, %v1444
        %v1446 = vsel %vm1435, nan, %v1445
        %v1447 = vand.u32 2147483647, %v385
        %vm1448 = vcmp.le.f32.partialorder %v1447, 0.7853982
        %vm1449 = vcmp.lt.s32.totalorder %v385, 0
        %v1450 = vand.u32 %v385, 2139095040
        %v1451 = vshrl.u32 %v1450, 23
        %v1452 = vsub.s32 %v1451, 127
        %v1453 = vand.u32 2147483647, %v385
        %v1454 = vand.u32 %v1453, 8388607
        %v1455 = vor.u32 %v1454, 8388608
        %v1456 = vsub.s32 0, %v1455
        %v1457 = vadd.s32 %v1452, 1
        %vm1458 = vcmp.gt.s32.totalorder %v1457, 0
        %v1459 = vsel %vm1458, %v1457, 0
        %v1460 = vshrl.u32 %v1459, 5
        %v1461 = vand.u32 %v1459, 31
        %v1462 = vsub.s32 32, %v1461
        %v1463 = vshrl.u32 683565275, %v1462
        %v1464 = vshll.u32 683565275, %v1461
        %v1465 = vshrl.u32 2475754826, %v1462
        %v1466 = vor.u32 %v1464, %v1465
        %v1467 = vshll.u32 2475754826, %v1461
        %v1468 = vshrl.u32 2131351028, %v1462
        %v1469 = vor.u32 %v1467, %v1468
        %v1470 = vshll.u32 2131351028, %v1461
        %v1471 = vshrl.u32 2102212464, %v1462
        %v1472 = vor.u32 %v1470, %v1471
        %v1473 = vshll.u32 2102212464, %v1461
        %v1474 = vshrl.u32 920167782, %v1462
        %v1475 = vor.u32 %v1473, %v1474
        %v1476 = vshll.u32 920167782, %v1461
        %v1477 = vshrl.u32 1326507024, %v1462
        %v1478 = vor.u32 %v1476, %v1477
        %vm1479 = vcmp.lt.s32.totalorder %v1460, 1
        %vm1480 = vcmp.lt.s32.totalorder %v1460, 2
        %vm1481 = vcmp.lt.s32.totalorder %v1460, 3
        %vm1482 = vcmp.lt.s32.totalorder %v1460, 4
        %v1483 = vsel %vm1479, %v1463, %v1466
        %v1484 = vsel %vm1482, %v1472, 2102212464
        %v1485 = vsel %vm1481, %v1469, %v1484
        %v1486 = vsel %vm1480, %v1483, %v1485
        %v1487 = vsel %vm1479, %v1466, %v1469
        %v1488 = vsel %vm1482, %v1475, 920167782
        %v1489 = vsel %vm1481, %v1472, %v1488
        %v1490 = vsel %vm1480, %v1487, %v1489
        %v1491 = vsel %vm1479, %v1469, %v1472
        %v1492 = vsel %vm1482, %v1478, 1326507024
        %v1493 = vsel %vm1481, %v1475, %v1492
        %v1494 = vsel %vm1480, %v1491, %v1493
        %v1495 = vshll.u32 %v1455, 8
        %v1496 = vmul.u32.u64.compose %v1495, %v1494
        %v1497 = vextract.low.u32 %v1496
        %v1498 = vextract.high.u32 %v1496
        %v1499 = vmul.u32.u64.compose %v1495, %v1490
        %v1500 = vextract.low.u32 %v1499
        %v1501 = vextract.high.u32 %v1499
        %v1502 = vmul.u32 %v1495, %v1486
        %v1503 = vadd.s32 %v1498, %v1500
        %vm1504 = vc.u32 %v1498, %v1500
        %v1505 = vadd.s32 %v1501, 1
        %v1506 = vsel %vm1504, %v1505, %v1501
        %v1507 = vadd.s32 %v1502, %v1506
        %v1508 = vadd.s32 %v1507, 536870912
        %v1509 = vshrl.u32 %v1508, 30
        %v1510 = vshll.u32 %v1509, 30
        %v1511 = vsub.s32 %v1507, %v1510
        %vm1512 = vcmp.lt.s32.totalorder %v1511, 0
        %v1513 = vsub.s32 0, %v1511
        %v1514 = vsel %vm1512, %v1513, %v1511
        %v1515 = vclz %v1514
        %v1516 = vsub.s32 %v1515, 2
        %vm1517 = vcmp.gt.s32.totalorder 0, %v1516
        %v1518 = vsel %vm1517, 0, %v1516
        %v1519 = vsub.s32 32, %v1518
        %v1520 = vshll.u32 %v1511, %v1518
        %v1521 = vshrl.u32 %v1503, %v1519
        %v1522 = vor.u32 %v1520, %v1521
        %v1523 = vsub.s32 4294967266, %v1518
        %v1524 = vadd.s32 %v1523, 127
        %v1525 = vshll.u32 %v1524, 23
        %v1526 = vor.u32 4788187, %v1525
        %v1527 = vand.u32 2147483647, %v1526
        %v1529 = vcvt.s32.f32 %v1522
        %v1530 = vmul.f32 %v1529, %v1527
        %v1531 = vxor.u32 %v1530, 2147483648
        %v1532 = vsel %vm1449, %v1531, %v1530
        %v1533 = vsub.s32 4, %v1509
        %v1534 = vsel %vm1449, %v1533, %v1509
        %v1535 = vsel %vm1448, %v385, %v1532
        %v1536 = vsel %vm1448, 0, %v1534
        %v1537 = vcosq.f32.pop %v1535
        %v1538 = vsinq.f32.pop %v1535
        %vm1539 = vweird.f32 %v385
        %v1540 = vadd.s32 %v1536, 3
        %v1541 = vand.u32 %v1540, 3
        %vm1542 = vcmp.lt.s32.totalorder %v1541, 2
        %vm1543 = vcmp.eq.s32.totalorder %v1541, 0
        %v1544 = vxor.u32 %v1538, 2147483648
        %v1545 = vsel %vm1543, %v1537, %v1544
        %vm1546 = vcmp.eq.s32.totalorder %v1541, 2
        %v1547 = vxor.u32 %v1537, 2147483648
        %v1548 = vsel %vm1546, %v1547, %v1538
        %v1549 = vsel %vm1542, %v1545, %v1548
        %v1550 = vsel %vm1539, nan, %v1549
        %v1551 = vand.u32 2147483647, %v388
        %vm1552 = vcmp.le.f32.partialorder %v1551, 0.7853982
        %vm1553 = vcmp.lt.s32.totalorder %v388, 0
        %v1554 = vand.u32 %v388, 2139095040
        %v1555 = vshrl.u32 %v1554, 23
        %v1556 = vsub.s32 %v1555, 127
        %v1557 = vand.u32 2147483647, %v388
        %v1558 = vand.u32 %v1557, 8388607
        %v1559 = vor.u32 %v1558, 8388608
        %v1560 = vsub.s32 0, %v1559
        %v1561 = vadd.s32 %v1556, 1
        %vm1562 = vcmp.gt.s32.totalorder %v1561, 0
        %v1563 = vsel %vm1562, %v1561, 0
        %v1564 = vshrl.u32 %v1563, 5
        %v1565 = vand.u32 %v1563, 31
        %v1566 = vsub.s32 32, %v1565
        %v1567 = vshrl.u32 683565275, %v1566
        %v1568 = vshll.u32 683565275, %v1565
        %v1569 = vshrl.u32 2475754826, %v1566
        %v1570 = vor.u32 %v1568, %v1569
        %v1571 = vshll.u32 2475754826, %v1565
        %v1572 = vshrl.u32 2131351028, %v1566
        %v1573 = vor.u32 %v1571, %v1572
        %v1574 = vshll.u32 2131351028, %v1565
        %v1575 = vshrl.u32 2102212464, %v1566
        %v1576 = vor.u32 %v1574, %v1575
        %v1577 = vshll.u32 2102212464, %v1565
        %v1578 = vshrl.u32 920167782, %v1566
        %v1579 = vor.u32 %v1577, %v1578
        %v1580 = vshll.u32 920167782, %v1565
        %v1581 = vshrl.u32 1326507024, %v1566
        %v1582 = vor.u32 %v1580, %v1581
        %vm1583 = vcmp.lt.s32.totalorder %v1564, 1
        %vm1584 = vcmp.lt.s32.totalorder %v1564, 2
        %vm1585 = vcmp.lt.s32.totalorder %v1564, 3
        %vm1586 = vcmp.lt.s32.totalorder %v1564, 4
        %v1587 = vsel %vm1583, %v1567, %v1570
        %v1588 = vsel %vm1586, %v1576, 2102212464
        %v1589 = vsel %vm1585, %v1573, %v1588
        %v1590 = vsel %vm1584, %v1587, %v1589
        %v1591 = vsel %vm1583, %v1570, %v1573
        %v1592 = vsel %vm1586, %v1579, 920167782
        %v1593 = vsel %vm1585, %v1576, %v1592
        %v1594 = vsel %vm1584, %v1591, %v1593
        %v1595 = vsel %vm1583, %v1573, %v1576
        %v1596 = vsel %vm1586, %v1582, 1326507024
        %v1597 = vsel %vm1585, %v1579, %v1596
        %v1598 = vsel %vm1584, %v1595, %v1597
        %v1599 = vshll.u32 %v1559, 8
        %v1600 = vmul.u32.u64.compose %v1599, %v1598
        %v1601 = vextract.low.u32 %v1600
        %v1602 = vextract.high.u32 %v1600
        %v1603 = vmul.u32.u64.compose %v1599, %v1594
        %v1604 = vextract.low.u32 %v1603
        %v1605 = vextract.high.u32 %v1603
        %v1606 = vmul.u32 %v1599, %v1590
        %v1607 = vadd.s32 %v1602, %v1604
        %vm1608 = vc.u32 %v1602, %v1604
        %v1609 = vadd.s32 %v1605, 1
        %v1610 = vsel %vm1608, %v1609, %v1605
        %v1611 = vadd.s32 %v1606, %v1610
        %v1612 = vadd.s32 %v1611, 536870912
        %v1613 = vshrl.u32 %v1612, 30
        %v1614 = vshll.u32 %v1613, 30
        %v1615 = vsub.s32 %v1611, %v1614
        %vm1616 = vcmp.lt.s32.totalorder %v1615, 0
        %v1617 = vsub.s32 0, %v1615
        %v1618 = vsel %vm1616, %v1617, %v1615
        %v1619 = vclz %v1618
        %v1620 = vsub.s32 %v1619, 2
        %vm1621 = vcmp.gt.s32.totalorder 0, %v1620
        %v1622 = vsel %vm1621, 0, %v1620
        %v1623 = vsub.s32 32, %v1622
        %v1624 = vshll.u32 %v1615, %v1622
        %v1625 = vshrl.u32 %v1607, %v1623
        %v1626 = vor.u32 %v1624, %v1625
        %v1627 = vsub.s32 4294967266, %v1622
        %v1628 = vadd.s32 %v1627, 127
        %v1629 = vshll.u32 %v1628, 23
        %v1630 = vor.u32 4788187, %v1629
        %v1631 = vand.u32 2147483647, %v1630
        %v1633 = vcvt.s32.f32 %v1626
        %v1634 = vmul.f32 %v1633, %v1631
        %v1635 = vxor.u32 %v1634, 2147483648
        %v1636 = vsel %vm1553, %v1635, %v1634
        %v1637 = vsub.s32 4, %v1613
        %v1638 = vsel %vm1553, %v1637, %v1613
        %v1639 = vsel %vm1552, %v388, %v1636
        %v1640 = vsel %vm1552, 0, %v1638
        %v1641 = vcosq.f32.pop %v1639
        %v1642 = vsinq.f32.pop %v1639
        %vm1643 = vweird.f32 %v388
        %v1644 = vadd.s32 %v1640, 3
        %v1645 = vand.u32 %v1644, 3
        %vm1646 = vcmp.lt.s32.totalorder %v1645, 2
        %vm1647 = vcmp.eq.s32.totalorder %v1645, 0
        %v1648 = vxor.u32 %v1642, 2147483648
        %v1649 = vsel %vm1647, %v1641, %v1648
        %vm1650 = vcmp.eq.s32.totalorder %v1645, 2
        %v1651 = vxor.u32 %v1641, 2147483648
        %v1652 = vsel %vm1650, %v1651, %v1642
        %v1653 = vsel %vm1646, %v1649, %v1652
        %v1654 = vsel %vm1643, nan, %v1653
        %v1655 = vand.u32 2147483647, %v393
        %vm1656 = vcmp.le.f32.partialorder %v1655, 0.7853982
        %vm1657 = vcmp.lt.s32.totalorder %v393, 0
        %v1658 = vand.u32 %v393, 2139095040
        %v1659 = vshrl.u32 %v1658, 23
        %v1660 = vsub.s32 %v1659, 127
        %v1661 = vand.u32 2147483647, %v393
        %v1662 = vand.u32 %v1661, 8388607
        %v1663 = vor.u32 %v1662, 8388608
        %v1664 = vsub.s32 0, %v1663
        %v1665 = vadd.s32 %v1660, 1
        %vm1666 = vcmp.gt.s32.totalorder %v1665, 0
        %v1667 = vsel %vm1666, %v1665, 0
        %v1668 = vshrl.u32 %v1667, 5
        %v1669 = vand.u32 %v1667, 31
        %v1670 = vsub.s32 32, %v1669
        %v1671 = vshrl.u32 683565275, %v1670
        %v1672 = vshll.u32 683565275, %v1669
        %v1673 = vshrl.u32 2475754826, %v1670
        %v1674 = vor.u32 %v1672, %v1673
        %v1675 = vshll.u32 2475754826, %v1669
        %v1676 = vshrl.u32 2131351028, %v1670
        %v1677 = vor.u32 %v1675, %v1676
        %v1678 = vshll.u32 2131351028, %v1669
        %v1679 = vshrl.u32 2102212464, %v1670
        %v1680 = vor.u32 %v1678, %v1679
        %v1681 = vshll.u32 2102212464, %v1669
        %v1682 = vshrl.u32 920167782, %v1670
        %v1683 = vor.u32 %v1681, %v1682
        %v1684 = vshll.u32 920167782, %v1669
        %v1685 = vshrl.u32 1326507024, %v1670
        %v1686 = vor.u32 %v1684, %v1685
        %vm1687 = vcmp.lt.s32.totalorder %v1668, 1
        %vm1688 = vcmp.lt.s32.totalorder %v1668, 2
        %vm1689 = vcmp.lt.s32.totalorder %v1668, 3
        %vm1690 = vcmp.lt.s32.totalorder %v1668, 4
        %v1691 = vsel %vm1687, %v1671, %v1674
        %v1692 = vsel %vm1690, %v1680, 2102212464
        %v1693 = vsel %vm1689, %v1677, %v1692
        %v1694 = vsel %vm1688, %v1691, %v1693
        %v1695 = vsel %vm1687, %v1674, %v1677
        %v1696 = vsel %vm1690, %v1683, 920167782
        %v1697 = vsel %vm1689, %v1680, %v1696
        %v1698 = vsel %vm1688, %v1695, %v1697
        %v1699 = vsel %vm1687, %v1677, %v1680
        %v1700 = vsel %vm1690, %v1686, 1326507024
        %v1701 = vsel %vm1689, %v1683, %v1700
        %v1702 = vsel %vm1688, %v1699, %v1701
        %v1703 = vshll.u32 %v1663, 8
        %v1704 = vmul.u32.u64.compose %v1703, %v1702
        %v1705 = vextract.low.u32 %v1704
        %v1706 = vextract.high.u32 %v1704
        %v1707 = vmul.u32.u64.compose %v1703, %v1698
        %v1708 = vextract.low.u32 %v1707
        %v1709 = vextract.high.u32 %v1707
        %v1710 = vmul.u32 %v1703, %v1694
        %v1711 = vadd.s32 %v1706, %v1708
        %vm1712 = vc.u32 %v1706, %v1708
        %v1713 = vadd.s32 %v1709, 1
        %v1714 = vsel %vm1712, %v1713, %v1709
        %v1715 = vadd.s32 %v1710, %v1714
        %v1716 = vadd.s32 %v1715, 536870912
        %v1717 = vshrl.u32 %v1716, 30
        %v1718 = vshll.u32 %v1717, 30
        %v1719 = vsub.s32 %v1715, %v1718
        %vm1720 = vcmp.lt.s32.totalorder %v1719, 0
        %v1721 = vsub.s32 0, %v1719
        %v1722 = vsel %vm1720, %v1721, %v1719
        %v1723 = vclz %v1722
        %v1724 = vsub.s32 %v1723, 2
        %vm1725 = vcmp.gt.s32.totalorder 0, %v1724
        %v1726 = vsel %vm1725, 0, %v1724
        %v1727 = vsub.s32 32, %v1726
        %v1728 = vshll.u32 %v1719, %v1726
        %v1729 = vshrl.u32 %v1711, %v1727
        %v1730 = vor.u32 %v1728, %v1729
        %v1731 = vsub.s32 4294967266, %v1726
        %v1732 = vadd.s32 %v1731, 127
        %v1733 = vshll.u32 %v1732, 23
        %v1734 = vor.u32 4788187, %v1733
        %v1735 = vand.u32 2147483647, %v1734
        %v1737 = vcvt.s32.f32 %v1730
        %v1738 = vmul.f32 %v1737, %v1735
        %v1739 = vxor.u32 %v1738, 2147483648
        %v1740 = vsel %vm1657, %v1739, %v1738
        %v1741 = vsub.s32 4, %v1717
        %v1742 = vsel %vm1657, %v1741, %v1717
        %v1743 = vsel %vm1656, %v393, %v1740
        %v1744 = vsel %vm1656, 0, %v1742
        %v1745 = vcosq.f32.pop %v1743
        %v1746 = vsinq.f32.pop %v1743
        %vm1747 = vweird.f32 %v393
        %v1748 = vadd.s32 %v1744, 3
        %v1749 = vand.u32 %v1748, 3
        %vm1750 = vcmp.lt.s32.totalorder %v1749, 2
        %vm1751 = vcmp.eq.s32.totalorder %v1749, 0
        %v1752 = vxor.u32 %v1746, 2147483648
        %v1753 = vsel %vm1751, %v1745, %v1752
        %vm1754 = vcmp.eq.s32.totalorder %v1749, 2
        %v1755 = vxor.u32 %v1745, 2147483648
        %v1756 = vsel %vm1754, %v1755, %v1746
        %v1757 = vsel %vm1750, %v1753, %v1756
        %v1758 = vsel %vm1747, nan, %v1757
        %v1759 = vand.u32 2147483647, %v396
        %vm1760 = vcmp.le.f32.partialorder %v1759, 0.7853982
        %vm1761 = vcmp.lt.s32.totalorder %v396, 0
        %v1762 = vand.u32 %v396, 2139095040
        %v1763 = vshrl.u32 %v1762, 23
        %v1764 = vsub.s32 %v1763, 127
        %v1765 = vand.u32 2147483647, %v396
        %v1766 = vand.u32 %v1765, 8388607
        %v1767 = vor.u32 %v1766, 8388608
        %v1768 = vsub.s32 0, %v1767
        %v1769 = vadd.s32 %v1764, 1
        %vm1770 = vcmp.gt.s32.totalorder %v1769, 0
        %v1771 = vsel %vm1770, %v1769, 0
        %v1772 = vshrl.u32 %v1771, 5
        %v1773 = vand.u32 %v1771, 31
        %v1774 = vsub.s32 32, %v1773
        %v1775 = vshrl.u32 683565275, %v1774
        %v1776 = vshll.u32 683565275, %v1773
        %v1777 = vshrl.u32 2475754826, %v1774
        %v1778 = vor.u32 %v1776, %v1777
        %v1779 = vshll.u32 2475754826, %v1773
        %v1780 = vshrl.u32 2131351028, %v1774
        %v1781 = vor.u32 %v1779, %v1780
        %v1782 = vshll.u32 2131351028, %v1773
        %v1783 = vshrl.u32 2102212464, %v1774
        %v1784 = vor.u32 %v1782, %v1783
        %v1785 = vshll.u32 2102212464, %v1773
        %v1786 = vshrl.u32 920167782, %v1774
        %v1787 = vor.u32 %v1785, %v1786
        %v1788 = vshll.u32 920167782, %v1773
        %v1789 = vshrl.u32 1326507024, %v1774
        %v1790 = vor.u32 %v1788, %v1789
        %vm1791 = vcmp.lt.s32.totalorder %v1772, 1
        %vm1792 = vcmp.lt.s32.totalorder %v1772, 2
        %vm1793 = vcmp.lt.s32.totalorder %v1772, 3
        %vm1794 = vcmp.lt.s32.totalorder %v1772, 4
        %v1795 = vsel %vm1791, %v1775, %v1778
        %v1796 = vsel %vm1794, %v1784, 2102212464
        %v1797 = vsel %vm1793, %v1781, %v1796
        %v1798 = vsel %vm1792, %v1795, %v1797
        %v1799 = vsel %vm1791, %v1778, %v1781
        %v1800 = vsel %vm1794, %v1787, 920167782
        %v1801 = vsel %vm1793, %v1784, %v1800
        %v1802 = vsel %vm1792, %v1799, %v1801
        %v1803 = vsel %vm1791, %v1781, %v1784
        %v1804 = vsel %vm1794, %v1790, 1326507024
        %v1805 = vsel %vm1793, %v1787, %v1804
        %v1806 = vsel %vm1792, %v1803, %v1805
        %v1807 = vshll.u32 %v1767, 8
        %v1808 = vmul.u32.u64.compose %v1807, %v1806
        %v1809 = vextract.low.u32 %v1808
        %v1810 = vextract.high.u32 %v1808
        %v1811 = vmul.u32.u64.compose %v1807, %v1802
        %v1812 = vextract.low.u32 %v1811
        %v1813 = vextract.high.u32 %v1811
        %v1814 = vmul.u32 %v1807, %v1798
        %v1815 = vadd.s32 %v1810, %v1812
        %vm1816 = vc.u32 %v1810, %v1812
        %v1817 = vadd.s32 %v1813, 1
        %v1818 = vsel %vm1816, %v1817, %v1813
        %v1819 = vadd.s32 %v1814, %v1818
        %v1820 = vadd.s32 %v1819, 536870912
        %v1821 = vshrl.u32 %v1820, 30
        %v1822 = vshll.u32 %v1821, 30
        %v1823 = vsub.s32 %v1819, %v1822
        %vm1824 = vcmp.lt.s32.totalorder %v1823, 0
        %v1825 = vsub.s32 0, %v1823
        %v1826 = vsel %vm1824, %v1825, %v1823
        %v1827 = vclz %v1826
        %v1828 = vsub.s32 %v1827, 2
        %vm1829 = vcmp.gt.s32.totalorder 0, %v1828
        %v1830 = vsel %vm1829, 0, %v1828
        %v1831 = vsub.s32 32, %v1830
        %v1832 = vshll.u32 %v1823, %v1830
        %v1833 = vshrl.u32 %v1815, %v1831
        %v1834 = vor.u32 %v1832, %v1833
        %v1835 = vsub.s32 4294967266, %v1830
        %v1836 = vadd.s32 %v1835, 127
        %v1837 = vshll.u32 %v1836, 23
        %v1838 = vor.u32 4788187, %v1837
        %v1839 = vand.u32 2147483647, %v1838
        %v1841 = vcvt.s32.f32 %v1834
        %v1842 = vmul.f32 %v1841, %v1839
        %v1843 = vxor.u32 %v1842, 2147483648
        %v1844 = vsel %vm1761, %v1843, %v1842
        %v1845 = vsub.s32 4, %v1821
        %v1846 = vsel %vm1761, %v1845, %v1821
        %v1847 = vsel %vm1760, %v396, %v1844
        %v1848 = vsel %vm1760, 0, %v1846
        %v1849 = vcosq.f32.pop %v1847
        %v1850 = vsinq.f32.pop %v1847
        %vm1851 = vweird.f32 %v396
        %v1852 = vadd.s32 %v1848, 3
        %v1853 = vand.u32 %v1852, 3
        %vm1854 = vcmp.lt.s32.totalorder %v1853, 2
        %vm1855 = vcmp.eq.s32.totalorder %v1853, 0
        %v1856 = vxor.u32 %v1850, 2147483648
        %v1857 = vsel %vm1855, %v1849, %v1856
        %vm1858 = vcmp.eq.s32.totalorder %v1853, 2
        %v1859 = vxor.u32 %v1849, 2147483648
        %v1860 = vsel %vm1858, %v1859, %v1850
        %v1861 = vsel %vm1854, %v1857, %v1860
        %v1862 = vsel %vm1851, nan, %v1861
        %v1863 = vand.u32 2147483647, %v401
        %vm1864 = vcmp.le.f32.partialorder %v1863, 0.7853982
        %vm1865 = vcmp.lt.s32.totalorder %v401, 0
        %v1866 = vand.u32 %v401, 2139095040
        %v1867 = vshrl.u32 %v1866, 23
        %v1868 = vsub.s32 %v1867, 127
        %v1869 = vand.u32 2147483647, %v401
        %v1870 = vand.u32 %v1869, 8388607
        %v1871 = vor.u32 %v1870, 8388608
        %v1872 = vsub.s32 0, %v1871
        %v1873 = vadd.s32 %v1868, 1
        %vm1874 = vcmp.gt.s32.totalorder %v1873, 0
        %v1875 = vsel %vm1874, %v1873, 0
        %v1876 = vshrl.u32 %v1875, 5
        %v1877 = vand.u32 %v1875, 31
        %v1878 = vsub.s32 32, %v1877
        %v1879 = vshrl.u32 683565275, %v1878
        %v1880 = vshll.u32 683565275, %v1877
        %v1881 = vshrl.u32 2475754826, %v1878
        %v1882 = vor.u32 %v1880, %v1881
        %v1883 = vshll.u32 2475754826, %v1877
        %v1884 = vshrl.u32 2131351028, %v1878
        %v1885 = vor.u32 %v1883, %v1884
        %v1886 = vshll.u32 2131351028, %v1877
        %v1887 = vshrl.u32 2102212464, %v1878
        %v1888 = vor.u32 %v1886, %v1887
        %v1889 = vshll.u32 2102212464, %v1877
        %v1890 = vshrl.u32 920167782, %v1878
        %v1891 = vor.u32 %v1889, %v1890
        %v1892 = vshll.u32 920167782, %v1877
        %v1893 = vshrl.u32 1326507024, %v1878
        %v1894 = vor.u32 %v1892, %v1893
        %vm1895 = vcmp.lt.s32.totalorder %v1876, 1
        %vm1896 = vcmp.lt.s32.totalorder %v1876, 2
        %vm1897 = vcmp.lt.s32.totalorder %v1876, 3
        %vm1898 = vcmp.lt.s32.totalorder %v1876, 4
        %v1899 = vsel %vm1895, %v1879, %v1882
        %v1900 = vsel %vm1898, %v1888, 2102212464
        %v1901 = vsel %vm1897, %v1885, %v1900
        %v1902 = vsel %vm1896, %v1899, %v1901
        %v1903 = vsel %vm1895, %v1882, %v1885
        %v1904 = vsel %vm1898, %v1891, 920167782
        %v1905 = vsel %vm1897, %v1888, %v1904
        %v1906 = vsel %vm1896, %v1903, %v1905
        %v1907 = vsel %vm1895, %v1885, %v1888
        %v1908 = vsel %vm1898, %v1894, 1326507024
        %v1909 = vsel %vm1897, %v1891, %v1908
        %v1910 = vsel %vm1896, %v1907, %v1909
        %v1911 = vshll.u32 %v1871, 8
        %v1912 = vmul.u32.u64.compose %v1911, %v1910
        %v1913 = vextract.low.u32 %v1912
        %v1914 = vextract.high.u32 %v1912
        %v1915 = vmul.u32.u64.compose %v1911, %v1906
        %v1916 = vextract.low.u32 %v1915
        %v1917 = vextract.high.u32 %v1915
        %v1918 = vmul.u32 %v1911, %v1902
        %v1919 = vadd.s32 %v1914, %v1916
        %vm1920 = vc.u32 %v1914, %v1916
        %v1921 = vadd.s32 %v1917, 1
        %v1922 = vsel %vm1920, %v1921, %v1917
        %v1923 = vadd.s32 %v1918, %v1922
        %v1924 = vadd.s32 %v1923, 536870912
        %v1925 = vshrl.u32 %v1924, 30
        %v1926 = vshll.u32 %v1925, 30
        %v1927 = vsub.s32 %v1923, %v1926
        %vm1928 = vcmp.lt.s32.totalorder %v1927, 0
        %v1929 = vsub.s32 0, %v1927
        %v1930 = vsel %vm1928, %v1929, %v1927
        %v1931 = vclz %v1930
        %v1932 = vsub.s32 %v1931, 2
        %vm1933 = vcmp.gt.s32.totalorder 0, %v1932
        %v1934 = vsel %vm1933, 0, %v1932
        %v1935 = vsub.s32 32, %v1934
        %v1936 = vshll.u32 %v1927, %v1934
        %v1937 = vshrl.u32 %v1919, %v1935
        %v1938 = vor.u32 %v1936, %v1937
        %v1939 = vsub.s32 4294967266, %v1934
        %v1940 = vadd.s32 %v1939, 127
        %v1941 = vshll.u32 %v1940, 23
        %v1942 = vor.u32 4788187, %v1941
        %v1943 = vand.u32 2147483647, %v1942
        %v1945 = vcvt.s32.f32 %v1938
        %v1946 = vmul.f32 %v1945, %v1943
        %v1947 = vxor.u32 %v1946, 2147483648
        %v1948 = vsel %vm1865, %v1947, %v1946
        %v1949 = vsub.s32 4, %v1925
        %v1950 = vsel %vm1865, %v1949, %v1925
        %v1951 = vsel %vm1864, %v401, %v1948
        %v1952 = vsel %vm1864, 0, %v1950
        %v1953 = vcosq.f32.pop %v1951
        %v1954 = vsinq.f32.pop %v1951
        %vm1955 = vweird.f32 %v401
        %v1956 = vadd.s32 %v1952, 3
        %v1957 = vand.u32 %v1956, 3
        %vm1958 = vcmp.lt.s32.totalorder %v1957, 2
        %vm1959 = vcmp.eq.s32.totalorder %v1957, 0
        %v1960 = vxor.u32 %v1954, 2147483648
        %v1961 = vsel %vm1959, %v1953, %v1960
        %vm1962 = vcmp.eq.s32.totalorder %v1957, 2
        %v1963 = vxor.u32 %v1953, 2147483648
        %v1964 = vsel %vm1962, %v1963, %v1954
        %v1965 = vsel %vm1958, %v1961, %v1964
        %v1966 = vsel %vm1955, nan, %v1965
        %v1967 = vand.u32 2147483647, %v404
        %vm1968 = vcmp.le.f32.partialorder %v1967, 0.7853982
        %vm1969 = vcmp.lt.s32.totalorder %v404, 0
        %v1970 = vand.u32 %v404, 2139095040
        %v1971 = vshrl.u32 %v1970, 23
        %v1972 = vsub.s32 %v1971, 127
        %v1973 = vand.u32 2147483647, %v404
        %v1974 = vand.u32 %v1973, 8388607
        %v1975 = vor.u32 %v1974, 8388608
        %v1976 = vsub.s32 0, %v1975
        %v1977 = vadd.s32 %v1972, 1
        %vm1978 = vcmp.gt.s32.totalorder %v1977, 0
        %v1979 = vsel %vm1978, %v1977, 0
        %v1980 = vshrl.u32 %v1979, 5
        %v1981 = vand.u32 %v1979, 31
        %v1982 = vsub.s32 32, %v1981
        %v1983 = vshrl.u32 683565275, %v1982
        %v1984 = vshll.u32 683565275, %v1981
        %v1985 = vshrl.u32 2475754826, %v1982
        %v1986 = vor.u32 %v1984, %v1985
        %v1987 = vshll.u32 2475754826, %v1981
        %v1988 = vshrl.u32 2131351028, %v1982
        %v1989 = vor.u32 %v1987, %v1988
        %v1990 = vshll.u32 2131351028, %v1981
        %v1991 = vshrl.u32 2102212464, %v1982
        %v1992 = vor.u32 %v1990, %v1991
        %v1993 = vshll.u32 2102212464, %v1981
        %v1994 = vshrl.u32 920167782, %v1982
        %v1995 = vor.u32 %v1993, %v1994
        %v1996 = vshll.u32 920167782, %v1981
        %v1997 = vshrl.u32 1326507024, %v1982
        %v1998 = vor.u32 %v1996, %v1997
        %vm1999 = vcmp.lt.s32.totalorder %v1980, 1
        %vm2000 = vcmp.lt.s32.totalorder %v1980, 2
        %vm2001 = vcmp.lt.s32.totalorder %v1980, 3
        %vm2002 = vcmp.lt.s32.totalorder %v1980, 4
        %v2003 = vsel %vm1999, %v1983, %v1986
        %v2004 = vsel %vm2002, %v1992, 2102212464
        %v2005 = vsel %vm2001, %v1989, %v2004
        %v2006 = vsel %vm2000, %v2003, %v2005
        %v2007 = vsel %vm1999, %v1986, %v1989
        %v2008 = vsel %vm2002, %v1995, 920167782
        %v2009 = vsel %vm2001, %v1992, %v2008
        %v2010 = vsel %vm2000, %v2007, %v2009
        %v2011 = vsel %vm1999, %v1989, %v1992
        %v2012 = vsel %vm2002, %v1998, 1326507024
        %v2013 = vsel %vm2001, %v1995, %v2012
        %v2014 = vsel %vm2000, %v2011, %v2013
        %v2015 = vshll.u32 %v1975, 8
        %v2016 = vmul.u32.u64.compose %v2015, %v2014
        %v2017 = vextract.low.u32 %v2016
        %v2018 = vextract.high.u32 %v2016
        %v2019 = vmul.u32.u64.compose %v2015, %v2010
        %v2020 = vextract.low.u32 %v2019
        %v2021 = vextract.high.u32 %v2019
        %v2022 = vmul.u32 %v2015, %v2006
        %v2023 = vadd.s32 %v2018, %v2020
        %vm2024 = vc.u32 %v2018, %v2020
        %v2025 = vadd.s32 %v2021, 1
        %v2026 = vsel %vm2024, %v2025, %v2021
        %v2027 = vadd.s32 %v2022, %v2026
        %v2028 = vadd.s32 %v2027, 536870912
        %v2029 = vshrl.u32 %v2028, 30
        %v2030 = vshll.u32 %v2029, 30
        %v2031 = vsub.s32 %v2027, %v2030
        %vm2032 = vcmp.lt.s32.totalorder %v2031, 0
        %v2033 = vsub.s32 0, %v2031
        %v2034 = vsel %vm2032, %v2033, %v2031
        %v2035 = vclz %v2034
        %v2036 = vsub.s32 %v2035, 2
        %vm2037 = vcmp.gt.s32.totalorder 0, %v2036
        %v2038 = vsel %vm2037, 0, %v2036
        %v2039 = vsub.s32 32, %v2038
        %v2040 = vshll.u32 %v2031, %v2038
        %v2041 = vshrl.u32 %v2023, %v2039
        %v2042 = vor.u32 %v2040, %v2041
        %v2043 = vsub.s32 4294967266, %v2038
        %v2044 = vadd.s32 %v2043, 127
        %v2045 = vshll.u32 %v2044, 23
        %v2046 = vor.u32 4788187, %v2045
        %v2047 = vand.u32 2147483647, %v2046
        %v2049 = vcvt.s32.f32 %v2042
        %v2050 = vmul.f32 %v2049, %v2047
        %v2051 = vxor.u32 %v2050, 2147483648
        %v2052 = vsel %vm1969, %v2051, %v2050
        %v2053 = vsub.s32 4, %v2029
        %v2054 = vsel %vm1969, %v2053, %v2029
        %v2055 = vsel %vm1968, %v404, %v2052
        %v2056 = vsel %vm1968, 0, %v2054
        %v2057 = vcosq.f32.pop %v2055
        %v2058 = vsinq.f32.pop %v2055
        %vm2059 = vweird.f32 %v404
        %v2060 = vadd.s32 %v2056, 3
        %v2061 = vand.u32 %v2060, 3
        %vm2062 = vcmp.lt.s32.totalorder %v2061, 2
        %vm2063 = vcmp.eq.s32.totalorder %v2061, 0
        %v2064 = vxor.u32 %v2058, 2147483648
        %v2065 = vsel %vm2063, %v2057, %v2064
        %vm2066 = vcmp.eq.s32.totalorder %v2061, 2
        %v2067 = vxor.u32 %v2057, 2147483648
        %v2068 = vsel %vm2066, %v2067, %v2058
        %v2069 = vsel %vm2062, %v2065, %v2068
        %v2070 = vsel %vm2059, nan, %v2069
        %vm2071 = vcmask 523264
        %2072 = vst.msk [vmem:[%s210] sm:$0xff] %vm2071, %v510
        %2073 = vst.msk [vmem:[%s210 + $0x8] sm:$0xff] %vm2071, %v614
        %2074 = vst.msk [vmem:[%s210 + $0x10] sm:$0xff] %vm2071, %v718
        %2075 = vst.msk [vmem:[%s210 + $0x18] sm:$0xff] %vm2071, %v822
        %2076 = vst.msk [vmem:[%s210 + $0x20] sm:$0xff] %vm2071, %v926
        %2077 = vst.msk [vmem:[%s210 + $0x28] sm:$0xff] %vm2071, %v1030
        %2078 = vst.msk [vmem:[%s210 + $0x30] sm:$0xff] %vm2071, %v1134
        %2079 = vst.msk [vmem:[%s210 + $0x38] sm:$0xff] %vm2071, %v1238
        %2080 = vst.msk [vmem:[%s210 + $0x40] sm:$0xff] %vm2071, %v1342
        %2081 = vst.msk [vmem:[%s210 + $0x48] sm:$0xff] %vm2071, %v1446
        %2082 = vst.msk [vmem:[%s210 + $0x50] sm:$0xff] %vm2071, %v1550
        %2083 = vst.msk [vmem:[%s210 + $0x58] sm:$0xff] %vm2071, %v1654
        %2084 = vst.msk [vmem:[%s210 + $0x60] sm:$0xff] %vm2071, %v1758
        %2085 = vst.msk [vmem:[%s210 + $0x68] sm:$0xff] %vm2071, %v1862
        %2086 = vst.msk [vmem:[%s210 + $0x70] sm:$0xff] %vm2071, %v1966
        %2087 = vst.msk [vmem:[%s210 + $0x78] sm:$0xff] %vm2071, %v2070
        %s2088 = sand.u32 %s114, 1
        %s2089 = sand.u32 %s114, 1
        %s2090 = smul.addr %s2089, 128
        %s2091 = scalar_lea.vmem [#allocation2], %s2090
        // Predicated region
        $region33: #{tpu_custom_call.1} parent=31 // pred_check
          %p2092 = pneg %p124
        $region34: #{tpu_custom_call.1} parent=31 // pred_check_branch
          %2094 = sbr.rel (%p2092) target = $region36
        $region35: #{tpu_custom_call.1} parent=31 // pred_region
          %s2095 = smul.u32 16, %s19
          %s2096 = ssub.s32 25, %s2095
          %p2097 = scmp.lt.s32.totalorder %s2096, 16
          %s2098 = scalar_select %p2097, %s2096, 16
          %s2099 = smul.u32 128, %s2098
          %p2100 = scmp.ne.s32.totalorder 0, %s2099
          %s2101 = sadd.s32 %s18, %s2095
          %s2102 = smul.addr %s2101, 8
          %s2103 = scalar_lea.vmem %s3, %s2102
          // Predicated region
          $region37: #{tpu_custom_call.1} parent=35 // pred_check
            %p2104 = pneg %p2100
          $region38: #{tpu_custom_call.1} parent=35 // pred_check_branch
            %2106 = sbr.rel (%p2104) target = $region40
          $region39: #{tpu_custom_call.1} parent=35 // pred_region
            // Predicated region
            $region41: #{tpu_custom_call.1} parent=39 // pred_check
              _
            $region42: #{tpu_custom_call.1} parent=39 // pred_check_branch
              %2108 = sbr.rel (0) target = $region44
            $region43: #{tpu_custom_call.1} parent=39 // pred_region
              // Predicated region
              $region63: #{tpu_custom_call.1} parent=43 // pred_check
                _
              $region64: #{tpu_custom_call.1} parent=43 // pred_check_branch
                %2188 = sbr.rel (0) target = $region66
              $region65: #{tpu_custom_call.1} parent=43 // pred_region
                %s2189 = sshrl.u32 %s2098, 4
                // While loop
                $region67: #{tpu_custom_call.1} parent=65 // loop_pre_header
                  _
                $region68: #{tpu_custom_call.1} parent=65 // loop_header
                  %s2191 = sphi 0, %s2193
                  %p2192 = scmp.ge.s32.totalorder %s2191, %s2189
                  %s2196 = sphi 0, %s2233
                  %s2197 = sphi %s2091, %s2236
                  %s2198 = sphi %s2103, %s2237
                $region69: #{tpu_custom_call.1} parent=65 // loop_header_branch
                  %2195 = sbr.rel (%p2192) target = $region73
                $region70: #{tpu_custom_call.1} parent=65 // loop_body
                  %v2199 = vld [vmem:[%s2197] sm:$0xff]
                  %2200 = vst [vmem:[%s2198] sm:$0xff] %v2199
                  %v2201 = vld [vmem:[%s2197 + $0x8] sm:$0xff]
                  %2202 = vst [vmem:[%s2198 + $0x8] sm:$0xff] %v2201
                  %v2203 = vld [vmem:[%s2197 + $0x10] sm:$0xff]
                  %2204 = vst [vmem:[%s2198 + $0x10] sm:$0xff] %v2203
                  %v2205 = vld [vmem:[%s2197 + $0x18] sm:$0xff]
                  %2206 = vst [vmem:[%s2198 + $0x18] sm:$0xff] %v2205
                  %v2207 = vld [vmem:[%s2197 + $0x20] sm:$0xff]
                  %2208 = vst [vmem:[%s2198 + $0x20] sm:$0xff] %v2207
                  %v2209 = vld [vmem:[%s2197 + $0x28] sm:$0xff]
                  %2210 = vst [vmem:[%s2198 + $0x28] sm:$0xff] %v2209
                  %v2211 = vld [vmem:[%s2197 + $0x30] sm:$0xff]
                  %2212 = vst [vmem:[%s2198 + $0x30] sm:$0xff] %v2211
                  %v2213 = vld [vmem:[%s2197 + $0x38] sm:$0xff]
                  %2214 = vst [vmem:[%s2198 + $0x38] sm:$0xff] %v2213
                  %v2215 = vld [vmem:[%s2197 + $0x40] sm:$0xff]
                  %2216 = vst [vmem:[%s2198 + $0x40] sm:$0xff] %v2215
                  %v2217 = vld [vmem:[%s2197 + $0x48] sm:$0xff]
                  %2218 = vst [vmem:[%s2198 + $0x48] sm:$0xff] %v2217
                  %v2219 = vld [vmem:[%s2197 + $0x50] sm:$0xff]
                  %2220 = vst [vmem:[%s2198 + $0x50] sm:$0xff] %v2219
                  %v2221 = vld [vmem:[%s2197 + $0x58] sm:$0xff]
                  %2222 = vst [vmem:[%s2198 + $0x58] sm:$0xff] %v2221
                  %v2223 = vld [vmem:[%s2197 + $0x60] sm:$0xff]
                  %2224 = vst [vmem:[%s2198 + $0x60] sm:$0xff] %v2223
                  %v2225 = vld [vmem:[%s2197 + $0x68] sm:$0xff]
                  %2226 = vst [vmem:[%s2198 + $0x68] sm:$0xff] %v2225
                  %v2227 = vld [vmem:[%s2197 + $0x70] sm:$0xff]
                  %2228 = vst [vmem:[%s2198 + $0x70] sm:$0xff] %v2227
                  %v2229 = vld [vmem:[%s2197 + $0x78] sm:$0xff]
                  %2230 = vst [vmem:[%s2198 + $0x78] sm:$0xff] %v2229
                  %s2231 = sadd.s32 1, %s2196
                  %p2232 = scmp.ge.s32.totalorder %s2231, %s2189
                  %s2233 = scalar_select %p2232, 0, %s2231
                  %s2234 = smul.u32 %s2233, 128
                  %s2235 = smul.u32 %s2233, 128
                  %s2236 = scalar_lea.vmem %s2091, %s2234 [#allocation2]
                  %s2237 = scalar_lea.vmem %s2103, %s2235
                $region71: #{tpu_custom_call.1} parent=65 // loop_footer
                  %s2193 = sadd.s32 %s2191, 1
                $region72: #{tpu_custom_call.1} parent=65 // loop_footer_branch
                  %2190 = sbr.rel target = $region68
                $region73: #{tpu_custom_call.1} parent=65 // loop_exit
                  _
                %s2238 = sshrl.u32 %s2098, 4
                %s2239 = sand.u32 %s2098, 15
                %s2240 = smul.u32 %s2238, 16
                %s2241 = smul.u32 8, %s2240
                %s2242 = scalar_lea.vmem %s2091, %s2241 [#allocation2]
                %s2243 = smul.u32 8, %s2240
                %s2244 = scalar_lea.vmem %s2103, %s2243
                // While loop
                $region74: #{tpu_custom_call.1} parent=65 // loop_pre_header
                  _
                $region75: #{tpu_custom_call.1} parent=65 // loop_header
                  %s2246 = sphi 0, %s2248
                  %p2247 = scmp.ge.s32.totalorder %s2246, %s2239
                  %s2251 = sphi 0, %s2258
                  %s2252 = sphi %s2242, %s2261
                  %s2253 = sphi %s2244, %s2262
                $region76: #{tpu_custom_call.1} parent=65 // loop_header_branch
                  %2250 = sbr.rel (%p2247) target = $region80
                $region77: #{tpu_custom_call.1} parent=65 // loop_body
                  %v2254 = vld [vmem:[%s2252] sm:$0xff]
                  %2255 = vst [vmem:[%s2253] sm:$0xff] %v2254
                  %s2256 = sadd.s32 1, %s2251
                  %p2257 = scmp.ge.s32.totalorder %s2256, %s2239
                  %s2258 = scalar_select %p2257, 0, %s2256
                  %s2259 = smul.u32 %s2258, 8
                  %s2260 = smul.u32 %s2258, 8
                  %s2261 = scalar_lea.vmem %s2242, %s2259 [#allocation2]
                  %s2262 = scalar_lea.vmem %s2244, %s2260
                $region78: #{tpu_custom_call.1} parent=65 // loop_footer
                  %s2248 = sadd.s32 %s2246, 1
                $region79: #{tpu_custom_call.1} parent=65 // loop_footer_branch
                  %2245 = sbr.rel target = $region75
                $region80: #{tpu_custom_call.1} parent=65 // loop_exit
                  _
              $region66: #{tpu_custom_call.1} parent=43 // pred_fallthru
                _
              // Predicated region
              $region81: #{tpu_custom_call.1} parent=43 // pred_check
                _
              $region82: #{tpu_custom_call.1} parent=43 // pred_check_branch
                %2264 = sbr.rel target = $region84
              $region83: #{tpu_custom_call.1} parent=43 // pred_region
                _
              $region84: #{tpu_custom_call.1} parent=43 // pred_fallthru
                _
            $region44: #{tpu_custom_call.1} parent=39 // pred_fallthru
              _
            // Predicated region
            $region45: #{tpu_custom_call.1} parent=39 // pred_check
              _
            $region46: #{tpu_custom_call.1} parent=39 // pred_check_branch
              %2110 = sbr.rel target = $region48
            $region47: #{tpu_custom_call.1} parent=39 // pred_region
              %s2112 = ssub.s32 256, 1
              %s2113 = sshrl.u32 %s2098, 4
              // While loop
              $region49: #{tpu_custom_call.1} parent=47 // loop_pre_header
                _
              $region50: #{tpu_custom_call.1} parent=47 // loop_header
                %s2115 = sphi 0, %s2117
                %p2116 = scmp.ge.s32.totalorder %s2115, %s2113
                %s2120 = sphi 0, %s2157
                %s2121 = sphi %s2091, %s2160
                %s2122 = sphi %s2103, %s2161
              $region51: #{tpu_custom_call.1} parent=47 // loop_header_branch
                %2119 = sbr.rel (%p2116) target = $region55
              $region52: #{tpu_custom_call.1} parent=47 // loop_body
                %v2123 = vld [vmem:[%s2121] sm:%s2112]
                %2124 = vst [vmem:[%s2122] sm:%s2112] %v2123
                %v2125 = vld [vmem:[%s2121 + $0x8] sm:%s2112]
                %2126 = vst [vmem:[%s2122 + $0x8] sm:%s2112] %v2125
                %v2127 = vld [vmem:[%s2121 + $0x10] sm:%s2112]
                %2128 = vst [vmem:[%s2122 + $0x10] sm:%s2112] %v2127
                %v2129 = vld [vmem:[%s2121 + $0x18] sm:%s2112]
                %2130 = vst [vmem:[%s2122 + $0x18] sm:%s2112] %v2129
                %v2131 = vld [vmem:[%s2121 + $0x20] sm:%s2112]
                %2132 = vst [vmem:[%s2122 + $0x20] sm:%s2112] %v2131
                %v2133 = vld [vmem:[%s2121 + $0x28] sm:%s2112]
                %2134 = vst [vmem:[%s2122 + $0x28] sm:%s2112] %v2133
                %v2135 = vld [vmem:[%s2121 + $0x30] sm:%s2112]
                %2136 = vst [vmem:[%s2122 + $0x30] sm:%s2112] %v2135
                %v2137 = vld [vmem:[%s2121 + $0x38] sm:%s2112]
                %2138 = vst [vmem:[%s2122 + $0x38] sm:%s2112] %v2137
                %v2139 = vld [vmem:[%s2121 + $0x40] sm:%s2112]
                %2140 = vst [vmem:[%s2122 + $0x40] sm:%s2112] %v2139
                %v2141 = vld [vmem:[%s2121 + $0x48] sm:%s2112]
                %2142 = vst [vmem:[%s2122 + $0x48] sm:%s2112] %v2141
                %v2143 = vld [vmem:[%s2121 + $0x50] sm:%s2112]
                %2144 = vst [vmem:[%s2122 + $0x50] sm:%s2112] %v2143
                %v2145 = vld [vmem:[%s2121 + $0x58] sm:%s2112]
                %2146 = vst [vmem:[%s2122 + $0x58] sm:%s2112] %v2145
                %v2147 = vld [vmem:[%s2121 + $0x60] sm:%s2112]
                %2148 = vst [vmem:[%s2122 + $0x60] sm:%s2112] %v2147
                %v2149 = vld [vmem:[%s2121 + $0x68] sm:%s2112]
                %2150 = vst [vmem:[%s2122 + $0x68] sm:%s2112] %v2149
                %v2151 = vld [vmem:[%s2121 + $0x70] sm:%s2112]
                %2152 = vst [vmem:[%s2122 + $0x70] sm:%s2112] %v2151
                %v2153 = vld [vmem:[%s2121 + $0x78] sm:%s2112]
                %2154 = vst [vmem:[%s2122 + $0x78] sm:%s2112] %v2153
                %s2155 = sadd.s32 1, %s2120
                %p2156 = scmp.ge.s32.totalorder %s2155, %s2113
                %s2157 = scalar_select %p2156, 0, %s2155
                %s2158 = smul.u32 %s2157, 128
                %s2159 = smul.u32 %s2157, 128
                %s2160 = scalar_lea.vmem %s2091, %s2158 [#allocation2]
                %s2161 = scalar_lea.vmem %s2103, %s2159
              $region53: #{tpu_custom_call.1} parent=47 // loop_footer
                %s2117 = sadd.s32 %s2115, 1
              $region54: #{tpu_custom_call.1} parent=47 // loop_footer_branch
                %2114 = sbr.rel target = $region50
              $region55: #{tpu_custom_call.1} parent=47 // loop_exit
                _
              %s2162 = sshrl.u32 %s2098, 4
              %s2163 = sand.u32 %s2098, 15
              %s2164 = smul.u32 %s2162, 16
              %s2165 = smul.u32 8, %s2164
              %s2166 = scalar_lea.vmem %s2091, %s2165 [#allocation2]
              %s2167 = smul.u32 8, %s2164
              %s2168 = scalar_lea.vmem %s2103, %s2167
              // While loop
              $region56: #{tpu_custom_call.1} parent=47 // loop_pre_header
                _
              $region57: #{tpu_custom_call.1} parent=47 // loop_header
                %s2170 = sphi 0, %s2172
                %p2171 = scmp.ge.s32.totalorder %s2170, %s2163
                %s2175 = sphi 0, %s2182
                %s2176 = sphi %s2166, %s2185
                %s2177 = sphi %s2168, %s2186
              $region58: #{tpu_custom_call.1} parent=47 // loop_header_branch
                %2174 = sbr.rel (%p2171) target = $region62
              $region59: #{tpu_custom_call.1} parent=47 // loop_body
                %v2178 = vld [vmem:[%s2176] sm:%s2112]
                %2179 = vst [vmem:[%s2177] sm:%s2112] %v2178
                %s2180 = sadd.s32 1, %s2175
                %p2181 = scmp.ge.s32.totalorder %s2180, %s2163
                %s2182 = scalar_select %p2181, 0, %s2180
                %s2183 = smul.u32 %s2182, 8
                %s2184 = smul.u32 %s2182, 8
                %s2185 = scalar_lea.vmem %s2166, %s2183 [#allocation2]
                %s2186 = scalar_lea.vmem %s2168, %s2184
              $region60: #{tpu_custom_call.1} parent=47 // loop_footer
                %s2172 = sadd.s32 %s2170, 1
              $region61: #{tpu_custom_call.1} parent=47 // loop_footer_branch
                %2169 = sbr.rel target = $region57
              $region62: #{tpu_custom_call.1} parent=47 // loop_exit
                _
            $region48: #{tpu_custom_call.1} parent=39 // pred_fallthru
              _
          $region40: #{tpu_custom_call.1} parent=35 // pred_fallthru
            _
          %2265 = vnop
        $region36: #{tpu_custom_call.1} parent=31 // pred_fallthru
          _
      $region32: #{tpu_custom_call.1} parent=5 // pred_fallthru
        _
      %p2266 = scmp.le.s32.totalorder 2, %s9
      // Predicated region
      $region85: #{tpu_custom_call.1} parent=5 // pred_check
        %p2267 = pneg %p2266
      $region86: #{tpu_custom_call.1} parent=5 // pred_check_branch
        %2269 = sbr.rel (%p2267) target = $region88
      $region87: #{tpu_custom_call.1} parent=5 // pred_region
        %s2270 = ssub.s32 %s9, 2
        // Predicated region
        $region89: #{tpu_custom_call.1} parent=87 // pred_check
          %p2271 = pneg %p130
        $region90: #{tpu_custom_call.1} parent=87 // pred_check_branch
          %2273 = sbr.rel (%p2271) target = $region92
        $region91: #{tpu_custom_call.1} parent=87 // pred_region
          %s2274 = sand.u32 %s115, 1
          %s2275 = sand.u32 %s115, 1
          %s2276 = smul.addr %s2275, 128
          %s2277 = scalar_lea.vmem [#allocation2], %s2276
        $region92: #{tpu_custom_call.1} parent=87 // pred_fallthru
          _
      $region88: #{tpu_custom_call.1} parent=5 // pred_fallthru
        _
    $region6: #{tpu_custom_call.1} parent=1 // loop_footer
      %s13 = sadd.s32 1, %s9
    $region7: #{tpu_custom_call.1} parent=1 // loop_footer_branch
      %8 = sbr.rel target = $region3
    $region8: #{tpu_custom_call.1} parent=1 // loop_exit
      _

// kernel: tpu_custom_call.1
$region0: #{tpu_custom_call.1}
  #allocation0 [shape = 'u32[]', space=smem, size = 0x4, offset = 0x4, fixed_abs, tag = 'smem constant byte address 0x4 - core index']
  #allocation1 [shape = 'u32[144,128]{1,0:T(1,128)}', space=vmem, size = 0x12000, scoped, tag = 'internal scratch']
  %s0 = inlined_call_operand.vmem [shape: f32[200,32], index: 0, kind: input, shape index: {}]
  %s1 = inlined_call_operand.vmem [shape: bf16[32,64], index: 1, kind: input, shape index: {}]
  %s2 = inlined_call_operand.vmem [shape: f32[1,64], index: 2, kind: input, shape index: {}]
  %s3 = inlined_call_operand.vmem [shape: f32[200,64], index: 3, kind: output, shape index: {}]
  %s4 = sld [smem:[#allocation0]]
  $region93: #{tpu_custom_call.1} parent=0
    _
  %s6 = ssub.s32 1, %s4
  %s7 = scalar_select 0, %s6, %s4
  $region1: #{tpu_custom_call.1} parent=0
    #allocation2 [shape = 'u8[131072]{0}', space=vmem, size = 0x20000, scoped, tag = 'output window, operand 0']
    loop: start=0, step=1, limit=4
    $region2: #{tpu_custom_call.1} parent=1 // loop_pre_header
      _
    $region3: #{tpu_custom_call.1} parent=1 // loop_header
      %s9 = sphi 0, %s13
      %p10 = scmp.ge.s32.totalorder %s9, 4
      %s16 = sphi 0, %s28
      %s17 = sphi 0, %s24
      %s18 = sphi 0, %s16
      %s19 = sphi 0, %s17
      %s20 = sphi 0, %s18
      %s21 = sphi 0, %s19
      %s31 = sphi 0, %s33
      %s34 = sphi 0, %s31
      %s35 = sphi 0, %s34
      %s51 = sphi 0, %s35
      %s57 = sphi 0, %s59
      %s60 = sphi 0, %s57
      %s61 = sphi 0, %s60
      %s77 = sphi 0, %s61
      %s83 = sphi 0, %s85
      %s86 = sphi 0, %s83
      %s87 = sphi 0, %s86
      %s103 = sphi 0, %s87
      %s111 = sphi 0, %s113
      %s114 = sphi 0, %s111
      %s115 = sphi 0, %s114
      %s131 = sphi 0, %s115
    $region4: #{tpu_custom_call.1} parent=1 // loop_header_branch
      %12 = sbr.rel (%p10) target = $region8
    $region5: #{tpu_custom_call.1} parent=1 // loop_body
      %s14 = ssub.s32 %s9, 1
      %s15 = ssub.s32 %s9, 2
      %s22 = sadd.s32 1, %s17
      %p23 = scmp.ge.s32.totalorder %s22, 2
      %s24 = scalar_select %p23, 0, %s22
      %s25 = sadd.s32 1, %s16
      %s26 = scalar_select %p23, %s25, %s16
      %p27 = scmp.ge.s32.totalorder %s26, 1
      %s28 = scalar_select %p27, 0, %s26
      %s29 = ssub.s32 %s17, %s24
      %p30 = scmp.eq.s32.totalorder %s29, 0
      %s32 = sadd.s32 %s31, 1
      %s33 = scalar_select %p30, %s31, %s32
      %p36 = pneg %p30
      %p37 = scmp.eq.s32.totalorder %s9, 1
      %p38 = por %p36, %p37
      %p39 = scmp.ne.s32.totalorder %s31, %s34
      %p40 = scmp.eq.s32.totalorder %s9, 0
      %p41 = por %p39, %p40
      %p42 = scmp.ne.s32.totalorder %s31, %s34
      %p43 = scmp.eq.s32.totalorder %s14, 1
      %p44 = por %p42, %p43
      %p45 = scmp.ne.s32.totalorder %s34, %s35
      %p46 = scmp.eq.s32.totalorder %s14, 0
      %p47 = por %p45, %p46
      %p48 = scmp.ne.s32.totalorder %s34, %s35
      %p49 = scmp.eq.s32.totalorder %s15, 1
      %p50 = por %p48, %p49
      %p52 = scmp.ne.s32.totalorder %s35, %s51
      %p53 = scmp.eq.s32.totalorder %s15, 0
      %p54 = por %p52, %p53
      %s55 = ssub.s32 %s16, %s28
      %p56 = scmp.eq.s32.totalorder %s55, 0
      %s58 = sadd.s32 %s57, 1
      %s59 = scalar_select %p56, %s57, %s58
      %p62 = pneg %p56
      %p63 = scmp.eq.s32.totalorder %s9, 1
      %p64 = por %p62, %p63
      %p65 = scmp.ne.s32.totalorder %s57, %s60
      %p66 = scmp.eq.s32.totalorder %s9, 0
      %p67 = por %p65, %p66
      %p68 = scmp.ne.s32.totalorder %s57, %s60
      %p69 = scmp.eq.s32.totalorder %s14, 1
      %p70 = por %p68, %p69
      %p71 = scmp.ne.s32.totalorder %s60, %s61
      %p72 = scmp.eq.s32.totalorder %s14, 0
      %p73 = por %p71, %p72
      %p74 = scmp.ne.s32.totalorder %s60, %s61
      %p75 = scmp.eq.s32.totalorder %s15, 1
      %p76 = por %p74, %p75
      %p78 = scmp.ne.s32.totalorder %s61, %s77
      %p79 = scmp.eq.s32.totalorder %s15, 0
      %p80 = por %p78, %p79
      %s81 = ssub.s32 %s16, %s28
      %p82 = scmp.eq.s32.totalorder %s81, 0
      %s84 = sadd.s32 %s83, 1
      %s85 = scalar_select %p82, %s83, %s84
      %p88 = pneg %p82
      %p89 = scmp.eq.s32.totalorder %s9, 1
      %p90 = por %p88, %p89
      %p91 = scmp.ne.s32.totalorder %s83, %s86
      %p92 = scmp.eq.s32.totalorder %s9, 0
      %p93 = por %p91, %p92
      %p94 = scmp.ne.s32.totalorder %s83, %s86
      %p95 = scmp.eq.s32.totalorder %s14, 1
      %p96 = por %p94, %p95
      %p97 = scmp.ne.s32.totalorder %s86, %s87
      %p98 = scmp.eq.s32.totalorder %s14, 0
      %p99 = por %p97, %p98
      %p100 = scmp.ne.s32.totalorder %s86, %s87
      %p101 = scmp.eq.s32.totalorder %s15, 1
      %p102 = por %p100, %p101
      %p104 = scmp.ne.s32.totalorder %s87, %s103
      %p105 = scmp.eq.s32.totalorder %s15, 0
      %p106 = por %p104, %p105
      %s107 = ssub.s32 %s17, %s24
      %s108 = ssub.s32 %s16, %s28
      %s109 = sor.u32 %s107, %s108
      %p110 = scmp.eq.s32.totalorder %s109, 0
      %s112 = sadd.s32 %s111, 1
      %s113 = scalar_select %p110, %s111, %s112
      %p116 = pneg %p110
      %p117 = scmp.eq.s32.totalorder %s9, 1
      %p118 = por %p116, %p117
      %p119 = scmp.ne.s32.totalorder %s111, %s114
      %p120 = scmp.eq.s32.totalorder %s9, 0
      %p121 = por %p119, %p120
      %p122 = scmp.ne.s32.totalorder %s111, %s114
      %p123 = scmp.eq.s32.totalorder %s14, 1
      %p124 = por %p122, %p123
      %p125 = scmp.ne.s32.totalorder %s114, %s115
      %p126 = scmp.eq.s32.totalorder %s14, 0
      %p127 = por %p125, %p126
      %p128 = scmp.ne.s32.totalorder %s114, %s115
      %p129 = scmp.eq.s32.totalorder %s15, 1
      %p130 = por %p128, %p129
      %p132 = scmp.ne.s32.totalorder %s115, %s131
      %p133 = scmp.eq.s32.totalorder %s15, 0
      %p134 = por %p132, %p133
      %p135 = scmp.le.s32.totalorder 1, %s9
      %p136 = scmp.lt.s32.totalorder %s9, 3
      %p137 = pnand %p135, %p136
      %p138 = pneg %p137
      // Predicated region
      $region9: #{tpu_custom_call.1} parent=5 // pred_check
        _
      $region10: #{tpu_custom_call.1} parent=5 // pred_check_branch
        %140 = sbr.rel (%p137) target = $region12
      $region11: #{tpu_custom_call.1} parent=5 // pred_region
        %s141 = ssub.s32 %s9, 1
        // Predicated region
        $region13: #{tpu_custom_call.1} parent=11 // pred_check
          %p142 = pneg %p73
        $region14: #{tpu_custom_call.1} parent=11 // pred_check_branch
          %144 = sbr.rel (%p142) target = $region16
        $region15: #{tpu_custom_call.1} parent=11 // pred_region
          %p145 = scmp.lt.s32.totalorder %s18, 0
          %s146 = scalar_select %p145, %s18, 0
          %s147 = smul.addr %s146, 4
          %s148 = scalar_lea.vmem %s1, %s147
        $region16: #{tpu_custom_call.1} parent=11 // pred_fallthru
          _
        // Predicated region
        $region17: #{tpu_custom_call.1} parent=11 // pred_check
          %p149 = pneg %p99
        $region18: #{tpu_custom_call.1} parent=11 // pred_check_branch
          %151 = sbr.rel (%p149) target = $region20
        $region19: #{tpu_custom_call.1} parent=11 // pred_region
          %p152 = scmp.lt.s32.totalorder %s18, 0
          %s153 = scalar_select %p152, %s18, 0
          %s154 = scalar_lea.vmem %s2, %s153
        $region20: #{tpu_custom_call.1} parent=11 // pred_fallthru
          _
      $region12: #{tpu_custom_call.1} parent=5 // pred_fallthru
        _
      %p155 = scmp.lt.s32.totalorder %s9, 2
      // Predicated region
      $region21: #{tpu_custom_call.1} parent=5 // pred_check
        %p156 = pneg %p155
      $region22: #{tpu_custom_call.1} parent=5 // pred_check_branch
        %158 = sbr.rel (%p156) target = $region24
      $region23: #{tpu_custom_call.1} parent=5 // pred_region
        // Predicated region
        $region25: #{tpu_custom_call.1} parent=23 // pred_check
          %p159 = pneg %p41
        $region26: #{tpu_custom_call.1} parent=23 // pred_check_branch
          %161 = sbr.rel (%p159) target = $region28
        $region27: #{tpu_custom_call.1} parent=23 // pred_region
          %s162 = smul.u32 16, %s17
          %s163 = ssub.s32 25, %s162
          %p164 = scmp.lt.s32.totalorder %s163, 16
          %s165 = scalar_select %p164, %s163, 16
          %s166 = smul.u32 128, %s165
          %p167 = scmp.lt.s32.totalorder %s162, 24
          %s168 = scalar_select %p167, %s162, 24
          %s169 = smul.addr %s168, 8
          %s170 = scalar_lea.vmem %s0, %s169
          %s171 = smul.u32 16, %s17
          %s172 = ssub.s32 25, %s171
          %p173 = scmp.lt.s32.totalorder %s172, 16
          %s174 = scalar_select %p173, %s172, 16
          %s175 = smul.u32 128, %s174
        $region28: #{tpu_custom_call.1} parent=23 // pred_fallthru
          _
      $region24: #{tpu_custom_call.1} parent=5 // pred_fallthru
        _
      %p176 = scmp.le.s32.totalorder 1, %s9
      %p177 = scmp.lt.s32.totalorder %s9, 3
      %p178 = pnand %p176, %p177
      %p179 = pneg %p178
      // Predicated region
      $region29: #{tpu_custom_call.1} parent=5 // pred_check
        _
      $region30: #{tpu_custom_call.1} parent=5 // pred_check_branch
        %181 = sbr.rel (%p178) target = $region32
      $region31: #{tpu_custom_call.1} parent=5 // pred_region
        %s182 = ssub.s32 %s9, 1
        %s183 = smul.u32 16, %s19
        %s184 = ssub.s32 25, %s183
        %p185 = scmp.lt.s32.totalorder %s184, 16
        %s186 = scalar_select %p185, %s184, 16
        %s187 = smul.u32 128, %s186
        %p188 = scmp.lt.s32.totalorder %s183, 24
        %s189 = scalar_select %p188, %s183, 24
        %s190 = smul.addr %s189, 8
        %s191 = scalar_lea.vmem %s0, %s190
        %p192 = pneg %p47
        %p193 = pneg %p44
        %p194 = scmp.lt.s32.totalorder %s18, 0
        %s195 = scalar_select %p194, %s18, 0
        %s196 = smul.addr %s195, 4
        %s197 = scalar_lea.vmem %s1, %s196
        %p198 = pneg %p73
        %p199 = pneg %p70
        %p200 = scmp.lt.s32.totalorder %s18, 0
        %s201 = scalar_select %p200, %s18, 0
        %s202 = scalar_lea.vmem %s2, %s201
        %p203 = pneg %p99
        %p204 = pneg %p96
        %p205 = pneg %p127
        %p206 = pneg %p124
        %s207 = sand.u32 %s114, 1
        %s208 = sand.u32 %s114, 1
        %s209 = smul.addr %s208, 128
        %s210 = scalar_lea.vmem [#allocation2], %s209
        %s211 = smul.u32 16, %s19
        %s212 = ssub.s32 25, %s211
        %p213 = scmp.lt.s32.totalorder %s212, 16
        %s214 = scalar_select %p213, %s212, 16
        %s215 = smul.u32 128, %s214
        %p216 = scmp.lt.s32.totalorder %s211, 24
        %s217 = scalar_select %p216, %s211, 24
        %s218 = smul.addr %s217, 8
        %s219 = scalar_lea.vmem %s0, %s218
        %s220 = smul.u32 16, %s19
        %s221 = ssub.s32 25, %s220
        %p222 = scmp.lt.s32.totalorder %s221, 16
        %s223 = scalar_select %p222, %s221, 16
        %s224 = smul.u32 128, %s223
        %p225 = scmp.lt.s32.totalorder %s18, 0
        %s226 = scalar_select %p225, %s18, 0
        %s227 = smul.addr %s226, 4
        %s228 = scalar_lea.vmem %s1, %s227
        %p229 = scmp.lt.s32.totalorder %s18, 0
        %s230 = scalar_select %p229, %s18, 0
        %s231 = scalar_lea.vmem %s2, %s230
        %s232 = smul.u32 16, %s19
        %s233 = ssub.s32 25, %s232
        %p234 = scmp.lt.s32.totalorder %s233, 16
        %s235 = scalar_select %p234, %s233, 16
        %s236 = smul.u32 128, %s235
        %v238 = vld [vmem:[%s219] sm:$0xff]
        %v239 = vld [vmem:[%s219 + $0x8] sm:$0xff]
        %v240 = vld [vmem:[%s219 + $0x10] sm:$0xff]
        %v241 = vld [vmem:[%s219 + $0x18] sm:$0xff]
        %v242 = vld [vmem:[%s219 + $0x20] sm:$0xff]
        %v243 = vld [vmem:[%s219 + $0x28] sm:$0xff]
        %v244 = vld [vmem:[%s219 + $0x30] sm:$0xff]
        %v245 = vld [vmem:[%s219 + $0x38] sm:$0xff]
        %v246 = vld [vmem:[%s219 + $0x40] sm:$0xff]
        %v247 = vld [vmem:[%s219 + $0x48] sm:$0xff]
        %v248 = vld [vmem:[%s219 + $0x50] sm:$0xff]
        %v249 = vld [vmem:[%s219 + $0x58] sm:$0xff]
        %v250 = vld [vmem:[%s219 + $0x60] sm:$0xff]
        %v251 = vld [vmem:[%s219 + $0x68] sm:$0xff]
        %v252 = vld [vmem:[%s219 + $0x70] sm:$0xff]
        %v253 = vld [vmem:[%s219 + $0x78] sm:$0xff]
        %v254 = vpack.c.bf16 %v239, %v238
        %v255 = vpack.c.bf16 %v241, %v240
        %v256 = vpack.c.bf16 %v243, %v242
        %v257 = vpack.c.bf16 %v245, %v244
        %v258 = vpack.c.bf16 %v247, %v246
        %v259 = vpack.c.bf16 %v249, %v248
        %v260 = vpack.c.bf16 %v251, %v250
        %v261 = vpack.c.bf16 %v253, %v252
        %v262 = vld [vmem:[%s228] sm:$0xf]
        %v263 = vld [vmem:[%s228 + $0x4] sm:$0xf]
        %v264 = vld [vmem:[%s228 + $0x8] sm:$0xf]
        %v265 = vld [vmem:[%s228 + $0xc] sm:$0xf]
        %v266 = vld [vmem:[%s231] sm:$0x1]
        %v268 = vlaneseq
        %v269 = vshrl.u32 %v268, 7
        %v270 = vsub.s32 0, %v269
        %v271 = vrot.slane %v266, %v270
        %v277 = vunpack.c.l.b16 %v262
        %v278 = vunpack.c.l.b16 %v263
        %v279 = vunpack.c.l.b16 %v264
        %v280 = vunpack.c.l.b16 %v265
        %v281 = vpack.c.b16 %v278, %v277
        %v282 = vpack.c.b16 %v280, %v279
        %vm285 = vcmask 261120
        %v287 = vsel %vm285, %v254, 0
        %v290 = vsel %vm285, %v255, 0
        %v293 = vsel %vm285, %v256, 0
        %v296 = vsel %vm285, %v257, 0
        %v299 = vsel %vm285, %v258, 0
        %v302 = vsel %vm285, %v259, 0
        %v305 = vsel %vm285, %v260, 0
        %v308 = vsel %vm285, %v261, 0
        %310 = vmatprep.subr.bf16.mxu0 0
        %311 = vmatpush1.bf16.msra.mxu0 0
        %312 = vmatprep.subr.bf16.mxu0 0
        %313 = vmatpush1.bf16.msra.mxu0 0
        %314 = vmatprep.subr.bf16.mxu0 0
        %315 = vmatpush1.bf16.msra.mxu0 0
        %316 = vmatprep.subr.bf16.mxu0 0
        %317 = vmatpush1.bf16.msra.mxu0 0
        %318 = vmatprep.subr.bf16.mxu0 0
        %319 = vmatpush1.bf16.msra.mxu0 0
        %320 = vmatprep.subr.bf16.mxu0 0
        %321 = vmatpush1.bf16.msra.mxu0 0
        %322 = vmatprep.subr.bf16.mxu0 0
        %323 = vmatpush1.bf16.msra.mxu0 %v282
        %324 = vmatprep.subr.bf16.mxu0 0
        %325 = vmatpush1.bf16.msra.mxu0 %v281
        %326 = vmatprep.subr.bf16.mxu0 0
        %327 = vmatpush2.bf16.msra.mxu0 0
        %328 = vmatprep.subr.bf16.mxu0 0
        %329 = vmatpush2.bf16.msra.mxu0 0
        %330 = vmatprep.subr.bf16.mxu0 0
        %331 = vmatpush2.bf16.msra.mxu0 0
        %332 = vmatprep.subr.bf16.mxu0 0
        %333 = vmatpush2.bf16.msra.mxu0 0
        %334 = vmatprep.subr.bf16.mxu0 0
        %335 = vmatpush2.bf16.msra.mxu0 0
        %336 = vmatprep.subr.bf16.mxu0 0
        %337 = vmatpush2.bf16.msra.mxu0 0
        %338 = vmatprep.subr.bf16.mxu0 0
        %339 = vmatpush2.bf16.msra.mxu0 0
        %340 = vmatprep.subr.bf16.mxu0 0
        %341 = vmatpush2.bf16.msra.mxu0 0
        %342 = vmatprep.mubr.bf16.mxu0 0
        %343 = vmatmul.mubr.bf16.gmra.mxu0 %v287
        %v344 = vpop.f32.mrf.mxu0
        %v345 = vadd.f32 %v271, %v344
        %v346 = vpop.f32.mrf.mxu0
        %v347 = vpop.f32.mrf.mxu0
        %v348 = vadd.f32 %v271, %v347
        %v349 = vpop.f32.mrf.mxu0
        %350 = vmatprep.mubr.bf16.mxu0 0
        %351 = vmatmul.mubr.bf16.gmra.mxu0 %v290
        %v352 = vpop.f32.mrf.mxu0
        %v353 = vadd.f32 %v271, %v352
        %v354 = vpop.f32.mrf.mxu0
        %v355 = vpop.f32.mrf.mxu0
        %v356 = vadd.f32 %v271, %v355
        %v357 = vpop.f32.mrf.mxu0
        %358 = vmatprep.mubr.bf16.mxu0 0
        %359 = vmatmul.mubr.bf16.gmra.mxu0 %v293
        %v360 = vpop.f32.mrf.mxu0
        %v361 = vadd.f32 %v271, %v360
        %v362 = vpop.f32.mrf.mxu0
        %v363 = vpop.f32.mrf.mxu0
        %v364 = vadd.f32 %v271, %v363
        %v365 = vpop.f32.mrf.mxu0
        %366 = vmatprep.mubr.bf16.mxu0 0
        %367 = vmatmul.mubr.bf16.gmra.mxu0 %v296
        %v368 = vpop.f32.mrf.mxu0
        %v369 = vadd.f32 %v271, %v368
        %v370 = vpop.f32.mrf.mxu0
        %v371 = vpop.f32.mrf.mxu0
        %v372 = vadd.f32 %v271, %v371
        %v373 = vpop.f32.mrf.mxu0
        %374 = vmatprep.mubr.bf16.mxu0 0
        %375 = vmatmul.mubr.bf16.gmra.mxu0 %v299
        %v376 = vpop.f32.mrf.mxu0
        %v377 = vadd.f32 %v271, %v376
        %v378 = vpop.f32.mrf.mxu0
        %v379 = vpop.f32.mrf.mxu0
        %v380 = vadd.f32 %v271, %v379
        %v381 = vpop.f32.mrf.mxu0
        %382 = vmatprep.mubr.bf16.mxu0 0
        %383 = vmatmul.mubr.bf16.gmra.mxu0 %v302
        %v384 = vpop.f32.mrf.mxu0
        %v385 = vadd.f32 %v271, %v384
        %v386 = vpop.f32.mrf.mxu0
        %v387 = vpop.f32.mrf.mxu0
        %v388 = vadd.f32 %v271, %v387
        %v389 = vpop.f32.mrf.mxu0
        %390 = vmatprep.mubr.bf16.mxu0 0
        %391 = vmatmul.mubr.bf16.gmra.mxu0 %v305
        %v392 = vpop.f32.mrf.mxu0
        %v393 = vadd.f32 %v271, %v392
        %v394 = vpop.f32.mrf.mxu0
        %v395 = vpop.f32.mrf.mxu0
        %v396 = vadd.f32 %v271, %v395
        %v397 = vpop.f32.mrf.mxu0
        %398 = vmatprep.mubr.bf16.mxu0 0
        %399 = vmatmul.mubr.bf16.gmra.mxu0 %v308
        %v400 = vpop.f32.mrf.mxu0
        %v401 = vadd.f32 %v271, %v400
        %v402 = vpop.f32.mrf.mxu0
        %v403 = vpop.f32.mrf.mxu0
        %v404 = vadd.f32 %v271, %v403
        %v405 = vpop.f32.mrf.mxu0
        %406 = vdwg.mxu0
        %v407 = vand.u32 2147483647, %v345
        %vm408 = vcmp.le.f32.partialorder %v407, 0.7853982
        %vm409 = vcmp.lt.s32.totalorder %v345, 0
        %v410 = vand.u32 %v345, 2139095040
        %v411 = vshrl.u32 %v410, 23
        %v412 = vsub.s32 %v411, 127
        %v413 = vand.u32 2147483647, %v345
        %v414 = vand.u32 %v413, 8388607
        %v415 = vor.u32 %v414, 8388608
        %v416 = vsub.s32 0, %v415
        %v417 = vadd.s32 %v412, 1
        %vm418 = vcmp.gt.s32.totalorder %v417, 0
        %v419 = vsel %vm418, %v417, 0
        %v420 = vshrl.u32 %v419, 5
        %v421 = vand.u32 %v419, 31
        %v422 = vsub.s32 32, %v421
        %v423 = vshrl.u32 683565275, %v422
        %v424 = vshll.u32 683565275, %v421
        %v425 = vshrl.u32 2475754826, %v422
        %v426 = vor.u32 %v424, %v425
        %v427 = vshll.u32 2475754826, %v421
        %v428 = vshrl.u32 2131351028, %v422
        %v429 = vor.u32 %v427, %v428
        %v430 = vshll.u32 2131351028, %v421
        %v431 = vshrl.u32 2102212464, %v422
        %v432 = vor.u32 %v430, %v431
        %v433 = vshll.u32 2102212464, %v421
        %v434 = vshrl.u32 920167782, %v422
        %v435 = vor.u32 %v433, %v434
        %v436 = vshll.u32 920167782, %v421
        %v437 = vshrl.u32 1326507024, %v422
        %v438 = vor.u32 %v436, %v437
        %vm439 = vcmp.lt.s32.totalorder %v420, 1
        %vm440 = vcmp.lt.s32.totalorder %v420, 2
        %vm441 = vcmp.lt.s32.totalorder %v420, 3
        %vm442 = vcmp.lt.s32.totalorder %v420, 4
        %v443 = vsel %vm439, %v423, %v426
        %v444 = vsel %vm442, %v432, 2102212464
        %v445 = vsel %vm441, %v429, %v444
        %v446 = vsel %vm440, %v443, %v445
        %v447 = vsel %vm439, %v426, %v429
        %v448 = vsel %vm442, %v435, 920167782
        %v449 = vsel %vm441, %v432, %v448
        %v450 = vsel %vm440, %v447, %v449
        %v451 = vsel %vm439, %v429, %v432
        %v452 = vsel %vm442, %v438, 1326507024
        %v453 = vsel %vm441, %v435, %v452
        %v454 = vsel %vm440, %v451, %v453
        %v455 = vshll.u32 %v415, 8
        %v456 = vmul.u32.u64.compose %v455, %v454
        %v457 = vextract.low.u32 %v456
        %v458 = vextract.high.u32 %v456
        %v459 = vmul.u32.u64.compose %v455, %v450
        %v460 = vextract.low.u32 %v459
        %v461 = vextract.high.u32 %v459
        %v462 = vmul.u32 %v455, %v446
        %v463 = vadd.s32 %v458, %v460
        %vm464 = vc.u32 %v458, %v460
        %v465 = vadd.s32 %v461, 1
        %v466 = vsel %vm464, %v465, %v461
        %v467 = vadd.s32 %v462, %v466
        %v468 = vadd.s32 %v467, 536870912
        %v469 = vshrl.u32 %v468, 30
        %v470 = vshll.u32 %v469, 30
        %v471 = vsub.s32 %v467, %v470
        %vm472 = vcmp.lt.s32.totalorder %v471, 0
        %v473 = vsub.s32 0, %v471
        %v474 = vsel %vm472, %v473, %v471
        %v475 = vclz %v474
        %v476 = vsub.s32 %v475, 2
        %vm477 = vcmp.gt.s32.totalorder 0, %v476
        %v478 = vsel %vm477, 0, %v476
        %v479 = vsub.s32 32, %v478
        %v480 = vshll.u32 %v471, %v478
        %v481 = vshrl.u32 %v463, %v479
        %v482 = vor.u32 %v480, %v481
        %v483 = vsub.s32 4294967266, %v478
        %v484 = vadd.s32 %v483, 127
        %v485 = vshll.u32 %v484, 23
        %v486 = vor.u32 4788187, %v485
        %v487 = vand.u32 2147483647, %v486
        %v489 = vcvt.s32.f32 %v482
        %v490 = vmul.f32 %v489, %v487
        %v491 = vxor.u32 %v490, 2147483648
        %v492 = vsel %vm409, %v491, %v490
        %v493 = vsub.s32 4, %v469
        %v494 = vsel %vm409, %v493, %v469
        %v495 = vsel %vm408, %v345, %v492
        %v496 = vsel %vm408, 0, %v494
        %v497 = vcosq.f32.pop %v495
        %v498 = vsinq.f32.pop %v495
        %vm499 = vweird.f32 %v345
        %v500 = vadd.s32 %v496, 3
        %v501 = vand.u32 %v500, 3
        %vm502 = vcmp.lt.s32.totalorder %v501, 2
        %vm503 = vcmp.eq.s32.totalorder %v501, 0
        %v504 = vxor.u32 %v498, 2147483648
        %v505 = vsel %vm503, %v497, %v504
        %vm506 = vcmp.eq.s32.totalorder %v501, 2
        %v507 = vxor.u32 %v497, 2147483648
        %v508 = vsel %vm506, %v507, %v498
        %v509 = vsel %vm502, %v505, %v508
        %v510 = vsel %vm499, nan, %v509
        %v511 = vand.u32 2147483647, %v348
        %vm512 = vcmp.le.f32.partialorder %v511, 0.7853982
        %vm513 = vcmp.lt.s32.totalorder %v348, 0
        %v514 = vand.u32 %v348, 2139095040
        %v515 = vshrl.u32 %v514, 23
        %v516 = vsub.s32 %v515, 127
        %v517 = vand.u32 2147483647, %v348
        %v518 = vand.u32 %v517, 8388607
        %v519 = vor.u32 %v518, 8388608
        %v520 = vsub.s32 0, %v519
        %v521 = vadd.s32 %v516, 1
        %vm522 = vcmp.gt.s32.totalorder %v521, 0
        %v523 = vsel %vm522, %v521, 0
        %v524 = vshrl.u32 %v523, 5
        %v525 = vand.u32 %v523, 31
        %v526 = vsub.s32 32, %v525
        %v527 = vshrl.u32 683565275, %v526
        %v528 = vshll.u32 683565275, %v525
        %v529 = vshrl.u32 2475754826, %v526
        %v530 = vor.u32 %v528, %v529
        %v531 = vshll.u32 2475754826, %v525
        %v532 = vshrl.u32 2131351028, %v526
        %v533 = vor.u32 %v531, %v532
        %v534 = vshll.u32 2131351028, %v525
        %v535 = vshrl.u32 2102212464, %v526
        %v536 = vor.u32 %v534, %v535
        %v537 = vshll.u32 2102212464, %v525
        %v538 = vshrl.u32 920167782, %v526
        %v539 = vor.u32 %v537, %v538
        %v540 = vshll.u32 920167782, %v525
        %v541 = vshrl.u32 1326507024, %v526
        %v542 = vor.u32 %v540, %v541
        %vm543 = vcmp.lt.s32.totalorder %v524, 1
        %vm544 = vcmp.lt.s32.totalorder %v524, 2
        %vm545 = vcmp.lt.s32.totalorder %v524, 3
        %vm546 = vcmp.lt.s32.totalorder %v524, 4
        %v547 = vsel %vm543, %v527, %v530
        %v548 = vsel %vm546, %v536, 2102212464
        %v549 = vsel %vm545, %v533, %v548
        %v550 = vsel %vm544, %v547, %v549
        %v551 = vsel %vm543, %v530, %v533
        %v552 = vsel %vm546, %v539, 920167782
        %v553 = vsel %vm545, %v536, %v552
        %v554 = vsel %vm544, %v551, %v553
        %v555 = vsel %vm543, %v533, %v536
        %v556 = vsel %vm546, %v542, 1326507024
        %v557 = vsel %vm545, %v539, %v556
        %v558 = vsel %vm544, %v555, %v557
        %v559 = vshll.u32 %v519, 8
        %v560 = vmul.u32.u64.compose %v559, %v558
        %v561 = vextract.low.u32 %v560
        %v562 = vextract.high.u32 %v560
        %v563 = vmul.u32.u64.compose %v559, %v554
        %v564 = vextract.low.u32 %v563
        %v565 = vextract.high.u32 %v563
        %v566 = vmul.u32 %v559, %v550
        %v567 = vadd.s32 %v562, %v564
        %vm568 = vc.u32 %v562, %v564
        %v569 = vadd.s32 %v565, 1
        %v570 = vsel %vm568, %v569, %v565
        %v571 = vadd.s32 %v566, %v570
        %v572 = vadd.s32 %v571, 536870912
        %v573 = vshrl.u32 %v572, 30
        %v574 = vshll.u32 %v573, 30
        %v575 = vsub.s32 %v571, %v574
        %vm576 = vcmp.lt.s32.totalorder %v575, 0
        %v577 = vsub.s32 0, %v575
        %v578 = vsel %vm576, %v577, %v575
        %v579 = vclz %v578
        %v580 = vsub.s32 %v579, 2
        %vm581 = vcmp.gt.s32.totalorder 0, %v580
        %v582 = vsel %vm581, 0, %v580
        %v583 = vsub.s32 32, %v582
        %v584 = vshll.u32 %v575, %v582
        %v585 = vshrl.u32 %v567, %v583
        %v586 = vor.u32 %v584, %v585
        %v587 = vsub.s32 4294967266, %v582
        %v588 = vadd.s32 %v587, 127
        %v589 = vshll.u32 %v588, 23
        %v590 = vor.u32 4788187, %v589
        %v591 = vand.u32 2147483647, %v590
        %v593 = vcvt.s32.f32 %v586
        %v594 = vmul.f32 %v593, %v591
        %v595 = vxor.u32 %v594, 2147483648
        %v596 = vsel %vm513, %v595, %v594
        %v597 = vsub.s32 4, %v573
        %v598 = vsel %vm513, %v597, %v573
        %v599 = vsel %vm512, %v348, %v596
        %v600 = vsel %vm512, 0, %v598
        %v601 = vcosq.f32.pop %v599
        %v602 = vsinq.f32.pop %v599
        %vm603 = vweird.f32 %v348
        %v604 = vadd.s32 %v600, 3
        %v605 = vand.u32 %v604, 3
        %vm606 = vcmp.lt.s32.totalorder %v605, 2
        %vm607 = vcmp.eq.s32.totalorder %v605, 0
        %v608 = vxor.u32 %v602, 2147483648
        %v609 = vsel %vm607, %v601, %v608
        %vm610 = vcmp.eq.s32.totalorder %v605, 2
        %v611 = vxor.u32 %v601, 2147483648
        %v612 = vsel %vm610, %v611, %v602
        %v613 = vsel %vm606, %v609, %v612
        %v614 = vsel %vm603, nan, %v613
        %v615 = vand.u32 2147483647, %v353
        %vm616 = vcmp.le.f32.partialorder %v615, 0.7853982
        %vm617 = vcmp.lt.s32.totalorder %v353, 0
        %v618 = vand.u32 %v353, 2139095040
        %v619 = vshrl.u32 %v618, 23
        %v620 = vsub.s32 %v619, 127
        %v621 = vand.u32 2147483647, %v353
        %v622 = vand.u32 %v621, 8388607
        %v623 = vor.u32 %v622, 8388608
        %v624 = vsub.s32 0, %v623
        %v625 = vadd.s32 %v620, 1
        %vm626 = vcmp.gt.s32.totalorder %v625, 0
        %v627 = vsel %vm626, %v625, 0
        %v628 = vshrl.u32 %v627, 5
        %v629 = vand.u32 %v627, 31
        %v630 = vsub.s32 32, %v629
        %v631 = vshrl.u32 683565275, %v630
        %v632 = vshll.u32 683565275, %v629
        %v633 = vshrl.u32 2475754826, %v630
        %v634 = vor.u32 %v632, %v633
        %v635 = vshll.u32 2475754826, %v629
        %v636 = vshrl.u32 2131351028, %v630
        %v637 = vor.u32 %v635, %v636
        %v638 = vshll.u32 2131351028, %v629
        %v639 = vshrl.u32 2102212464, %v630
        %v640 = vor.u32 %v638, %v639
        %v641 = vshll.u32 2102212464, %v629
        %v642 = vshrl.u32 920167782, %v630
        %v643 = vor.u32 %v641, %v642
        %v644 = vshll.u32 920167782, %v629
        %v645 = vshrl.u32 1326507024, %v630
        %v646 = vor.u32 %v644, %v645
        %vm647 = vcmp.lt.s32.totalorder %v628, 1
        %vm648 = vcmp.lt.s32.totalorder %v628, 2
        %vm649 = vcmp.lt.s32.totalorder %v628, 3
        %vm650 = vcmp.lt.s32.totalorder %v628, 4
        %v651 = vsel %vm647, %v631, %v634
        %v652 = vsel %vm650, %v640, 2102212464
        %v653 = vsel %vm649, %v637, %v652
        %v654 = vsel %vm648, %v651, %v653
        %v655 = vsel %vm647, %v634, %v637
        %v656 = vsel %vm650, %v643, 920167782
        %v657 = vsel %vm649, %v640, %v656
        %v658 = vsel %vm648, %v655, %v657
        %v659 = vsel %vm647, %v637, %v640
        %v660 = vsel %vm650, %v646, 1326507024
        %v661 = vsel %vm649, %v643, %v660
        %v662 = vsel %vm648, %v659, %v661
        %v663 = vshll.u32 %v623, 8
        %v664 = vmul.u32.u64.compose %v663, %v662
        %v665 = vextract.low.u32 %v664
        %v666 = vextract.high.u32 %v664
        %v667 = vmul.u32.u64.compose %v663, %v658
        %v668 = vextract.low.u32 %v667
        %v669 = vextract.high.u32 %v667
        %v670 = vmul.u32 %v663, %v654
        %v671 = vadd.s32 %v666, %v668
        %vm672 = vc.u32 %v666, %v668
        %v673 = vadd.s32 %v669, 1
        %v674 = vsel %vm672, %v673, %v669
        %v675 = vadd.s32 %v670, %v674
        %v676 = vadd.s32 %v675, 536870912
        %v677 = vshrl.u32 %v676, 30
        %v678 = vshll.u32 %v677, 30
        %v679 = vsub.s32 %v675, %v678
        %vm680 = vcmp.lt.s32.totalorder %v679, 0
        %v681 = vsub.s32 0, %v679
        %v682 = vsel %vm680, %v681, %v679
        %v683 = vclz %v682
        %v684 = vsub.s32 %v683, 2
        %vm685 = vcmp.gt.s32.totalorder 0, %v684
        %v686 = vsel %vm685, 0, %v684
        %v687 = vsub.s32 32, %v686
        %v688 = vshll.u32 %v679, %v686
        %v689 = vshrl.u32 %v671, %v687
        %v690 = vor.u32 %v688, %v689
        %v691 = vsub.s32 4294967266, %v686
        %v692 = vadd.s32 %v691, 127
        %v693 = vshll.u32 %v692, 23
        %v694 = vor.u32 4788187, %v693
        %v695 = vand.u32 2147483647, %v694
        %v697 = vcvt.s32.f32 %v690
        %v698 = vmul.f32 %v697, %v695
        %v699 = vxor.u32 %v698, 2147483648
        %v700 = vsel %vm617, %v699, %v698
        %v701 = vsub.s32 4, %v677
        %v702 = vsel %vm617, %v701, %v677
        %v703 = vsel %vm616, %v353, %v700
        %v704 = vsel %vm616, 0, %v702
        %v705 = vcosq.f32.pop %v703
        %v706 = vsinq.f32.pop %v703
        %vm707 = vweird.f32 %v353
        %v708 = vadd.s32 %v704, 3
        %v709 = vand.u32 %v708, 3
        %vm710 = vcmp.lt.s32.totalorder %v709, 2
        %vm711 = vcmp.eq.s32.totalorder %v709, 0
        %v712 = vxor.u32 %v706, 2147483648
        %v713 = vsel %vm711, %v705, %v712
        %vm714 = vcmp.eq.s32.totalorder %v709, 2
        %v715 = vxor.u32 %v705, 2147483648
        %v716 = vsel %vm714, %v715, %v706
        %v717 = vsel %vm710, %v713, %v716
        %v718 = vsel %vm707, nan, %v717
        %v719 = vand.u32 2147483647, %v356
        %vm720 = vcmp.le.f32.partialorder %v719, 0.7853982
        %vm721 = vcmp.lt.s32.totalorder %v356, 0
        %v722 = vand.u32 %v356, 2139095040
        %v723 = vshrl.u32 %v722, 23
        %v724 = vsub.s32 %v723, 127
        %v725 = vand.u32 2147483647, %v356
        %v726 = vand.u32 %v725, 8388607
        %v727 = vor.u32 %v726, 8388608
        %v728 = vsub.s32 0, %v727
        %v729 = vadd.s32 %v724, 1
        %vm730 = vcmp.gt.s32.totalorder %v729, 0
        %v731 = vsel %vm730, %v729, 0
        %v732 = vshrl.u32 %v731, 5
        %v733 = vand.u32 %v731, 31
        %v734 = vsub.s32 32, %v733
        %v735 = vshrl.u32 683565275, %v734
        %v736 = vshll.u32 683565275, %v733
        %v737 = vshrl.u32 2475754826, %v734
        %v738 = vor.u32 %v736, %v737
        %v739 = vshll.u32 2475754826, %v733
        %v740 = vshrl.u32 2131351028, %v734
        %v741 = vor.u32 %v739, %v740
        %v742 = vshll.u32 2131351028, %v733
        %v743 = vshrl.u32 2102212464, %v734
        %v744 = vor.u32 %v742, %v743
        %v745 = vshll.u32 2102212464, %v733
        %v746 = vshrl.u32 920167782, %v734
        %v747 = vor.u32 %v745, %v746
        %v748 = vshll.u32 920167782, %v733
        %v749 = vshrl.u32 1326507024, %v734
        %v750 = vor.u32 %v748, %v749
        %vm751 = vcmp.lt.s32.totalorder %v732, 1
        %vm752 = vcmp.lt.s32.totalorder %v732, 2
        %vm753 = vcmp.lt.s32.totalorder %v732, 3
        %vm754 = vcmp.lt.s32.totalorder %v732, 4
        %v755 = vsel %vm751, %v735, %v738
        %v756 = vsel %vm754, %v744, 2102212464
        %v757 = vsel %vm753, %v741, %v756
        %v758 = vsel %vm752, %v755, %v757
        %v759 = vsel %vm751, %v738, %v741
        %v760 = vsel %vm754, %v747, 920167782
        %v761 = vsel %vm753, %v744, %v760
        %v762 = vsel %vm752, %v759, %v761
        %v763 = vsel %vm751, %v741, %v744
        %v764 = vsel %vm754, %v750, 1326507024
        %v765 = vsel %vm753, %v747, %v764
        %v766 = vsel %vm752, %v763, %v765
        %v767 = vshll.u32 %v727, 8
        %v768 = vmul.u32.u64.compose %v767, %v766
        %v769 = vextract.low.u32 %v768
        %v770 = vextract.high.u32 %v768
        %v771 = vmul.u32.u64.compose %v767, %v762
        %v772 = vextract.low.u32 %v771
        %v773 = vextract.high.u32 %v771
        %v774 = vmul.u32 %v767, %v758
        %v775 = vadd.s32 %v770, %v772
        %vm776 = vc.u32 %v770, %v772
        %v777 = vadd.s32 %v773, 1
        %v778 = vsel %vm776, %v777, %v773
        %v779 = vadd.s32 %v774, %v778
        %v780 = vadd.s32 %v779, 536870912
        %v781 = vshrl.u32 %v780, 30
        %v782 = vshll.u32 %v781, 30
        %v783 = vsub.s32 %v779, %v782
        %vm784 = vcmp.lt.s32.totalorder %v783, 0
        %v785 = vsub.s32 0, %v783
        %v786 = vsel %vm784, %v785, %v783
        %v787 = vclz %v786
        %v788 = vsub.s32 %v787, 2
        %vm789 = vcmp.gt.s32.totalorder 0, %v788
        %v790 = vsel %vm789, 0, %v788
        %v791 = vsub.s32 32, %v790
        %v792 = vshll.u32 %v783, %v790
        %v793 = vshrl.u32 %v775, %v791
        %v794 = vor.u32 %v792, %v793
        %v795 = vsub.s32 4294967266, %v790
        %v796 = vadd.s32 %v795, 127
        %v797 = vshll.u32 %v796, 23
        %v798 = vor.u32 4788187, %v797
        %v799 = vand.u32 2147483647, %v798
        %v801 = vcvt.s32.f32 %v794
        %v802 = vmul.f32 %v801, %v799
        %v803 = vxor.u32 %v802, 2147483648
        %v804 = vsel %vm721, %v803, %v802
        %v805 = vsub.s32 4, %v781
        %v806 = vsel %vm721, %v805, %v781
        %v807 = vsel %vm720, %v356, %v804
        %v808 = vsel %vm720, 0, %v806
        %v809 = vcosq.f32.pop %v807
        %v810 = vsinq.f32.pop %v807
        %vm811 = vweird.f32 %v356
        %v812 = vadd.s32 %v808, 3
        %v813 = vand.u32 %v812, 3
        %vm814 = vcmp.lt.s32.totalorder %v813, 2
        %vm815 = vcmp.eq.s32.totalorder %v813, 0
        %v816 = vxor.u32 %v810, 2147483648
        %v817 = vsel %vm815, %v809, %v816
        %vm818 = vcmp.eq.s32.totalorder %v813, 2
        %v819 = vxor.u32 %v809, 2147483648
        %v820 = vsel %vm818, %v819, %v810
        %v821 = vsel %vm814, %v817, %v820
        %v822 = vsel %vm811, nan, %v821
        %v823 = vand.u32 2147483647, %v361
        %vm824 = vcmp.le.f32.partialorder %v823, 0.7853982
        %vm825 = vcmp.lt.s32.totalorder %v361, 0
        %v826 = vand.u32 %v361, 2139095040
        %v827 = vshrl.u32 %v826, 23
        %v828 = vsub.s32 %v827, 127
        %v829 = vand.u32 2147483647, %v361
        %v830 = vand.u32 %v829, 8388607
        %v831 = vor.u32 %v830, 8388608
        %v832 = vsub.s32 0, %v831
        %v833 = vadd.s32 %v828, 1
        %vm834 = vcmp.gt.s32.totalorder %v833, 0
        %v835 = vsel %vm834, %v833, 0
        %v836 = vshrl.u32 %v835, 5
        %v837 = vand.u32 %v835, 31
        %v838 = vsub.s32 32, %v837
        %v839 = vshrl.u32 683565275, %v838
        %v840 = vshll.u32 683565275, %v837
        %v841 = vshrl.u32 2475754826, %v838
        %v842 = vor.u32 %v840, %v841
        %v843 = vshll.u32 2475754826, %v837
        %v844 = vshrl.u32 2131351028, %v838
        %v845 = vor.u32 %v843, %v844
        %v846 = vshll.u32 2131351028, %v837
        %v847 = vshrl.u32 2102212464, %v838
        %v848 = vor.u32 %v846, %v847
        %v849 = vshll.u32 2102212464, %v837
        %v850 = vshrl.u32 920167782, %v838
        %v851 = vor.u32 %v849, %v850
        %v852 = vshll.u32 920167782, %v837
        %v853 = vshrl.u32 1326507024, %v838
        %v854 = vor.u32 %v852, %v853
        %vm855 = vcmp.lt.s32.totalorder %v836, 1
        %vm856 = vcmp.lt.s32.totalorder %v836, 2
        %vm857 = vcmp.lt.s32.totalorder %v836, 3
        %vm858 = vcmp.lt.s32.totalorder %v836, 4
        %v859 = vsel %vm855, %v839, %v842
        %v860 = vsel %vm858, %v848, 2102212464
        %v861 = vsel %vm857, %v845, %v860
        %v862 = vsel %vm856, %v859, %v861
        %v863 = vsel %vm855, %v842, %v845
        %v864 = vsel %vm858, %v851, 920167782
        %v865 = vsel %vm857, %v848, %v864
        %v866 = vsel %vm856, %v863, %v865
        %v867 = vsel %vm855, %v845, %v848
        %v868 = vsel %vm858, %v854, 1326507024
        %v869 = vsel %vm857, %v851, %v868
        %v870 = vsel %vm856, %v867, %v869
        %v871 = vshll.u32 %v831, 8
        %v872 = vmul.u32.u64.compose %v871, %v870
        %v873 = vextract.low.u32 %v872
        %v874 = vextract.high.u32 %v872
        %v875 = vmul.u32.u64.compose %v871, %v866
        %v876 = vextract.low.u32 %v875
        %v877 = vextract.high.u32 %v875
        %v878 = vmul.u32 %v871, %v862
        %v879 = vadd.s32 %v874, %v876
        %vm880 = vc.u32 %v874, %v876
        %v881 = vadd.s32 %v877, 1
        %v882 = vsel %vm880, %v881, %v877
        %v883 = vadd.s32 %v878, %v882
        %v884 = vadd.s32 %v883, 536870912
        %v885 = vshrl.u32 %v884, 30
        %v886 = vshll.u32 %v885, 30
        %v887 = vsub.s32 %v883, %v886
        %vm888 = vcmp.lt.s32.totalorder %v887, 0
        %v889 = vsub.s32 0, %v887
        %v890 = vsel %vm888, %v889, %v887
        %v891 = vclz %v890
        %v892 = vsub.s32 %v891, 2
        %vm893 = vcmp.gt.s32.totalorder 0, %v892
        %v894 = vsel %vm893, 0, %v892
        %v895 = vsub.s32 32, %v894
        %v896 = vshll.u32 %v887, %v894
        %v897 = vshrl.u32 %v879, %v895
        %v898 = vor.u32 %v896, %v897
        %v899 = vsub.s32 4294967266, %v894
        %v900 = vadd.s32 %v899, 127
        %v901 = vshll.u32 %v900, 23
        %v902 = vor.u32 4788187, %v901
        %v903 = vand.u32 2147483647, %v902
        %v905 = vcvt.s32.f32 %v898
        %v906 = vmul.f32 %v905, %v903
        %v907 = vxor.u32 %v906, 2147483648
        %v908 = vsel %vm825, %v907, %v906
        %v909 = vsub.s32 4, %v885
        %v910 = vsel %vm825, %v909, %v885
        %v911 = vsel %vm824, %v361, %v908
        %v912 = vsel %vm824, 0, %v910
        %v913 = vcosq.f32.pop %v911
        %v914 = vsinq.f32.pop %v911
        %vm915 = vweird.f32 %v361
        %v916 = vadd.s32 %v912, 3
        %v917 = vand.u32 %v916, 3
        %vm918 = vcmp.lt.s32.totalorder %v917, 2
        %vm919 = vcmp.eq.s32.totalorder %v917, 0
        %v920 = vxor.u32 %v914, 2147483648
        %v921 = vsel %vm919, %v913, %v920
        %vm922 = vcmp.eq.s32.totalorder %v917, 2
        %v923 = vxor.u32 %v913, 2147483648
        %v924 = vsel %vm922, %v923, %v914
        %v925 = vsel %vm918, %v921, %v924
        %v926 = vsel %vm915, nan, %v925
        %v927 = vand.u32 2147483647, %v364
        %vm928 = vcmp.le.f32.partialorder %v927, 0.7853982
        %vm929 = vcmp.lt.s32.totalorder %v364, 0
        %v930 = vand.u32 %v364, 2139095040
        %v931 = vshrl.u32 %v930, 23
        %v932 = vsub.s32 %v931, 127
        %v933 = vand.u32 2147483647, %v364
        %v934 = vand.u32 %v933, 8388607
        %v935 = vor.u32 %v934, 8388608
        %v936 = vsub.s32 0, %v935
        %v937 = vadd.s32 %v932, 1
        %vm938 = vcmp.gt.s32.totalorder %v937, 0
        %v939 = vsel %vm938, %v937, 0
        %v940 = vshrl.u32 %v939, 5
        %v941 = vand.u32 %v939, 31
        %v942 = vsub.s32 32, %v941
        %v943 = vshrl.u32 683565275, %v942
        %v944 = vshll.u32 683565275, %v941
        %v945 = vshrl.u32 2475754826, %v942
        %v946 = vor.u32 %v944, %v945
        %v947 = vshll.u32 2475754826, %v941
        %v948 = vshrl.u32 2131351028, %v942
        %v949 = vor.u32 %v947, %v948
        %v950 = vshll.u32 2131351028, %v941
        %v951 = vshrl.u32 2102212464, %v942
        %v952 = vor.u32 %v950, %v951
        %v953 = vshll.u32 2102212464, %v941
        %v954 = vshrl.u32 920167782, %v942
        %v955 = vor.u32 %v953, %v954
        %v956 = vshll.u32 920167782, %v941
        %v957 = vshrl.u32 1326507024, %v942
        %v958 = vor.u32 %v956, %v957
        %vm959 = vcmp.lt.s32.totalorder %v940, 1
        %vm960 = vcmp.lt.s32.totalorder %v940, 2
        %vm961 = vcmp.lt.s32.totalorder %v940, 3
        %vm962 = vcmp.lt.s32.totalorder %v940, 4
        %v963 = vsel %vm959, %v943, %v946
        %v964 = vsel %vm962, %v952, 2102212464
        %v965 = vsel %vm961, %v949, %v964
        %v966 = vsel %vm960, %v963, %v965
        %v967 = vsel %vm959, %v946, %v949
        %v968 = vsel %vm962, %v955, 920167782
        %v969 = vsel %vm961, %v952, %v968
        %v970 = vsel %vm960, %v967, %v969
        %v971 = vsel %vm959, %v949, %v952
        %v972 = vsel %vm962, %v958, 1326507024
        %v973 = vsel %vm961, %v955, %v972
        %v974 = vsel %vm960, %v971, %v973
        %v975 = vshll.u32 %v935, 8
        %v976 = vmul.u32.u64.compose %v975, %v974
        %v977 = vextract.low.u32 %v976
        %v978 = vextract.high.u32 %v976
        %v979 = vmul.u32.u64.compose %v975, %v970
        %v980 = vextract.low.u32 %v979
        %v981 = vextract.high.u32 %v979
        %v982 = vmul.u32 %v975, %v966
        %v983 = vadd.s32 %v978, %v980
        %vm984 = vc.u32 %v978, %v980
        %v985 = vadd.s32 %v981, 1
        %v986 = vsel %vm984, %v985, %v981
        %v987 = vadd.s32 %v982, %v986
        %v988 = vadd.s32 %v987, 536870912
        %v989 = vshrl.u32 %v988, 30
        %v990 = vshll.u32 %v989, 30
        %v991 = vsub.s32 %v987, %v990
        %vm992 = vcmp.lt.s32.totalorder %v991, 0
        %v993 = vsub.s32 0, %v991
        %v994 = vsel %vm992, %v993, %v991
        %v995 = vclz %v994
        %v996 = vsub.s32 %v995, 2
        %vm997 = vcmp.gt.s32.totalorder 0, %v996
        %v998 = vsel %vm997, 0, %v996
        %v999 = vsub.s32 32, %v998
        %v1000 = vshll.u32 %v991, %v998
        %v1001 = vshrl.u32 %v983, %v999
        %v1002 = vor.u32 %v1000, %v1001
        %v1003 = vsub.s32 4294967266, %v998
        %v1004 = vadd.s32 %v1003, 127
        %v1005 = vshll.u32 %v1004, 23
        %v1006 = vor.u32 4788187, %v1005
        %v1007 = vand.u32 2147483647, %v1006
        %v1009 = vcvt.s32.f32 %v1002
        %v1010 = vmul.f32 %v1009, %v1007
        %v1011 = vxor.u32 %v1010, 2147483648
        %v1012 = vsel %vm929, %v1011, %v1010
        %v1013 = vsub.s32 4, %v989
        %v1014 = vsel %vm929, %v1013, %v989
        %v1015 = vsel %vm928, %v364, %v1012
        %v1016 = vsel %vm928, 0, %v1014
        %v1017 = vcosq.f32.pop %v1015
        %v1018 = vsinq.f32.pop %v1015
        %vm1019 = vweird.f32 %v364
        %v1020 = vadd.s32 %v1016, 3
        %v1021 = vand.u32 %v1020, 3
        %vm1022 = vcmp.lt.s32.totalorder %v1021, 2
        %vm1023 = vcmp.eq.s32.totalorder %v1021, 0
        %v1024 = vxor.u32 %v1018, 2147483648
        %v1025 = vsel %vm1023, %v1017, %v1024
        %vm1026 = vcmp.eq.s32.totalorder %v1021, 2
        %v1027 = vxor.u32 %v1017, 2147483648
        %v1028 = vsel %vm1026, %v1027, %v1018
        %v1029 = vsel %vm1022, %v1025, %v1028
        %v1030 = vsel %vm1019, nan, %v1029
        %v1031 = vand.u32 2147483647, %v369
        %vm1032 = vcmp.le.f32.partialorder %v1031, 0.7853982
        %vm1033 = vcmp.lt.s32.totalorder %v369, 0
        %v1034 = vand.u32 %v369, 2139095040
        %v1035 = vshrl.u32 %v1034, 23
        %v1036 = vsub.s32 %v1035, 127
        %v1037 = vand.u32 2147483647, %v369
        %v1038 = vand.u32 %v1037, 8388607
        %v1039 = vor.u32 %v1038, 8388608
        %v1040 = vsub.s32 0, %v1039
        %v1041 = vadd.s32 %v1036, 1
        %vm1042 = vcmp.gt.s32.totalorder %v1041, 0
        %v1043 = vsel %vm1042, %v1041, 0
        %v1044 = vshrl.u32 %v1043, 5
        %v1045 = vand.u32 %v1043, 31
        %v1046 = vsub.s32 32, %v1045
        %v1047 = vshrl.u32 683565275, %v1046
        %v1048 = vshll.u32 683565275, %v1045
        %v1049 = vshrl.u32 2475754826, %v1046
        %v1050 = vor.u32 %v1048, %v1049
        %v1051 = vshll.u32 2475754826, %v1045
        %v1052 = vshrl.u32 2131351028, %v1046
        %v1053 = vor.u32 %v1051, %v1052
        %v1054 = vshll.u32 2131351028, %v1045
        %v1055 = vshrl.u32 2102212464, %v1046
        %v1056 = vor.u32 %v1054, %v1055
        %v1057 = vshll.u32 2102212464, %v1045
        %v1058 = vshrl.u32 920167782, %v1046
        %v1059 = vor.u32 %v1057, %v1058
        %v1060 = vshll.u32 920167782, %v1045
        %v1061 = vshrl.u32 1326507024, %v1046
        %v1062 = vor.u32 %v1060, %v1061
        %vm1063 = vcmp.lt.s32.totalorder %v1044, 1
        %vm1064 = vcmp.lt.s32.totalorder %v1044, 2
        %vm1065 = vcmp.lt.s32.totalorder %v1044, 3
        %vm1066 = vcmp.lt.s32.totalorder %v1044, 4
        %v1067 = vsel %vm1063, %v1047, %v1050
        %v1068 = vsel %vm1066, %v1056, 2102212464
        %v1069 = vsel %vm1065, %v1053, %v1068
        %v1070 = vsel %vm1064, %v1067, %v1069
        %v1071 = vsel %vm1063, %v1050, %v1053
        %v1072 = vsel %vm1066, %v1059, 920167782
        %v1073 = vsel %vm1065, %v1056, %v1072
        %v1074 = vsel %vm1064, %v1071, %v1073
        %v1075 = vsel %vm1063, %v1053, %v1056
        %v1076 = vsel %vm1066, %v1062, 1326507024
        %v1077 = vsel %vm1065, %v1059, %v1076
        %v1078 = vsel %vm1064, %v1075, %v1077
        %v1079 = vshll.u32 %v1039, 8
        %v1080 = vmul.u32.u64.compose %v1079, %v1078
        %v1081 = vextract.low.u32 %v1080
        %v1082 = vextract.high.u32 %v1080
        %v1083 = vmul.u32.u64.compose %v1079, %v1074
        %v1084 = vextract.low.u32 %v1083
        %v1085 = vextract.high.u32 %v1083
        %v1086 = vmul.u32 %v1079, %v1070
        %v1087 = vadd.s32 %v1082, %v1084
        %vm1088 = vc.u32 %v1082, %v1084
        %v1089 = vadd.s32 %v1085, 1
        %v1090 = vsel %vm1088, %v1089, %v1085
        %v1091 = vadd.s32 %v1086, %v1090
        %v1092 = vadd.s32 %v1091, 536870912
        %v1093 = vshrl.u32 %v1092, 30
        %v1094 = vshll.u32 %v1093, 30
        %v1095 = vsub.s32 %v1091, %v1094
        %vm1096 = vcmp.lt.s32.totalorder %v1095, 0
        %v1097 = vsub.s32 0, %v1095
        %v1098 = vsel %vm1096, %v1097, %v1095
        %v1099 = vclz %v1098
        %v1100 = vsub.s32 %v1099, 2
        %vm1101 = vcmp.gt.s32.totalorder 0, %v1100
        %v1102 = vsel %vm1101, 0, %v1100
        %v1103 = vsub.s32 32, %v1102
        %v1104 = vshll.u32 %v1095, %v1102
        %v1105 = vshrl.u32 %v1087, %v1103
        %v1106 = vor.u32 %v1104, %v1105
        %v1107 = vsub.s32 4294967266, %v1102
        %v1108 = vadd.s32 %v1107, 127
        %v1109 = vshll.u32 %v1108, 23
        %v1110 = vor.u32 4788187, %v1109
        %v1111 = vand.u32 2147483647, %v1110
        %v1113 = vcvt.s32.f32 %v1106
        %v1114 = vmul.f32 %v1113, %v1111
        %v1115 = vxor.u32 %v1114, 2147483648
        %v1116 = vsel %vm1033, %v1115, %v1114
        %v1117 = vsub.s32 4, %v1093
        %v1118 = vsel %vm1033, %v1117, %v1093
        %v1119 = vsel %vm1032, %v369, %v1116
        %v1120 = vsel %vm1032, 0, %v1118
        %v1121 = vcosq.f32.pop %v1119
        %v1122 = vsinq.f32.pop %v1119
        %vm1123 = vweird.f32 %v369
        %v1124 = vadd.s32 %v1120, 3
        %v1125 = vand.u32 %v1124, 3
        %vm1126 = vcmp.lt.s32.totalorder %v1125, 2
        %vm1127 = vcmp.eq.s32.totalorder %v1125, 0
        %v1128 = vxor.u32 %v1122, 2147483648
        %v1129 = vsel %vm1127, %v1121, %v1128
        %vm1130 = vcmp.eq.s32.totalorder %v1125, 2
        %v1131 = vxor.u32 %v1121, 2147483648
        %v1132 = vsel %vm1130, %v1131, %v1122
        %v1133 = vsel %vm1126, %v1129, %v1132
        %v1134 = vsel %vm1123, nan, %v1133
        %v1135 = vand.u32 2147483647, %v372
        %vm1136 = vcmp.le.f32.partialorder %v1135, 0.7853982
        %vm1137 = vcmp.lt.s32.totalorder %v372, 0
        %v1138 = vand.u32 %v372, 2139095040
        %v1139 = vshrl.u32 %v1138, 23
        %v1140 = vsub.s32 %v1139, 127
        %v1141 = vand.u32 2147483647, %v372
        %v1142 = vand.u32 %v1141, 8388607
        %v1143 = vor.u32 %v1142, 8388608
        %v1144 = vsub.s32 0, %v1143
        %v1145 = vadd.s32 %v1140, 1
        %vm1146 = vcmp.gt.s32.totalorder %v1145, 0
        %v1147 = vsel %vm1146, %v1145, 0
        %v1148 = vshrl.u32 %v1147, 5
        %v1149 = vand.u32 %v1147, 31
        %v1150 = vsub.s32 32, %v1149
        %v1151 = vshrl.u32 683565275, %v1150
        %v1152 = vshll.u32 683565275, %v1149
        %v1153 = vshrl.u32 2475754826, %v1150
        %v1154 = vor.u32 %v1152, %v1153
        %v1155 = vshll.u32 2475754826, %v1149
        %v1156 = vshrl.u32 2131351028, %v1150
        %v1157 = vor.u32 %v1155, %v1156
        %v1158 = vshll.u32 2131351028, %v1149
        %v1159 = vshrl.u32 2102212464, %v1150
        %v1160 = vor.u32 %v1158, %v1159
        %v1161 = vshll.u32 2102212464, %v1149
        %v1162 = vshrl.u32 920167782, %v1150
        %v1163 = vor.u32 %v1161, %v1162
        %v1164 = vshll.u32 920167782, %v1149
        %v1165 = vshrl.u32 1326507024, %v1150
        %v1166 = vor.u32 %v1164, %v1165
        %vm1167 = vcmp.lt.s32.totalorder %v1148, 1
        %vm1168 = vcmp.lt.s32.totalorder %v1148, 2
        %vm1169 = vcmp.lt.s32.totalorder %v1148, 3
        %vm1170 = vcmp.lt.s32.totalorder %v1148, 4
        %v1171 = vsel %vm1167, %v1151, %v1154
        %v1172 = vsel %vm1170, %v1160, 2102212464
        %v1173 = vsel %vm1169, %v1157, %v1172
        %v1174 = vsel %vm1168, %v1171, %v1173
        %v1175 = vsel %vm1167, %v1154, %v1157
        %v1176 = vsel %vm1170, %v1163, 920167782
        %v1177 = vsel %vm1169, %v1160, %v1176
        %v1178 = vsel %vm1168, %v1175, %v1177
        %v1179 = vsel %vm1167, %v1157, %v1160
        %v1180 = vsel %vm1170, %v1166, 1326507024
        %v1181 = vsel %vm1169, %v1163, %v1180
        %v1182 = vsel %vm1168, %v1179, %v1181
        %v1183 = vshll.u32 %v1143, 8
        %v1184 = vmul.u32.u64.compose %v1183, %v1182
        %v1185 = vextract.low.u32 %v1184
        %v1186 = vextract.high.u32 %v1184
        %v1187 = vmul.u32.u64.compose %v1183, %v1178
        %v1188 = vextract.low.u32 %v1187
        %v1189 = vextract.high.u32 %v1187
        %v1190 = vmul.u32 %v1183, %v1174
        %v1191 = vadd.s32 %v1186, %v1188
        %vm1192 = vc.u32 %v1186, %v1188
        %v1193 = vadd.s32 %v1189, 1
        %v1194 = vsel %vm1192, %v1193, %v1189
        %v1195 = vadd.s32 %v1190, %v1194
        %v1196 = vadd.s32 %v1195, 536870912
        %v1197 = vshrl.u32 %v1196, 30
        %v1198 = vshll.u32 %v1197, 30
        %v1199 = vsub.s32 %v1195, %v1198
        %vm1200 = vcmp.lt.s32.totalorder %v1199, 0
        %v1201 = vsub.s32 0, %v1199
        %v1202 = vsel %vm1200, %v1201, %v1199
        %v1203 = vclz %v1202
        %v1204 = vsub.s32 %v1203, 2
        %vm1205 = vcmp.gt.s32.totalorder 0, %v1204
        %v1206 = vsel %vm1205, 0, %v1204
        %v1207 = vsub.s32 32, %v1206
        %v1208 = vshll.u32 %v1199, %v1206
        %v1209 = vshrl.u32 %v1191, %v1207
        %v1210 = vor.u32 %v1208, %v1209
        %v1211 = vsub.s32 4294967266, %v1206
        %v1212 = vadd.s32 %v1211, 127
        %v1213 = vshll.u32 %v1212, 23
        %v1214 = vor.u32 4788187, %v1213
        %v1215 = vand.u32 2147483647, %v1214
        %v1217 = vcvt.s32.f32 %v1210
        %v1218 = vmul.f32 %v1217, %v1215
        %v1219 = vxor.u32 %v1218, 2147483648
        %v1220 = vsel %vm1137, %v1219, %v1218
        %v1221 = vsub.s32 4, %v1197
        %v1222 = vsel %vm1137, %v1221, %v1197
        %v1223 = vsel %vm1136, %v372, %v1220
        %v1224 = vsel %vm1136, 0, %v1222
        %v1225 = vcosq.f32.pop %v1223
        %v1226 = vsinq.f32.pop %v1223
        %vm1227 = vweird.f32 %v372
        %v1228 = vadd.s32 %v1224, 3
        %v1229 = vand.u32 %v1228, 3
        %vm1230 = vcmp.lt.s32.totalorder %v1229, 2
        %vm1231 = vcmp.eq.s32.totalorder %v1229, 0
        %v1232 = vxor.u32 %v1226, 2147483648
        %v1233 = vsel %vm1231, %v1225, %v1232
        %vm1234 = vcmp.eq.s32.totalorder %v1229, 2
        %v1235 = vxor.u32 %v1225, 2147483648
        %v1236 = vsel %vm1234, %v1235, %v1226
        %v1237 = vsel %vm1230, %v1233, %v1236
        %v1238 = vsel %vm1227, nan, %v1237
        %v1239 = vand.u32 2147483647, %v377
        %vm1240 = vcmp.le.f32.partialorder %v1239, 0.7853982
        %vm1241 = vcmp.lt.s32.totalorder %v377, 0
        %v1242 = vand.u32 %v377, 2139095040
        %v1243 = vshrl.u32 %v1242, 23
        %v1244 = vsub.s32 %v1243, 127
        %v1245 = vand.u32 2147483647, %v377
        %v1246 = vand.u32 %v1245, 8388607
        %v1247 = vor.u32 %v1246, 8388608
        %v1248 = vsub.s32 0, %v1247
        %v1249 = vadd.s32 %v1244, 1
        %vm1250 = vcmp.gt.s32.totalorder %v1249, 0
        %v1251 = vsel %vm1250, %v1249, 0
        %v1252 = vshrl.u32 %v1251, 5
        %v1253 = vand.u32 %v1251, 31
        %v1254 = vsub.s32 32, %v1253
        %v1255 = vshrl.u32 683565275, %v1254
        %v1256 = vshll.u32 683565275, %v1253
        %v1257 = vshrl.u32 2475754826, %v1254
        %v1258 = vor.u32 %v1256, %v1257
        %v1259 = vshll.u32 2475754826, %v1253
        %v1260 = vshrl.u32 2131351028, %v1254
        %v1261 = vor.u32 %v1259, %v1260
        %v1262 = vshll.u32 2131351028, %v1253
        %v1263 = vshrl.u32 2102212464, %v1254
        %v1264 = vor.u32 %v1262, %v1263
        %v1265 = vshll.u32 2102212464, %v1253
        %v1266 = vshrl.u32 920167782, %v1254
        %v1267 = vor.u32 %v1265, %v1266
        %v1268 = vshll.u32 920167782, %v1253
        %v1269 = vshrl.u32 1326507024, %v1254
        %v1270 = vor.u32 %v1268, %v1269
        %vm1271 = vcmp.lt.s32.totalorder %v1252, 1
        %vm1272 = vcmp.lt.s32.totalorder %v1252, 2
        %vm1273 = vcmp.lt.s32.totalorder %v1252, 3
        %vm1274 = vcmp.lt.s32.totalorder %v1252, 4
        %v1275 = vsel %vm1271, %v1255, %v1258
        %v1276 = vsel %vm1274, %v1264, 2102212464
        %v1277 = vsel %vm1273, %v1261, %v1276
        %v1278 = vsel %vm1272, %v1275, %v1277
        %v1279 = vsel %vm1271, %v1258, %v1261
        %v1280 = vsel %vm1274, %v1267, 920167782
        %v1281 = vsel %vm1273, %v1264, %v1280
        %v1282 = vsel %vm1272, %v1279, %v1281
        %v1283 = vsel %vm1271, %v1261, %v1264
        %v1284 = vsel %vm1274, %v1270, 1326507024
        %v1285 = vsel %vm1273, %v1267, %v1284
        %v1286 = vsel %vm1272, %v1283, %v1285
        %v1287 = vshll.u32 %v1247, 8
        %v1288 = vmul.u32.u64.compose %v1287, %v1286
        %v1289 = vextract.low.u32 %v1288
        %v1290 = vextract.high.u32 %v1288
        %v1291 = vmul.u32.u64.compose %v1287, %v1282
        %v1292 = vextract.low.u32 %v1291
        %v1293 = vextract.high.u32 %v1291
        %v1294 = vmul.u32 %v1287, %v1278
        %v1295 = vadd.s32 %v1290, %v1292
        %vm1296 = vc.u32 %v1290, %v1292
        %v1297 = vadd.s32 %v1293, 1
        %v1298 = vsel %vm1296, %v1297, %v1293
        %v1299 = vadd.s32 %v1294, %v1298
        %v1300 = vadd.s32 %v1299, 536870912
        %v1301 = vshrl.u32 %v1300, 30
        %v1302 = vshll.u32 %v1301, 30
        %v1303 = vsub.s32 %v1299, %v1302
        %vm1304 = vcmp.lt.s32.totalorder %v1303, 0
        %v1305 = vsub.s32 0, %v1303
        %v1306 = vsel %vm1304, %v1305, %v1303
        %v1307 = vclz %v1306
        %v1308 = vsub.s32 %v1307, 2
        %vm1309 = vcmp.gt.s32.totalorder 0, %v1308
        %v1310 = vsel %vm1309, 0, %v1308
        %v1311 = vsub.s32 32, %v1310
        %v1312 = vshll.u32 %v1303, %v1310
        %v1313 = vshrl.u32 %v1295, %v1311
        %v1314 = vor.u32 %v1312, %v1313
        %v1315 = vsub.s32 4294967266, %v1310
        %v1316 = vadd.s32 %v1315, 127
        %v1317 = vshll.u32 %v1316, 23
        %v1318 = vor.u32 4788187, %v1317
        %v1319 = vand.u32 2147483647, %v1318
        %v1321 = vcvt.s32.f32 %v1314
        %v1322 = vmul.f32 %v1321, %v1319
        %v1323 = vxor.u32 %v1322, 2147483648
        %v1324 = vsel %vm1241, %v1323, %v1322
        %v1325 = vsub.s32 4, %v1301
        %v1326 = vsel %vm1241, %v1325, %v1301
        %v1327 = vsel %vm1240, %v377, %v1324
        %v1328 = vsel %vm1240, 0, %v1326
        %v1329 = vcosq.f32.pop %v1327
        %v1330 = vsinq.f32.pop %v1327
        %vm1331 = vweird.f32 %v377
        %v1332 = vadd.s32 %v1328, 3
        %v1333 = vand.u32 %v1332, 3
        %vm1334 = vcmp.lt.s32.totalorder %v1333, 2
        %vm1335 = vcmp.eq.s32.totalorder %v1333, 0
        %v1336 = vxor.u32 %v1330, 2147483648
        %v1337 = vsel %vm1335, %v1329, %v1336
        %vm1338 = vcmp.eq.s32.totalorder %v1333, 2
        %v1339 = vxor.u32 %v1329, 2147483648
        %v1340 = vsel %vm1338, %v1339, %v1330
        %v1341 = vsel %vm1334, %v1337, %v1340
        %v1342 = vsel %vm1331, nan, %v1341
        %v1343 = vand.u32 2147483647, %v380
        %vm1344 = vcmp.le.f32.partialorder %v1343, 0.7853982
        %vm1345 = vcmp.lt.s32.totalorder %v380, 0
        %v1346 = vand.u32 %v380, 2139095040
        %v1347 = vshrl.u32 %v1346, 23
        %v1348 = vsub.s32 %v1347, 127
        %v1349 = vand.u32 2147483647, %v380
        %v1350 = vand.u32 %v1349, 8388607
        %v1351 = vor.u32 %v1350, 8388608
        %v1352 = vsub.s32 0, %v1351
        %v1353 = vadd.s32 %v1348, 1
        %vm1354 = vcmp.gt.s32.totalorder %v1353, 0
        %v1355 = vsel %vm1354, %v1353, 0
        %v1356 = vshrl.u32 %v1355, 5
        %v1357 = vand.u32 %v1355, 31
        %v1358 = vsub.s32 32, %v1357
        %v1359 = vshrl.u32 683565275, %v1358
        %v1360 = vshll.u32 683565275, %v1357
        %v1361 = vshrl.u32 2475754826, %v1358
        %v1362 = vor.u32 %v1360, %v1361
        %v1363 = vshll.u32 2475754826, %v1357
        %v1364 = vshrl.u32 2131351028, %v1358
        %v1365 = vor.u32 %v1363, %v1364
        %v1366 = vshll.u32 2131351028, %v1357
        %v1367 = vshrl.u32 2102212464, %v1358
        %v1368 = vor.u32 %v1366, %v1367
        %v1369 = vshll.u32 2102212464, %v1357
        %v1370 = vshrl.u32 920167782, %v1358
        %v1371 = vor.u32 %v1369, %v1370
        %v1372 = vshll.u32 920167782, %v1357
        %v1373 = vshrl.u32 1326507024, %v1358
        %v1374 = vor.u32 %v1372, %v1373
        %vm1375 = vcmp.lt.s32.totalorder %v1356, 1
        %vm1376 = vcmp.lt.s32.totalorder %v1356, 2
        %vm1377 = vcmp.lt.s32.totalorder %v1356, 3
        %vm1378 = vcmp.lt.s32.totalorder %v1356, 4
        %v1379 = vsel %vm1375, %v1359, %v1362
        %v1380 = vsel %vm1378, %v1368, 2102212464
        %v1381 = vsel %vm1377, %v1365, %v1380
        %v1382 = vsel %vm1376, %v1379, %v1381
        %v1383 = vsel %vm1375, %v1362, %v1365
        %v1384 = vsel %vm1378, %v1371, 920167782
        %v1385 = vsel %vm1377, %v1368, %v1384
        %v1386 = vsel %vm1376, %v1383, %v1385
        %v1387 = vsel %vm1375, %v1365, %v1368
        %v1388 = vsel %vm1378, %v1374, 1326507024
        %v1389 = vsel %vm1377, %v1371, %v1388
        %v1390 = vsel %vm1376, %v1387, %v1389
        %v1391 = vshll.u32 %v1351, 8
        %v1392 = vmul.u32.u64.compose %v1391, %v1390
        %v1393 = vextract.low.u32 %v1392
        %v1394 = vextract.high.u32 %v1392
        %v1395 = vmul.u32.u64.compose %v1391, %v1386
        %v1396 = vextract.low.u32 %v1395
        %v1397 = vextract.high.u32 %v1395
        %v1398 = vmul.u32 %v1391, %v1382
        %v1399 = vadd.s32 %v1394, %v1396
        %vm1400 = vc.u32 %v1394, %v1396
        %v1401 = vadd.s32 %v1397, 1
        %v1402 = vsel %vm1400, %v1401, %v1397
        %v1403 = vadd.s32 %v1398, %v1402
        %v1404 = vadd.s32 %v1403, 536870912
        %v1405 = vshrl.u32 %v1404, 30
        %v1406 = vshll.u32 %v1405, 30
        %v1407 = vsub.s32 %v1403, %v1406
        %vm1408 = vcmp.lt.s32.totalorder %v1407, 0
        %v1409 = vsub.s32 0, %v1407
        %v1410 = vsel %vm1408, %v1409, %v1407
        %v1411 = vclz %v1410
        %v1412 = vsub.s32 %v1411, 2
        %vm1413 = vcmp.gt.s32.totalorder 0, %v1412
        %v1414 = vsel %vm1413, 0, %v1412
        %v1415 = vsub.s32 32, %v1414
        %v1416 = vshll.u32 %v1407, %v1414
        %v1417 = vshrl.u32 %v1399, %v1415
        %v1418 = vor.u32 %v1416, %v1417
        %v1419 = vsub.s32 4294967266, %v1414
        %v1420 = vadd.s32 %v1419, 127
        %v1421 = vshll.u32 %v1420, 23
        %v1422 = vor.u32 4788187, %v1421
        %v1423 = vand.u32 2147483647, %v1422
        %v1425 = vcvt.s32.f32 %v1418
        %v1426 = vmul.f32 %v1425, %v1423
        %v1427 = vxor.u32 %v1426, 2147483648
        %v1428 = vsel %vm1345, %v1427, %v1426
        %v1429 = vsub.s32 4, %v1405
        %v1430 = vsel %vm1345, %v1429, %v1405
        %v1431 = vsel %vm1344, %v380, %v1428
        %v1432 = vsel %vm1344, 0, %v1430
        %v1433 = vcosq.f32.pop %v1431
        %v1434 = vsinq.f32.pop %v1431
        %vm1435 = vweird.f32 %v380
        %v1436 = vadd.s32 %v1432, 3
        %v1437 = vand.u32 %v1436, 3
        %vm1438 = vcmp.lt.s32.totalorder %v1437, 2
        %vm1439 = vcmp.eq.s32.totalorder %v1437, 0
        %v1440 = vxor.u32 %v1434, 2147483648
        %v1441 = vsel %vm1439, %v1433, %v1440
        %vm1442 = vcmp.eq.s32.totalorder %v1437, 2
        %v1443 = vxor.u32 %v1433, 2147483648
        %v1444 = vsel %vm1442, %v1443, %v1434
        %v1445 = vsel %vm1438, %v1441, %v1444
        %v1446 = vsel %vm1435, nan, %v1445
        %v1447 = vand.u32 2147483647, %v385
        %vm1448 = vcmp.le.f32.partialorder %v1447, 0.7853982
        %vm1449 = vcmp.lt.s32.totalorder %v385, 0
        %v1450 = vand.u32 %v385, 2139095040
        %v1451 = vshrl.u32 %v1450, 23
        %v1452 = vsub.s32 %v1451, 127
        %v1453 = vand.u32 2147483647, %v385
        %v1454 = vand.u32 %v1453, 8388607
        %v1455 = vor.u32 %v1454, 8388608
        %v1456 = vsub.s32 0, %v1455
        %v1457 = vadd.s32 %v1452, 1
        %vm1458 = vcmp.gt.s32.totalorder %v1457, 0
        %v1459 = vsel %vm1458, %v1457, 0
        %v1460 = vshrl.u32 %v1459, 5
        %v1461 = vand.u32 %v1459, 31
        %v1462 = vsub.s32 32, %v1461
        %v1463 = vshrl.u32 683565275, %v1462
        %v1464 = vshll.u32 683565275, %v1461
        %v1465 = vshrl.u32 2475754826, %v1462
        %v1466 = vor.u32 %v1464, %v1465
        %v1467 = vshll.u32 2475754826, %v1461
        %v1468 = vshrl.u32 2131351028, %v1462
        %v1469 = vor.u32 %v1467, %v1468
        %v1470 = vshll.u32 2131351028, %v1461
        %v1471 = vshrl.u32 2102212464, %v1462
        %v1472 = vor.u32 %v1470, %v1471
        %v1473 = vshll.u32 2102212464, %v1461
        %v1474 = vshrl.u32 920167782, %v1462
        %v1475 = vor.u32 %v1473, %v1474
        %v1476 = vshll.u32 920167782, %v1461
        %v1477 = vshrl.u32 1326507024, %v1462
        %v1478 = vor.u32 %v1476, %v1477
        %vm1479 = vcmp.lt.s32.totalorder %v1460, 1
        %vm1480 = vcmp.lt.s32.totalorder %v1460, 2
        %vm1481 = vcmp.lt.s32.totalorder %v1460, 3
        %vm1482 = vcmp.lt.s32.totalorder %v1460, 4
        %v1483 = vsel %vm1479, %v1463, %v1466
        %v1484 = vsel %vm1482, %v1472, 2102212464
        %v1485 = vsel %vm1481, %v1469, %v1484
        %v1486 = vsel %vm1480, %v1483, %v1485
        %v1487 = vsel %vm1479, %v1466, %v1469
        %v1488 = vsel %vm1482, %v1475, 920167782
        %v1489 = vsel %vm1481, %v1472, %v1488
        %v1490 = vsel %vm1480, %v1487, %v1489
        %v1491 = vsel %vm1479, %v1469, %v1472
        %v1492 = vsel %vm1482, %v1478, 1326507024
        %v1493 = vsel %vm1481, %v1475, %v1492
        %v1494 = vsel %vm1480, %v1491, %v1493
        %v1495 = vshll.u32 %v1455, 8
        %v1496 = vmul.u32.u64.compose %v1495, %v1494
        %v1497 = vextract.low.u32 %v1496
        %v1498 = vextract.high.u32 %v1496
        %v1499 = vmul.u32.u64.compose %v1495, %v1490
        %v1500 = vextract.low.u32 %v1499
        %v1501 = vextract.high.u32 %v1499
        %v1502 = vmul.u32 %v1495, %v1486
        %v1503 = vadd.s32 %v1498, %v1500
        %vm1504 = vc.u32 %v1498, %v1500
        %v1505 = vadd.s32 %v1501, 1
        %v1506 = vsel %vm1504, %v1505, %v1501
        %v1507 = vadd.s32 %v1502, %v1506
        %v1508 = vadd.s32 %v1507, 536870912
        %v1509 = vshrl.u32 %v1508, 30
        %v1510 = vshll.u32 %v1509, 30
        %v1511 = vsub.s32 %v1507, %v1510
        %vm1512 = vcmp.lt.s32.totalorder %v1511, 0
        %v1513 = vsub.s32 0, %v1511
        %v1514 = vsel %vm1512, %v1513, %v1511
        %v1515 = vclz %v1514
        %v1516 = vsub.s32 %v1515, 2
        %vm1517 = vcmp.gt.s32.totalorder 0, %v1516
        %v1518 = vsel %vm1517, 0, %v1516
        %v1519 = vsub.s32 32, %v1518
        %v1520 = vshll.u32 %v1511, %v1518
        %v1521 = vshrl.u32 %v1503, %v1519
        %v1522 = vor.u32 %v1520, %v1521
        %v1523 = vsub.s32 4294967266, %v1518
        %v1524 = vadd.s32 %v1523, 127
        %v1525 = vshll.u32 %v1524, 23
        %v1526 = vor.u32 4788187, %v1525
        %v1527 = vand.u32 2147483647, %v1526
        %v1529 = vcvt.s32.f32 %v1522
        %v1530 = vmul.f32 %v1529, %v1527
        %v1531 = vxor.u32 %v1530, 2147483648
        %v1532 = vsel %vm1449, %v1531, %v1530
        %v1533 = vsub.s32 4, %v1509
        %v1534 = vsel %vm1449, %v1533, %v1509
        %v1535 = vsel %vm1448, %v385, %v1532
        %v1536 = vsel %vm1448, 0, %v1534
        %v1537 = vcosq.f32.pop %v1535
        %v1538 = vsinq.f32.pop %v1535
        %vm1539 = vweird.f32 %v385
        %v1540 = vadd.s32 %v1536, 3
        %v1541 = vand.u32 %v1540, 3
        %vm1542 = vcmp.lt.s32.totalorder %v1541, 2
        %vm1543 = vcmp.eq.s32.totalorder %v1541, 0
        %v1544 = vxor.u32 %v1538, 2147483648
        %v1545 = vsel %vm1543, %v1537, %v1544
        %vm1546 = vcmp.eq.s32.totalorder %v1541, 2
        %v1547 = vxor.u32 %v1537, 2147483648
        %v1548 = vsel %vm1546, %v1547, %v1538
        %v1549 = vsel %vm1542, %v1545, %v1548
        %v1550 = vsel %vm1539, nan, %v1549
        %v1551 = vand.u32 2147483647, %v388
        %vm1552 = vcmp.le.f32.partialorder %v1551, 0.7853982
        %vm1553 = vcmp.lt.s32.totalorder %v388, 0
        %v1554 = vand.u32 %v388, 2139095040
        %v1555 = vshrl.u32 %v1554, 23
        %v1556 = vsub.s32 %v1555, 127
        %v1557 = vand.u32 2147483647, %v388
        %v1558 = vand.u32 %v1557, 8388607
        %v1559 = vor.u32 %v1558, 8388608
        %v1560 = vsub.s32 0, %v1559
        %v1561 = vadd.s32 %v1556, 1
        %vm1562 = vcmp.gt.s32.totalorder %v1561, 0
        %v1563 = vsel %vm1562, %v1561, 0
        %v1564 = vshrl.u32 %v1563, 5
        %v1565 = vand.u32 %v1563, 31
        %v1566 = vsub.s32 32, %v1565
        %v1567 = vshrl.u32 683565275, %v1566
        %v1568 = vshll.u32 683565275, %v1565
        %v1569 = vshrl.u32 2475754826, %v1566
        %v1570 = vor.u32 %v1568, %v1569
        %v1571 = vshll.u32 2475754826, %v1565
        %v1572 = vshrl.u32 2131351028, %v1566
        %v1573 = vor.u32 %v1571, %v1572
        %v1574 = vshll.u32 2131351028, %v1565
        %v1575 = vshrl.u32 2102212464, %v1566
        %v1576 = vor.u32 %v1574, %v1575
        %v1577 = vshll.u32 2102212464, %v1565
        %v1578 = vshrl.u32 920167782, %v1566
        %v1579 = vor.u32 %v1577, %v1578
        %v1580 = vshll.u32 920167782, %v1565
        %v1581 = vshrl.u32 1326507024, %v1566
        %v1582 = vor.u32 %v1580, %v1581
        %vm1583 = vcmp.lt.s32.totalorder %v1564, 1
        %vm1584 = vcmp.lt.s32.totalorder %v1564, 2
        %vm1585 = vcmp.lt.s32.totalorder %v1564, 3
        %vm1586 = vcmp.lt.s32.totalorder %v1564, 4
        %v1587 = vsel %vm1583, %v1567, %v1570
        %v1588 = vsel %vm1586, %v1576, 2102212464
        %v1589 = vsel %vm1585, %v1573, %v1588
        %v1590 = vsel %vm1584, %v1587, %v1589
        %v1591 = vsel %vm1583, %v1570, %v1573
        %v1592 = vsel %vm1586, %v1579, 920167782
        %v1593 = vsel %vm1585, %v1576, %v1592
        %v1594 = vsel %vm1584, %v1591, %v1593
        %v1595 = vsel %vm1583, %v1573, %v1576
        %v1596 = vsel %vm1586, %v1582, 1326507024
        %v1597 = vsel %vm1585, %v1579, %v1596
        %v1598 = vsel %vm1584, %v1595, %v1597
        %v1599 = vshll.u32 %v1559, 8
        %v1600 = vmul.u32.u64.compose %v1599, %v1598
        %v1601 = vextract.low.u32 %v1600
        %v1602 = vextract.high.u32 %v1600
        %v1603 = vmul.u32.u64.compose %v1599, %v1594
        %v1604 = vextract.low.u32 %v1603
        %v1605 = vextract.high.u32 %v1603
        %v1606 = vmul.u32 %v1599, %v1590
        %v1607 = vadd.s32 %v1602, %v1604
        %vm1608 = vc.u32 %v1602, %v1604
        %v1609 = vadd.s32 %v1605, 1
        %v1610 = vsel %vm1608, %v1609, %v1605
        %v1611 = vadd.s32 %v1606, %v1610
        %v1612 = vadd.s32 %v1611, 536870912
        %v1613 = vshrl.u32 %v1612, 30
        %v1614 = vshll.u32 %v1613, 30
        %v1615 = vsub.s32 %v1611, %v1614
        %vm1616 = vcmp.lt.s32.totalorder %v1615, 0
        %v1617 = vsub.s32 0, %v1615
        %v1618 = vsel %vm1616, %v1617, %v1615
        %v1619 = vclz %v1618
        %v1620 = vsub.s32 %v1619, 2
        %vm1621 = vcmp.gt.s32.totalorder 0, %v1620
        %v1622 = vsel %vm1621, 0, %v1620
        %v1623 = vsub.s32 32, %v1622
        %v1624 = vshll.u32 %v1615, %v1622
        %v1625 = vshrl.u32 %v1607, %v1623
        %v1626 = vor.u32 %v1624, %v1625
        %v1627 = vsub.s32 4294967266, %v1622
        %v1628 = vadd.s32 %v1627, 127
        %v1629 = vshll.u32 %v1628, 23
        %v1630 = vor.u32 4788187, %v1629
        %v1631 = vand.u32 2147483647, %v1630
        %v1633 = vcvt.s32.f32 %v1626
        %v1634 = vmul.f32 %v1633, %v1631
        %v1635 = vxor.u32 %v1634, 2147483648
        %v1636 = vsel %vm1553, %v1635, %v1634
        %v1637 = vsub.s32 4, %v1613
        %v1638 = vsel %vm1553, %v1637, %v1613
        %v1639 = vsel %vm1552, %v388, %v1636
        %v1640 = vsel %vm1552, 0, %v1638
        %v1641 = vcosq.f32.pop %v1639
        %v1642 = vsinq.f32.pop %v1639
        %vm1643 = vweird.f32 %v388
        %v1644 = vadd.s32 %v1640, 3
        %v1645 = vand.u32 %v1644, 3
        %vm1646 = vcmp.lt.s32.totalorder %v1645, 2
        %vm1647 = vcmp.eq.s32.totalorder %v1645, 0
        %v1648 = vxor.u32 %v1642, 2147483648
        %v1649 = vsel %vm1647, %v1641, %v1648
        %vm1650 = vcmp.eq.s32.totalorder %v1645, 2
        %v1651 = vxor.u32 %v1641, 2147483648
        %v1652 = vsel %vm1650, %v1651, %v1642
        %v1653 = vsel %vm1646, %v1649, %v1652
        %v1654 = vsel %vm1643, nan, %v1653
        %v1655 = vand.u32 2147483647, %v393
        %vm1656 = vcmp.le.f32.partialorder %v1655, 0.7853982
        %vm1657 = vcmp.lt.s32.totalorder %v393, 0
        %v1658 = vand.u32 %v393, 2139095040
        %v1659 = vshrl.u32 %v1658, 23
        %v1660 = vsub.s32 %v1659, 127
        %v1661 = vand.u32 2147483647, %v393
        %v1662 = vand.u32 %v1661, 8388607
        %v1663 = vor.u32 %v1662, 8388608
        %v1664 = vsub.s32 0, %v1663
        %v1665 = vadd.s32 %v1660, 1
        %vm1666 = vcmp.gt.s32.totalorder %v1665, 0
        %v1667 = vsel %vm1666, %v1665, 0
        %v1668 = vshrl.u32 %v1667, 5
        %v1669 = vand.u32 %v1667, 31
        %v1670 = vsub.s32 32, %v1669
        %v1671 = vshrl.u32 683565275, %v1670
        %v1672 = vshll.u32 683565275, %v1669
        %v1673 = vshrl.u32 2475754826, %v1670
        %v1674 = vor.u32 %v1672, %v1673
        %v1675 = vshll.u32 2475754826, %v1669
        %v1676 = vshrl.u32 2131351028, %v1670
        %v1677 = vor.u32 %v1675, %v1676
        %v1678 = vshll.u32 2131351028, %v1669
        %v1679 = vshrl.u32 2102212464, %v1670
        %v1680 = vor.u32 %v1678, %v1679
        %v1681 = vshll.u32 2102212464, %v1669
        %v1682 = vshrl.u32 920167782, %v1670
        %v1683 = vor.u32 %v1681, %v1682
        %v1684 = vshll.u32 920167782, %v1669
        %v1685 = vshrl.u32 1326507024, %v1670
        %v1686 = vor.u32 %v1684, %v1685
        %vm1687 = vcmp.lt.s32.totalorder %v1668, 1
        %vm1688 = vcmp.lt.s32.totalorder %v1668, 2
        %vm1689 = vcmp.lt.s32.totalorder %v1668, 3
        %vm1690 = vcmp.lt.s32.totalorder %v1668, 4
        %v1691 = vsel %vm1687, %v1671, %v1674
        %v1692 = vsel %vm1690, %v1680, 2102212464
        %v1693 = vsel %vm1689, %v1677, %v1692
        %v1694 = vsel %vm1688, %v1691, %v1693
        %v1695 = vsel %vm1687, %v1674, %v1677
        %v1696 = vsel %vm1690, %v1683, 920167782
        %v1697 = vsel %vm1689, %v1680, %v1696
        %v1698 = vsel %vm1688, %v1695, %v1697
        %v1699 = vsel %vm1687, %v1677, %v1680
        %v1700 = vsel %vm1690, %v1686, 1326507024
        %v1701 = vsel %vm1689, %v1683, %v1700
        %v1702 = vsel %vm1688, %v1699, %v1701
        %v1703 = vshll.u32 %v1663, 8
        %v1704 = vmul.u32.u64.compose %v1703, %v1702
        %v1705 = vextract.low.u32 %v1704
        %v1706 = vextract.high.u32 %v1704
        %v1707 = vmul.u32.u64.compose %v1703, %v1698
        %v1708 = vextract.low.u32 %v1707
        %v1709 = vextract.high.u32 %v1707
        %v1710 = vmul.u32 %v1703, %v1694
        %v1711 = vadd.s32 %v1706, %v1708
        %vm1712 = vc.u32 %v1706, %v1708
        %v1713 = vadd.s32 %v1709, 1
        %v1714 = vsel %vm1712, %v1713, %v1709
        %v1715 = vadd.s32 %v1710, %v1714
        %v1716 = vadd.s32 %v1715, 536870912
        %v1717 = vshrl.u32 %v1716, 30
        %v1718 = vshll.u32 %v1717, 30
        %v1719 = vsub.s32 %v1715, %v1718
        %vm1720 = vcmp.lt.s32.totalorder %v1719, 0
        %v1721 = vsub.s32 0, %v1719
        %v1722 = vsel %vm1720, %v1721, %v1719
        %v1723 = vclz %v1722
        %v1724 = vsub.s32 %v1723, 2
        %vm1725 = vcmp.gt.s32.totalorder 0, %v1724
        %v1726 = vsel %vm1725, 0, %v1724
        %v1727 = vsub.s32 32, %v1726
        %v1728 = vshll.u32 %v1719, %v1726
        %v1729 = vshrl.u32 %v1711, %v1727
        %v1730 = vor.u32 %v1728, %v1729
        %v1731 = vsub.s32 4294967266, %v1726
        %v1732 = vadd.s32 %v1731, 127
        %v1733 = vshll.u32 %v1732, 23
        %v1734 = vor.u32 4788187, %v1733
        %v1735 = vand.u32 2147483647, %v1734
        %v1737 = vcvt.s32.f32 %v1730
        %v1738 = vmul.f32 %v1737, %v1735
        %v1739 = vxor.u32 %v1738, 2147483648
        %v1740 = vsel %vm1657, %v1739, %v1738
        %v1741 = vsub.s32 4, %v1717
        %v1742 = vsel %vm1657, %v1741, %v1717
        %v1743 = vsel %vm1656, %v393, %v1740
        %v1744 = vsel %vm1656, 0, %v1742
        %v1745 = vcosq.f32.pop %v1743
        %v1746 = vsinq.f32.pop %v1743
        %vm1747 = vweird.f32 %v393
        %v1748 = vadd.s32 %v1744, 3
        %v1749 = vand.u32 %v1748, 3
        %vm1750 = vcmp.lt.s32.totalorder %v1749, 2
        %vm1751 = vcmp.eq.s32.totalorder %v1749, 0
        %v1752 = vxor.u32 %v1746, 2147483648
        %v1753 = vsel %vm1751, %v1745, %v1752
        %vm1754 = vcmp.eq.s32.totalorder %v1749, 2
        %v1755 = vxor.u32 %v1745, 2147483648
        %v1756 = vsel %vm1754, %v1755, %v1746
        %v1757 = vsel %vm1750, %v1753, %v1756
        %v1758 = vsel %vm1747, nan, %v1757
        %v1759 = vand.u32 2147483647, %v396
        %vm1760 = vcmp.le.f32.partialorder %v1759, 0.7853982
        %vm1761 = vcmp.lt.s32.totalorder %v396, 0
        %v1762 = vand.u32 %v396, 2139095040
        %v1763 = vshrl.u32 %v1762, 23
        %v1764 = vsub.s32 %v1763, 127
        %v1765 = vand.u32 2147483647, %v396
        %v1766 = vand.u32 %v1765, 8388607
        %v1767 = vor.u32 %v1766, 8388608
        %v1768 = vsub.s32 0, %v1767
        %v1769 = vadd.s32 %v1764, 1
        %vm1770 = vcmp.gt.s32.totalorder %v1769, 0
        %v1771 = vsel %vm1770, %v1769, 0
        %v1772 = vshrl.u32 %v1771, 5
        %v1773 = vand.u32 %v1771, 31
        %v1774 = vsub.s32 32, %v1773
        %v1775 = vshrl.u32 683565275, %v1774
        %v1776 = vshll.u32 683565275, %v1773
        %v1777 = vshrl.u32 2475754826, %v1774
        %v1778 = vor.u32 %v1776, %v1777
        %v1779 = vshll.u32 2475754826, %v1773
        %v1780 = vshrl.u32 2131351028, %v1774
        %v1781 = vor.u32 %v1779, %v1780
        %v1782 = vshll.u32 2131351028, %v1773
        %v1783 = vshrl.u32 2102212464, %v1774
        %v1784 = vor.u32 %v1782, %v1783
        %v1785 = vshll.u32 2102212464, %v1773
        %v1786 = vshrl.u32 920167782, %v1774
        %v1787 = vor.u32 %v1785, %v1786
        %v1788 = vshll.u32 920167782, %v1773
        %v1789 = vshrl.u32 1326507024, %v1774
        %v1790 = vor.u32 %v1788, %v1789
        %vm1791 = vcmp.lt.s32.totalorder %v1772, 1
        %vm1792 = vcmp.lt.s32.totalorder %v1772, 2
        %vm1793 = vcmp.lt.s32.totalorder %v1772, 3
        %vm1794 = vcmp.lt.s32.totalorder %v1772, 4
        %v1795 = vsel %vm1791, %v1775, %v1778
        %v1796 = vsel %vm1794, %v1784, 2102212464
        %v1797 = vsel %vm1793, %v1781, %v1796
        %v1798 = vsel %vm1792, %v1795, %v1797
        %v1799 = vsel %vm1791, %v1778, %v1781
        %v1800 = vsel %vm1794, %v1787, 920167782
        %v1801 = vsel %vm1793, %v1784, %v1800
        %v1802 = vsel %vm1792, %v1799, %v1801
        %v1803 = vsel %vm1791, %v1781, %v1784
        %v1804 = vsel %vm1794, %v1790, 1326507024
        %v1805 = vsel %vm1793, %v1787, %v1804
        %v1806 = vsel %vm1792, %v1803, %v1805
        %v1807 = vshll.u32 %v1767, 8
        %v1808 = vmul.u32.u64.compose %v1807, %v1806
        %v1809 = vextract.low.u32 %v1808
        %v1810 = vextract.high.u32 %v1808
        %v1811 = vmul.u32.u64.compose %v1807, %v1802
        %v1812 = vextract.low.u32 %v1811
        %v1813 = vextract.high.u32 %v1811
        %v1814 = vmul.u32 %v1807, %v1798
        %v1815 = vadd.s32 %v1810, %v1812
        %vm1816 = vc.u32 %v1810, %v1812
        %v1817 = vadd.s32 %v1813, 1
        %v1818 = vsel %vm1816, %v1817, %v1813
        %v1819 = vadd.s32 %v1814, %v1818
        %v1820 = vadd.s32 %v1819, 536870912
        %v1821 = vshrl.u32 %v1820, 30
        %v1822 = vshll.u32 %v1821, 30
        %v1823 = vsub.s32 %v1819, %v1822
        %vm1824 = vcmp.lt.s32.totalorder %v1823, 0
        %v1825 = vsub.s32 0, %v1823
        %v1826 = vsel %vm1824, %v1825, %v1823
        %v1827 = vclz %v1826
        %v1828 = vsub.s32 %v1827, 2
        %vm1829 = vcmp.gt.s32.totalorder 0, %v1828
        %v1830 = vsel %vm1829, 0, %v1828
        %v1831 = vsub.s32 32, %v1830
        %v1832 = vshll.u32 %v1823, %v1830
        %v1833 = vshrl.u32 %v1815, %v1831
        %v1834 = vor.u32 %v1832, %v1833
        %v1835 = vsub.s32 4294967266, %v1830
        %v1836 = vadd.s32 %v1835, 127
        %v1837 = vshll.u32 %v1836, 23
        %v1838 = vor.u32 4788187, %v1837
        %v1839 = vand.u32 2147483647, %v1838
        %v1841 = vcvt.s32.f32 %v1834
        %v1842 = vmul.f32 %v1841, %v1839
        %v1843 = vxor.u32 %v1842, 2147483648
        %v1844 = vsel %vm1761, %v1843, %v1842
        %v1845 = vsub.s32 4, %v1821
        %v1846 = vsel %vm1761, %v1845, %v1821
        %v1847 = vsel %vm1760, %v396, %v1844
        %v1848 = vsel %vm1760, 0, %v1846
        %v1849 = vcosq.f32.pop %v1847
        %v1850 = vsinq.f32.pop %v1847
        %vm1851 = vweird.f32 %v396
        %v1852 = vadd.s32 %v1848, 3
        %v1853 = vand.u32 %v1852, 3
        %vm1854 = vcmp.lt.s32.totalorder %v1853, 2
        %vm1855 = vcmp.eq.s32.totalorder %v1853, 0
        %v1856 = vxor.u32 %v1850, 2147483648
        %v1857 = vsel %vm1855, %v1849, %v1856
        %vm1858 = vcmp.eq.s32.totalorder %v1853, 2
        %v1859 = vxor.u32 %v1849, 2147483648
        %v1860 = vsel %vm1858, %v1859, %v1850
        %v1861 = vsel %vm1854, %v1857, %v1860
        %v1862 = vsel %vm1851, nan, %v1861
        %v1863 = vand.u32 2147483647, %v401
        %vm1864 = vcmp.le.f32.partialorder %v1863, 0.7853982
        %vm1865 = vcmp.lt.s32.totalorder %v401, 0
        %v1866 = vand.u32 %v401, 2139095040
        %v1867 = vshrl.u32 %v1866, 23
        %v1868 = vsub.s32 %v1867, 127
        %v1869 = vand.u32 2147483647, %v401
        %v1870 = vand.u32 %v1869, 8388607
        %v1871 = vor.u32 %v1870, 8388608
        %v1872 = vsub.s32 0, %v1871
        %v1873 = vadd.s32 %v1868, 1
        %vm1874 = vcmp.gt.s32.totalorder %v1873, 0
        %v1875 = vsel %vm1874, %v1873, 0
        %v1876 = vshrl.u32 %v1875, 5
        %v1877 = vand.u32 %v1875, 31
        %v1878 = vsub.s32 32, %v1877
        %v1879 = vshrl.u32 683565275, %v1878
        %v1880 = vshll.u32 683565275, %v1877
        %v1881 = vshrl.u32 2475754826, %v1878
        %v1882 = vor.u32 %v1880, %v1881
        %v1883 = vshll.u32 2475754826, %v1877
        %v1884 = vshrl.u32 2131351028, %v1878
        %v1885 = vor.u32 %v1883, %v1884
        %v1886 = vshll.u32 2131351028, %v1877
        %v1887 = vshrl.u32 2102212464, %v1878
        %v1888 = vor.u32 %v1886, %v1887
        %v1889 = vshll.u32 2102212464, %v1877
        %v1890 = vshrl.u32 920167782, %v1878
        %v1891 = vor.u32 %v1889, %v1890
        %v1892 = vshll.u32 920167782, %v1877
        %v1893 = vshrl.u32 1326507024, %v1878
        %v1894 = vor.u32 %v1892, %v1893
        %vm1895 = vcmp.lt.s32.totalorder %v1876, 1
        %vm1896 = vcmp.lt.s32.totalorder %v1876, 2
        %vm1897 = vcmp.lt.s32.totalorder %v1876, 3
        %vm1898 = vcmp.lt.s32.totalorder %v1876, 4
        %v1899 = vsel %vm1895, %v1879, %v1882
        %v1900 = vsel %vm1898, %v1888, 2102212464
        %v1901 = vsel %vm1897, %v1885, %v1900
        %v1902 = vsel %vm1896, %v1899, %v1901
        %v1903 = vsel %vm1895, %v1882, %v1885
        %v1904 = vsel %vm1898, %v1891, 920167782
        %v1905 = vsel %vm1897, %v1888, %v1904
        %v1906 = vsel %vm1896, %v1903, %v1905
        %v1907 = vsel %vm1895, %v1885, %v1888
        %v1908 = vsel %vm1898, %v1894, 1326507024
        %v1909 = vsel %vm1897, %v1891, %v1908
        %v1910 = vsel %vm1896, %v1907, %v1909
        %v1911 = vshll.u32 %v1871, 8
        %v1912 = vmul.u32.u64.compose %v1911, %v1910
        %v1913 = vextract.low.u32 %v1912
        %v1914 = vextract.high.u32 %v1912
        %v1915 = vmul.u32.u64.compose %v1911, %v1906
        %v1916 = vextract.low.u32 %v1915
        %v1917 = vextract.high.u32 %v1915
        %v1918 = vmul.u32 %v1911, %v1902
        %v1919 = vadd.s32 %v1914, %v1916
        %vm1920 = vc.u32 %v1914, %v1916
        %v1921 = vadd.s32 %v1917, 1
        %v1922 = vsel %vm1920, %v1921, %v1917
        %v1923 = vadd.s32 %v1918, %v1922
        %v1924 = vadd.s32 %v1923, 536870912
        %v1925 = vshrl.u32 %v1924, 30
        %v1926 = vshll.u32 %v1925, 30
        %v1927 = vsub.s32 %v1923, %v1926
        %vm1928 = vcmp.lt.s32.totalorder %v1927, 0
        %v1929 = vsub.s32 0, %v1927
        %v1930 = vsel %vm1928, %v1929, %v1927
        %v1931 = vclz %v1930
        %v1932 = vsub.s32 %v1931, 2
        %vm1933 = vcmp.gt.s32.totalorder 0, %v1932
        %v1934 = vsel %vm1933, 0, %v1932
        %v1935 = vsub.s32 32, %v1934
        %v1936 = vshll.u32 %v1927, %v1934
        %v1937 = vshrl.u32 %v1919, %v1935
        %v1938 = vor.u32 %v1936, %v1937
        %v1939 = vsub.s32 4294967266, %v1934
        %v1940 = vadd.s32 %v1939, 127
        %v1941 = vshll.u32 %v1940, 23
        %v1942 = vor.u32 4788187, %v1941
        %v1943 = vand.u32 2147483647, %v1942
        %v1945 = vcvt.s32.f32 %v1938
        %v1946 = vmul.f32 %v1945, %v1943
        %v1947 = vxor.u32 %v1946, 2147483648
        %v1948 = vsel %vm1865, %v1947, %v1946
        %v1949 = vsub.s32 4, %v1925
        %v1950 = vsel %vm1865, %v1949, %v1925
        %v1951 = vsel %vm1864, %v401, %v1948
        %v1952 = vsel %vm1864, 0, %v1950
        %v1953 = vcosq.f32.pop %v1951
        %v1954 = vsinq.f32.pop %v1951
        %vm1955 = vweird.f32 %v401
        %v1956 = vadd.s32 %v1952, 3
        %v1957 = vand.u32 %v1956, 3
        %vm1958 = vcmp.lt.s32.totalorder %v1957, 2
        %vm1959 = vcmp.eq.s32.totalorder %v1957, 0
        %v1960 = vxor.u32 %v1954, 2147483648
        %v1961 = vsel %vm1959, %v1953, %v1960
        %vm1962 = vcmp.eq.s32.totalorder %v1957, 2
        %v1963 = vxor.u32 %v1953, 2147483648
        %v1964 = vsel %vm1962, %v1963, %v1954
        %v1965 = vsel %vm1958, %v1961, %v1964
        %v1966 = vsel %vm1955, nan, %v1965
        %v1967 = vand.u32 2147483647, %v404
        %vm1968 = vcmp.le.f32.partialorder %v1967, 0.7853982
        %vm1969 = vcmp.lt.s32.totalorder %v404, 0
        %v1970 = vand.u32 %v404, 2139095040
        %v1971 = vshrl.u32 %v1970, 23
        %v1972 = vsub.s32 %v1971, 127
        %v1973 = vand.u32 2147483647, %v404
        %v1974 = vand.u32 %v1973, 8388607
        %v1975 = vor.u32 %v1974, 8388608
        %v1976 = vsub.s32 0, %v1975
        %v1977 = vadd.s32 %v1972, 1
        %vm1978 = vcmp.gt.s32.totalorder %v1977, 0
        %v1979 = vsel %vm1978, %v1977, 0
        %v1980 = vshrl.u32 %v1979, 5
        %v1981 = vand.u32 %v1979, 31
        %v1982 = vsub.s32 32, %v1981
        %v1983 = vshrl.u32 683565275, %v1982
        %v1984 = vshll.u32 683565275, %v1981
        %v1985 = vshrl.u32 2475754826, %v1982
        %v1986 = vor.u32 %v1984, %v1985
        %v1987 = vshll.u32 2475754826, %v1981
        %v1988 = vshrl.u32 2131351028, %v1982
        %v1989 = vor.u32 %v1987, %v1988
        %v1990 = vshll.u32 2131351028, %v1981
        %v1991 = vshrl.u32 2102212464, %v1982
        %v1992 = vor.u32 %v1990, %v1991
        %v1993 = vshll.u32 2102212464, %v1981
        %v1994 = vshrl.u32 920167782, %v1982
        %v1995 = vor.u32 %v1993, %v1994
        %v1996 = vshll.u32 920167782, %v1981
        %v1997 = vshrl.u32 1326507024, %v1982
        %v1998 = vor.u32 %v1996, %v1997
        %vm1999 = vcmp.lt.s32.totalorder %v1980, 1
        %vm2000 = vcmp.lt.s32.totalorder %v1980, 2
        %vm2001 = vcmp.lt.s32.totalorder %v1980, 3
        %vm2002 = vcmp.lt.s32.totalorder %v1980, 4
        %v2003 = vsel %vm1999, %v1983, %v1986
        %v2004 = vsel %vm2002, %v1992, 2102212464
        %v2005 = vsel %vm2001, %v1989, %v2004
        %v2006 = vsel %vm2000, %v2003, %v2005
        %v2007 = vsel %vm1999, %v1986, %v1989
        %v2008 = vsel %vm2002, %v1995, 920167782
        %v2009 = vsel %vm2001, %v1992, %v2008
        %v2010 = vsel %vm2000, %v2007, %v2009
        %v2011 = vsel %vm1999, %v1989, %v1992
        %v2012 = vsel %vm2002, %v1998, 1326507024
        %v2013 = vsel %vm2001, %v1995, %v2012
        %v2014 = vsel %vm2000, %v2011, %v2013
        %v2015 = vshll.u32 %v1975, 8
        %v2016 = vmul.u32.u64.compose %v2015, %v2014
        %v2017 = vextract.low.u32 %v2016
        %v2018 = vextract.high.u32 %v2016
        %v2019 = vmul.u32.u64.compose %v2015, %v2010
        %v2020 = vextract.low.u32 %v2019
        %v2021 = vextract.high.u32 %v2019
        %v2022 = vmul.u32 %v2015, %v2006
        %v2023 = vadd.s32 %v2018, %v2020
        %vm2024 = vc.u32 %v2018, %v2020
        %v2025 = vadd.s32 %v2021, 1
        %v2026 = vsel %vm2024, %v2025, %v2021
        %v2027 = vadd.s32 %v2022, %v2026
        %v2028 = vadd.s32 %v2027, 536870912
        %v2029 = vshrl.u32 %v2028, 30
        %v2030 = vshll.u32 %v2029, 30
        %v2031 = vsub.s32 %v2027, %v2030
        %vm2032 = vcmp.lt.s32.totalorder %v2031, 0
        %v2033 = vsub.s32 0, %v2031
        %v2034 = vsel %vm2032, %v2033, %v2031
        %v2035 = vclz %v2034
        %v2036 = vsub.s32 %v2035, 2
        %vm2037 = vcmp.gt.s32.totalorder 0, %v2036
        %v2038 = vsel %vm2037, 0, %v2036
        %v2039 = vsub.s32 32, %v2038
        %v2040 = vshll.u32 %v2031, %v2038
        %v2041 = vshrl.u32 %v2023, %v2039
        %v2042 = vor.u32 %v2040, %v2041
        %v2043 = vsub.s32 4294967266, %v2038
        %v2044 = vadd.s32 %v2043, 127
        %v2045 = vshll.u32 %v2044, 23
        %v2046 = vor.u32 4788187, %v2045
        %v2047 = vand.u32 2147483647, %v2046
        %v2049 = vcvt.s32.f32 %v2042
        %v2050 = vmul.f32 %v2049, %v2047
        %v2051 = vxor.u32 %v2050, 2147483648
        %v2052 = vsel %vm1969, %v2051, %v2050
        %v2053 = vsub.s32 4, %v2029
        %v2054 = vsel %vm1969, %v2053, %v2029
        %v2055 = vsel %vm1968, %v404, %v2052
        %v2056 = vsel %vm1968, 0, %v2054
        %v2057 = vcosq.f32.pop %v2055
        %v2058 = vsinq.f32.pop %v2055
        %vm2059 = vweird.f32 %v404
        %v2060 = vadd.s32 %v2056, 3
        %v2061 = vand.u32 %v2060, 3
        %vm2062 = vcmp.lt.s32.totalorder %v2061, 2
        %vm2063 = vcmp.eq.s32.totalorder %v2061, 0
        %v2064 = vxor.u32 %v2058, 2147483648
        %v2065 = vsel %vm2063, %v2057, %v2064
        %vm2066 = vcmp.eq.s32.totalorder %v2061, 2
        %v2067 = vxor.u32 %v2057, 2147483648
        %v2068 = vsel %vm2066, %v2067, %v2058
        %v2069 = vsel %vm2062, %v2065, %v2068
        %v2070 = vsel %vm2059, nan, %v2069
        %vm2071 = vcmask 523264
        %2072 = vst.msk [vmem:[%s210] sm:$0xff] %vm2071, %v510
        %2073 = vst.msk [vmem:[%s210 + $0x8] sm:$0xff] %vm2071, %v614
        %2074 = vst.msk [vmem:[%s210 + $0x10] sm:$0xff] %vm2071, %v718
        %2075 = vst.msk [vmem:[%s210 + $0x18] sm:$0xff] %vm2071, %v822
        %2076 = vst.msk [vmem:[%s210 + $0x20] sm:$0xff] %vm2071, %v926
        %2077 = vst.msk [vmem:[%s210 + $0x28] sm:$0xff] %vm2071, %v1030
        %2078 = vst.msk [vmem:[%s210 + $0x30] sm:$0xff] %vm2071, %v1134
        %2079 = vst.msk [vmem:[%s210 + $0x38] sm:$0xff] %vm2071, %v1238
        %2080 = vst.msk [vmem:[%s210 + $0x40] sm:$0xff] %vm2071, %v1342
        %2081 = vst.msk [vmem:[%s210 + $0x48] sm:$0xff] %vm2071, %v1446
        %2082 = vst.msk [vmem:[%s210 + $0x50] sm:$0xff] %vm2071, %v1550
        %2083 = vst.msk [vmem:[%s210 + $0x58] sm:$0xff] %vm2071, %v1654
        %2084 = vst.msk [vmem:[%s210 + $0x60] sm:$0xff] %vm2071, %v1758
        %2085 = vst.msk [vmem:[%s210 + $0x68] sm:$0xff] %vm2071, %v1862
        %2086 = vst.msk [vmem:[%s210 + $0x70] sm:$0xff] %vm2071, %v1966
        %2087 = vst.msk [vmem:[%s210 + $0x78] sm:$0xff] %vm2071, %v2070
        %s2088 = sand.u32 %s114, 1
        %s2089 = sand.u32 %s114, 1
        %s2090 = smul.addr %s2089, 128
        %s2091 = scalar_lea.vmem [#allocation2], %s2090
        // Predicated region
        $region33: #{tpu_custom_call.1} parent=31 // pred_check
          %p2092 = pneg %p124
        $region34: #{tpu_custom_call.1} parent=31 // pred_check_branch
          %2094 = sbr.rel (%p2092) target = $region36
        $region35: #{tpu_custom_call.1} parent=31 // pred_region
          %s2095 = smul.u32 16, %s19
          %s2096 = ssub.s32 25, %s2095
          %p2097 = scmp.lt.s32.totalorder %s2096, 16
          %s2098 = scalar_select %p2097, %s2096, 16
          %s2099 = smul.u32 128, %s2098
          %p2100 = scmp.ne.s32.totalorder 0, %s2099
          %s2101 = sadd.s32 %s18, %s2095
          %s2102 = smul.addr %s2101, 8
          %s2103 = scalar_lea.vmem %s3, %s2102
          // Predicated region
          $region37: #{tpu_custom_call.1} parent=35 // pred_check
            %p2104 = pneg %p2100
          $region38: #{tpu_custom_call.1} parent=35 // pred_check_branch
            %2106 = sbr.rel (%p2104) target = $region40
          $region39: #{tpu_custom_call.1} parent=35 // pred_region
            // Predicated region
            $region41: #{tpu_custom_call.1} parent=39 // pred_check
              _
            $region42: #{tpu_custom_call.1} parent=39 // pred_check_branch
              %2108 = sbr.rel (0) target = $region44
            $region43: #{tpu_custom_call.1} parent=39 // pred_region
              // Predicated region
              $region63: #{tpu_custom_call.1} parent=43 // pred_check
                _
              $region64: #{tpu_custom_call.1} parent=43 // pred_check_branch
                %2188 = sbr.rel (0) target = $region66
              $region65: #{tpu_custom_call.1} parent=43 // pred_region
                %s2189 = sshrl.u32 %s2098, 4
                // While loop
                $region67: #{tpu_custom_call.1} parent=65 // loop_pre_header
                  _
                $region68: #{tpu_custom_call.1} parent=65 // loop_header
                  %s2191 = sphi 0, %s2193
                  %p2192 = scmp.ge.s32.totalorder %s2191, %s2189
                  %s2196 = sphi 0, %s2233
                  %s2197 = sphi %s2091, %s2236
                  %s2198 = sphi %s2103, %s2237
                $region69: #{tpu_custom_call.1} parent=65 // loop_header_branch
                  %2195 = sbr.rel (%p2192) target = $region73
                $region70: #{tpu_custom_call.1} parent=65 // loop_body
                  %v2199 = vld [vmem:[%s2197] sm:$0xff]
                  %2200 = vst [vmem:[%s2198] sm:$0xff] %v2199
                  %v2201 = vld [vmem:[%s2197 + $0x8] sm:$0xff]
                  %2202 = vst [vmem:[%s2198 + $0x8] sm:$0xff] %v2201
                  %v2203 = vld [vmem:[%s2197 + $0x10] sm:$0xff]
                  %2204 = vst [vmem:[%s2198 + $0x10] sm:$0xff] %v2203
                  %v2205 = vld [vmem:[%s2197 + $0x18] sm:$0xff]
                  %2206 = vst [vmem:[%s2198 + $0x18] sm:$0xff] %v2205
                  %v2207 = vld [vmem:[%s2197 + $0x20] sm:$0xff]
                  %2208 = vst [vmem:[%s2198 + $0x20] sm:$0xff] %v2207
                  %v2209 = vld [vmem:[%s2197 + $0x28] sm:$0xff]
                  %2210 = vst [vmem:[%s2198 + $0x28] sm:$0xff] %v2209
                  %v2211 = vld [vmem:[%s2197 + $0x30] sm:$0xff]
                  %2212 = vst [vmem:[%s2198 + $0x30] sm:$0xff] %v2211
                  %v2213 = vld [vmem:[%s2197 + $0x38] sm:$0xff]
                  %2214 = vst [vmem:[%s2198 + $0x38] sm:$0xff] %v2213
                  %v2215 = vld [vmem:[%s2197 + $0x40] sm:$0xff]
                  %2216 = vst [vmem:[%s2198 + $0x40] sm:$0xff] %v2215
                  %v2217 = vld [vmem:[%s2197 + $0x48] sm:$0xff]
                  %2218 = vst [vmem:[%s2198 + $0x48] sm:$0xff] %v2217
                  %v2219 = vld [vmem:[%s2197 + $0x50] sm:$0xff]
                  %2220 = vst [vmem:[%s2198 + $0x50] sm:$0xff] %v2219
                  %v2221 = vld [vmem:[%s2197 + $0x58] sm:$0xff]
                  %2222 = vst [vmem:[%s2198 + $0x58] sm:$0xff] %v2221
                  %v2223 = vld [vmem:[%s2197 + $0x60] sm:$0xff]
                  %2224 = vst [vmem:[%s2198 + $0x60] sm:$0xff] %v2223
                  %v2225 = vld [vmem:[%s2197 + $0x68] sm:$0xff]
                  %2226 = vst [vmem:[%s2198 + $0x68] sm:$0xff] %v2225
                  %v2227 = vld [vmem:[%s2197 + $0x70] sm:$0xff]
                  %2228 = vst [vmem:[%s2198 + $0x70] sm:$0xff] %v2227
                  %v2229 = vld [vmem:[%s2197 + $0x78] sm:$0xff]
                  %2230 = vst [vmem:[%s2198 + $0x78] sm:$0xff] %v2229
                  %s2231 = sadd.s32 1, %s2196
                  %p2232 = scmp.ge.s32.totalorder %s2231, %s2189
                  %s2233 = scalar_select %p2232, 0, %s2231
                  %s2234 = smul.u32 %s2233, 128
                  %s2235 = smul.u32 %s2233, 128
                  %s2236 = scalar_lea.vmem %s2091, %s2234 [#allocation2]
                  %s2237 = scalar_lea.vmem %s2103, %s2235
                $region71: #{tpu_custom_call.1} parent=65 // loop_footer
                  %s2193 = sadd.s32 %s2191, 1
                $region72: #{tpu_custom_call.1} parent=65 // loop_footer_branch
                  %2190 = sbr.rel target = $region68
                $region73: #{tpu_custom_call.1} parent=65 // loop_exit
                  _
                %s2238 = sshrl.u32 %s2098, 4
                %s2239 = sand.u32 %s2098, 15
                %s2240 = smul.u32 %s2238, 16
                %s2241 = smul.u32 8, %s2240
                %s2242 = scalar_lea.vmem %s2091, %s2241 [#allocation2]
                %s2243 = smul.u32 8, %s2240
                %s2244 = scalar_lea.vmem %s2103, %s2243
                // While loop
                $region74: #{tpu_custom_call.1} parent=65 // loop_pre_header
                  _
                $region75: #{tpu_custom_call.1} parent=65 // loop_header
                  %s2246 = sphi 0, %s2248
                  %p2247 = scmp.ge.s32.totalorder %s2246, %s2239
                  %s2251 = sphi 0, %s2258
                  %s2252 = sphi %s2242, %s2261
                  %s2253 = sphi %s2244, %s2262
                $region76: #{tpu_custom_call.1} parent=65 // loop_header_branch
                  %2250 = sbr.rel (%p2247) target = $region80
                $region77: #{tpu_custom_call.1} parent=65 // loop_body
                  %v2254 = vld [vmem:[%s2252] sm:$0xff]
                  %2255 = vst [vmem:[%s2253] sm:$0xff] %v2254
                  %s2256 = sadd.s32 1, %s2251
                  %p2257 = scmp.ge.s32.totalorder %s2256, %s2239
                  %s2258 = scalar_select %p2257, 0, %s2256
                  %s2259 = smul.u32 %s2258, 8
                  %s2260 = smul.u32 %s2258, 8
                  %s2261 = scalar_lea.vmem %s2242, %s2259 [#allocation2]
                  %s2262 = scalar_lea.vmem %s2244, %s2260
                $region78: #{tpu_custom_call.1} parent=65 // loop_footer
                  %s2248 = sadd.s32 %s2246, 1
                $region79: #{tpu_custom_call.1} parent=65 // loop_footer_branch
                  %2245 = sbr.rel target = $region75
                $region80: #{tpu_custom_call.1} parent=65 // loop_exit
                  _
              $region66: #{tpu_custom_call.1} parent=43 // pred_fallthru
                _
              // Predicated region
              $region81: #{tpu_custom_call.1} parent=43 // pred_check
                _
              $region82: #{tpu_custom_call.1} parent=43 // pred_check_branch
                %2264 = sbr.rel target = $region84
              $region83: #{tpu_custom_call.1} parent=43 // pred_region
                _
              $region84: #{tpu_custom_call.1} parent=43 // pred_fallthru
                _
            $region44: #{tpu_custom_call.1} parent=39 // pred_fallthru
              _
            // Predicated region
            $region45: #{tpu_custom_call.1} parent=39 // pred_check
              _
            $region46: #{tpu_custom_call.1} parent=39 // pred_check_branch
              %2110 = sbr.rel target = $region48
            $region47: #{tpu_custom_call.1} parent=39 // pred_region
              %s2112 = ssub.s32 256, 1
              %s2113 = sshrl.u32 %s2098, 4
              // While loop
              $region49: #{tpu_custom_call.1} parent=47 // loop_pre_header
                _
              $region50: #{tpu_custom_call.1} parent=47 // loop_header
                %s2115 = sphi 0, %s2117
                %p2116 = scmp.ge.s32.totalorder %s2115, %s2113
                %s2120 = sphi 0, %s2157
                %s2121 = sphi %s2091, %s2160
                %s2122 = sphi %s2103, %s2161
              $region51: #{tpu_custom_call.1} parent=47 // loop_header_branch
                %2119 = sbr.rel (%p2116) target = $region55
              $region52: #{tpu_custom_call.1} parent=47 // loop_body
                %v2123 = vld [vmem:[%s2121] sm:%s2112]
                %2124 = vst [vmem:[%s2122] sm:%s2112] %v2123
                %v2125 = vld [vmem:[%s2121 + $0x8] sm:%s2112]
                %2126 = vst [vmem:[%s2122 + $0x8] sm:%s2112] %v2125
                %v2127 = vld [vmem:[%s2121 + $0x10] sm:%s2112]
                %2128 = vst [vmem:[%s2122 + $0x10] sm:%s2112] %v2127
                %v2129 = vld [vmem:[%s2121 + $0x18] sm:%s2112]
                %2130 = vst [vmem:[%s2122 + $0x18] sm:%s2112] %v2129
                %v2131 = vld [vmem:[%s2121 + $0x20] sm:%s2112]
                %2132 = vst [vmem:[%s2122 + $0x20] sm:%s2112] %v2131
                %v2133 = vld [vmem:[%s2121 + $0x28] sm:%s2112]
                %2134 = vst [vmem:[%s2122 + $0x28] sm:%s2112] %v2133
                %v2135 = vld [vmem:[%s2121 + $0x30] sm:%s2112]
                %2136 = vst [vmem:[%s2122 + $0x30] sm:%s2112] %v2135
                %v2137 = vld [vmem:[%s2121 + $0x38] sm:%s2112]
                %2138 = vst [vmem:[%s2122 + $0x38] sm:%s2112] %v2137
                %v2139 = vld [vmem:[%s2121 + $0x40] sm:%s2112]
                %2140 = vst [vmem:[%s2122 + $0x40] sm:%s2112] %v2139
                %v2141 = vld [vmem:[%s2121 + $0x48] sm:%s2112]
                %2142 = vst [vmem:[%s2122 + $0x48] sm:%s2112] %v2141
                %v2143 = vld [vmem:[%s2121 + $0x50] sm:%s2112]
                %2144 = vst [vmem:[%s2122 + $0x50] sm:%s2112] %v2143
                %v2145 = vld [vmem:[%s2121 + $0x58] sm:%s2112]
                %2146 = vst [vmem:[%s2122 + $0x58] sm:%s2112] %v2145
                %v2147 = vld [vmem:[%s2121 + $0x60] sm:%s2112]
                %2148 = vst [vmem:[%s2122 + $0x60] sm:%s2112] %v2147
                %v2149 = vld [vmem:[%s2121 + $0x68] sm:%s2112]
                %2150 = vst [vmem:[%s2122 + $0x68] sm:%s2112] %v2149
                %v2151 = vld [vmem:[%s2121 + $0x70] sm:%s2112]
                %2152 = vst [vmem:[%s2122 + $0x70] sm:%s2112] %v2151
                %v2153 = vld [vmem:[%s2121 + $0x78] sm:%s2112]
                %2154 = vst [vmem:[%s2122 + $0x78] sm:%s2112] %v2153
                %s2155 = sadd.s32 1, %s2120
                %p2156 = scmp.ge.s32.totalorder %s2155, %s2113
                %s2157 = scalar_select %p2156, 0, %s2155
                %s2158 = smul.u32 %s2157, 128
                %s2159 = smul.u32 %s2157, 128
                %s2160 = scalar_lea.vmem %s2091, %s2158 [#allocation2]
                %s2161 = scalar_lea.vmem %s2103, %s2159
              $region53: #{tpu_custom_call.1} parent=47 // loop_footer
                %s2117 = sadd.s32 %s2115, 1
              $region54: #{tpu_custom_call.1} parent=47 // loop_footer_branch
                %2114 = sbr.rel target = $region50
              $region55: #{tpu_custom_call.1} parent=47 // loop_exit
                _
              %s2162 = sshrl.u32 %s2098, 4
              %s2163 = sand.u32 %s2098, 15
              %s2164 = smul.u32 %s2162, 16
              %s2165 = smul.u32 8, %s2164
              %s2166 = scalar_lea.vmem %s2091, %s2165 [#allocation2]
              %s2167 = smul.u32 8, %s2164
              %s2168 = scalar_lea.vmem %s2103, %s2167
              // While loop
              $region56: #{tpu_custom_call.1} parent=47 // loop_pre_header
                _
              $region57: #{tpu_custom_call.1} parent=47 // loop_header
                %s2170 = sphi 0, %s2172
                %p2171 = scmp.ge.s32.totalorder %s2170, %s2163
                %s2175 = sphi 0, %s2182
                %s2176 = sphi %s2166, %s2185
                %s2177 = sphi %s2168, %s2186
              $region58: #{tpu_custom_call.1} parent=47 // loop_header_branch
                %2174 = sbr.rel (%p2171) target = $region62
              $region59: #{tpu_custom_call.1} parent=47 // loop_body
                %v2178 = vld [vmem:[%s2176] sm:%s2112]
                %2179 = vst [vmem:[%s2177] sm:%s2112] %v2178
                %s2180 = sadd.s32 1, %s2175
                %p2181 = scmp.ge.s32.totalorder %s2180, %s2163
                %s2182 = scalar_select %p2181, 0, %s2180
                %s2183 = smul.u32 %s2182, 8
                %s2184 = smul.u32 %s2182, 8
                %s2185 = scalar_lea.vmem %s2166, %s2183 [#allocation2]
                %s2186 = scalar_lea.vmem %s2168, %s2184
              $region60: #{tpu_custom_call.1} parent=47 // loop_footer
                %s2172 = sadd.s32 %s2170, 1
              $region61: #{tpu_custom_call.1} parent=47 // loop_footer_branch
                %2169 = sbr.rel target = $region57
              $region62: #{tpu_custom_call.1} parent=47 // loop_exit
                _
            $region48: #{tpu_custom_call.1} parent=39 // pred_fallthru
              _
          $region40: #{tpu_custom_call.1} parent=35 // pred_fallthru
            _
          %2265 = vnop
        $region36: #{tpu_custom_call.1} parent=31 // pred_fallthru
          _
      $region32: #{tpu_custom_call.1} parent=5 // pred_fallthru
        _
      %p2266 = scmp.le.s32.totalorder 2, %s9
      // Predicated region
      $region85: #{tpu_custom_call.1} parent=5 // pred_check
        %p2267 = pneg %p2266
      $region86: #{tpu_custom_call.1} parent=5 // pred_check_branch
        %2269 = sbr.rel (%p2267) target = $region88
      $region87: #{tpu_custom_call.1} parent=5 // pred_region
        %s2270 = ssub.s32 %s9, 2
        // Predicated region
        $region89: #{tpu_custom_call.1} parent=87 // pred_check
          %p2271 = pneg %p130
        $region90: #{tpu_custom_call.1} parent=87 // pred_check_branch
          %2273 = sbr.rel (%p2271) target = $region92
        $region91: #{tpu_custom_call.1} parent=87 // pred_region
          %s2274 = sand.u32 %s115, 1
          %s2275 = sand.u32 %s115, 1
          %s2276 = smul.addr %s2275, 128
          %s2277 = scalar_lea.vmem [#allocation2], %s2276
        $region92: #{tpu_custom_call.1} parent=87 // pred_fallthru
          _
      $region88: #{tpu_custom_call.1} parent=5 // pred_fallthru
        _
    $region6: #{tpu_custom_call.1} parent=1 // loop_footer
      %s13 = sadd.s32 1, %s9
    $region7: #{tpu_custom_call.1} parent=1 // loop_footer_branch
      %8 = sbr.rel target = $region3
    $region8: #{tpu_custom_call.1} parent=1 // loop_exit
      _

</llo_original>
